<compile_context>
chip_gen: v6e
topology: v6e:2x2x1
jax: 0.10.0
libtpu: 0.0.40
codegen_flags: <defaults>
</compile_context>

<pallas_src>
import functools

import jax
import jax.numpy as jnp
from jax.experimental import pallas as pl
from jax.experimental.pallas import tpu as pltpu

# ---------------------------------------------------------------------------
# Amino-acid physicochemical feature table (copied from AminoAcidFeatures).
# ---------------------------------------------------------------------------
AA_FEATURES = {
    'A': [0.62, 0.0, 0.0, 0.0, 1.8],   'R': [-2.53, 3.0, 1.0, 1.0, 10.76],
    'N': [-0.78, 2.0, 0.0, 0.0, 8.33], 'D': [-0.9, 3.0, -1.0, 0.0, 3.86],
    'C': [0.29, 1.0, 0.0, 0.0, 8.33],  'E': [-0.74, 3.0, -1.0, 0.0, 4.25],
    'Q': [-0.85, 2.0, 0.0, 0.0, 8.33], 'G': [0.48, 0.0, 0.0, 0.0, 7.03],
    'H': [-0.4, 2.0, 0.5, 0.0, 6.0],   'I': [1.38, 0.0, 0.0, 1.0, 5.94],
    'L': [1.06, 0.0, 0.0, 1.0, 5.98],  'K': [-1.5, 3.0, 1.0, 1.0, 9.74],
    'M': [0.64, 1.0, 0.0, 1.0, 5.74],  'F': [1.19, 0.0, 0.0, 1.0, 5.48],
    'P': [0.12, 0.0, 0.0, 0.0, 6.3],   'S': [-0.18, 1.0, 0.0, 0.0, 5.68],
    'T': [-0.05, 1.0, 0.0, 0.0, 6.16], 'W': [0.81, 1.0, 0.0, 1.0, 5.89],
    'Y': [0.26, 2.0, 0.0, 1.0, 5.66],  'V': [1.08, 0.0, 0.0, 1.0, 5.96],
    'X': [0.0, 0.0, 0.0, 0.0, 7.0],    '<PAD>': [0.0, 0.0, 0.0, 0.0, 0.0],
}
AA_TO_IDX = {aa: i for i, aa in enumerate(AA_FEATURES.keys())}
AA_FEATURE_DIM = 5
CONV1_OUT = 32
CONV2_OUT = 64


# ---------------------------------------------------------------------------
# Fused forward kernel
# ---------------------------------------------------------------------------
def _layernorm(x, gamma, beta, eps=1e-5):
    # matches nn.LayerNorm: biased variance, eps inside the sqrt
    mu = jnp.mean(x, axis=-1, keepdims=True)
    var = jnp.mean((x - mu) * (x - mu), axis=-1, keepdims=True)
    return (x - mu) * jax.lax.rsqrt(var + eps) * gamma + beta


def _make_fused_kernel(bb, l_mhc, l_pep):
    """bb: batch rows per grid step; l_mhc / l_pep: padded sequence lengths."""
    bf16 = jnp.bfloat16

    def conv_layer(v, first, last, w2d, b):
        # v: (rows, Cin) f32; w2d: (3*Cin, Cout) bf16.
        # Conv1d(k=3, padding=1) + ReLU as ONE im2col matmul (one MXU pass).
        rows = v.shape[0]
        vm = jnp.where(first, 0.0, pltpu.roll(v, 1, 0))          # x[l-1], zero at seq start
        vp = jnp.where(last, 0.0, pltpu.roll(v, rows - 1, 0))    # x[l+1], zero at seq end
        x = jnp.concatenate([vm, v, vp], axis=-1).astype(bf16)   # (rows, 3*Cin) bf16
        acc = jnp.dot(x, w2d, preferred_element_type=jnp.float32)
        return jnp.maximum(acc + b, 0.0)                         # bias/ReLU in f32

    def conv_branch(x, L, w1, b1, w2, b2):
        v = x.astype(jnp.float32)                                # (bb*L, Cin)
        # hoisted boundary masks, shared by both conv layers
        pos = jax.lax.broadcasted_iota(jnp.int32, (v.shape[0], 1), 0) % L
        first, last = pos == 0, pos == (L - 1)
        h = conv_layer(v, first, last, w1, b1)                   # (bb*L, 32) f32
        g = conv_layer(h, first, last, w2, b2)                   # (bb*L, 64) f32
        # adaptive_max_pool1d(1) over the sequence axis (pools over padded
        # positions too, matching torch pad_sequence + conv + pool)
        return jnp.max(g.reshape(bb, L, g.shape[-1]), axis=1)    # (bb, 64) f32

    def kernel(bert_ref, mhc_ref, pep_ref,
               w1_ref, b1_ref, w2_ref, b2_ref,
               wf_bert_ref, wf_mhc_ref, wf_pep_ref, bf_ref,
               g1_ref, be1_ref, wc1_ref, bc1_ref,
               g2_ref, be2_ref, wc2_ref, bc2_ref,
               o_ref):
        w1, b1 = w1_ref[...], b1_ref[...]
        w2, b2 = w2_ref[...], b2_ref[...]

        # physchem conv branches (share the resident conv weights).
        # TODO(synk): they could share one conv pass by stacking rows, but that
        # changes max-pool semantics when Lp != Lm, so they stay separate.
        mhc_vec = conv_branch(mhc_ref[...], l_mhc, w1, b1, w2, b2)   # (bb, 64)
        pep_vec = conv_branch(pep_ref[...], l_pep, w1, b1, w2, b2)   # (bb, 64)

        # fusion layer: [bert | mhc | pep] @ Wf == bert@Wf_a + mhc@Wf_b + pep@Wf_c
        h = (jnp.dot(bert_ref[...], wf_bert_ref[...],
                     preferred_element_type=jnp.float32)
             + jnp.dot(mhc_vec.astype(bf16), wf_mhc_ref[...],
                       preferred_element_type=jnp.float32)
             + jnp.dot(pep_vec.astype(bf16), wf_pep_ref[...],
                       preferred_element_type=jnp.float32)
             + bf_ref[...])
        h = jnp.maximum(_layernorm(h, g1_ref[...], be1_ref[...]), 0.0)  # ReLU; Dropout=id (eval)

        # classifier
        z = jnp.dot(h.astype(bf16), wc1_ref[...],
                    preferred_element_type=jnp.float32) + bc1_ref[...]
        z = jnp.maximum(_layernorm(z, g2_ref[...], be2_ref[...]), 0.0)  # ReLU; Dropout=id (eval)

        # final Linear(H4 -> 1): VPU multiply + lane reduction (no N=1 MXU pass)
        logit = jnp.sum(z * wc2_ref[...], axis=-1, keepdims=True) + bc2_ref[...]
        o_ref[...] = jax.nn.sigmoid(logit)

    return kernel


# ---------------------------------------------------------------------------
# Tiling / VMEM heuristics
# ---------------------------------------------------------------------------
def _num_tensorcores():
    """2 TensorCores per chip on v7x-class devices, 1 on v5e/v6e."""
    try:
        kind = jax.devices()[0].device_kind.lower()
    except Exception:
        return 1
    return 2 if ("v7" in kind or "tpu7" in kind) else 1


def _vmem_limit_bytes():
    """Raise the scoped-VMEM limit with headroom; None -> leave compiler default."""
    try:
        cap = int(pltpu.get_tpu_info().vmem_capacity_bytes)
        return min(96 * 1024 * 1024, (cap * 3) // 4)
    except Exception:
        return None


def _choose_batch_tile(B, Lm, Lp, H, vmem_budget, n_cores):
    """Pick batch rows per grid step (bb) and the zero-padded batch size."""
    # rough live-VMEM bytes per batch row: bf16 inputs (double-buffered) + f32
    # shifted/im2col operands + f32 conv outputs + head activations.
    per_row = (Lm + Lp) * 1200 + 8 * H
    max_bb = min(256, max(16, int(vmem_budget * 0.45) // max(per_row, 1)))
    max_bb = max(16, (max_bb // 16) * 16)        # 16-aligned multi-row blocks

    steps = n_cores if (n_cores > 1 and B >= 16) else 1   # feed both TCs on v7x
    steps = max(steps, -(-B // max_bb))                   # respect the VMEM cap
    if steps == 1:
        return B, B                                       # single full-batch block
    bb = -(-B // steps)
    bb = max(16, ((bb + 15) // 16) * 16)
    b_pad = ((B + bb - 1) // bb) * bb                     # pad tail, slice output later
    return bb, b_pad


def _weight_spec(w, single_buffer):
    if single_buffer:
        # constant index_map -> single-buffered residency (saves the 2x default)
        return pl.BlockSpec(w.shape, lambda i: (0, 0), pipeline_mode=pl.Buffered(1))
    return pl.BlockSpec(w.shape, lambda i: (0, 0))


# ---------------------------------------------------------------------------
# Wrapper
# ---------------------------------------------------------------------------
def mhc_peptide_forward(bert_features, mhc_phys, pep_phys, params,
                        single_buffer_weights=True):
    """bert_features: (B, H) f32; mhc_phys: (B, Lm, 5); pep_phys: (B, Lp, 5)."""
    B, H = bert_features.shape
    _, Lm, Cin = mhc_phys.shape
    _, Lp, _ = pep_phys.shape
    bf16 = jnp.bfloat16
    c2 = CONV2_OUT

    # fusion weight row-split (kills the bert/physchem concats); bf16 MXU operands.
    # torch.cat order is [bert | mhc | pep].
    fw = params['fusion_w']
    wf_bert = fw[:H].astype(bf16)
    wf_mhc = fw[H:H + c2].astype(bf16)
    wf_pep = fw[H + c2:].astype(bf16)
    wc1 = params['cls1_w'].astype(bf16)
    wc2_row = params['cls2_w'].reshape(1, -1)             # (1, H4) for VPU mul+reduce

    # im2col conv weights: (3, Cin, Cout) -> (3*Cin, Cout), bf16 MXU operands
    w1_2d = params['conv1_w'].reshape(3 * Cin, CONV1_OUT).astype(bf16)
    w2_2d = params['conv2_w'].reshape(3 * CONV1_OUT, CONV2_OUT).astype(bf16)

    vmem_limit = _vmem_limit_bytes()
    budget = vmem_limit if vmem_limit is not None else 16 * 1024 * 1024
    bb, b_pad = _choose_batch_tile(B, Lm, Lp, H, budget, _num_tensorcores())

    bert_bf16 = bert_features.astype(bf16)
    if b_pad != B:
        pad = b_pad - B
        bert_bf16 = jnp.pad(bert_bf16, ((0, pad), (0, 0)))
        mhc_phys = jnp.pad(mhc_phys, ((0, pad), (0, 0), (0, 0)))
        pep_phys = jnp.pad(pep_phys, ((0, pad), (0, 0), (0, 0)))

    # conv inputs shipped flattened (B*L, Cin) in bf16 (half the DMA bytes)
    mhc_flat = mhc_phys.reshape(b_pad * Lm, Cin).astype(bf16)
    pep_flat = pep_phys.reshape(b_pad * Lp, Cin).astype(bf16)

    batch_specs = [
        pl.BlockSpec((bb, H), lambda i: (i, 0)),
        pl.BlockSpec((bb * Lm, Cin), lambda i: (i, 0)),
        pl.BlockSpec((bb * Lp, Cin), lambda i: (i, 0)),
    ]
    weights = (w1_2d, params['conv1_b'], w2_2d, params['conv2_b'],
               wf_bert, wf_mhc, wf_pep, params['fusion_b'],
               params['ln1_g'], params['ln1_b'], wc1, params['cls1_b'],
               params['ln2_g'], params['ln2_b'], wc2_row, params['cls2_b'])
    weight_specs = [_weight_spec(w, single_buffer_weights) for w in weights]

    cp_kwargs = dict(dimension_semantics=("parallel",))
    if vmem_limit is not None:
        cp_kwargs["vmem_limit_bytes"] = int(vmem_limit)

    out = pl.pallas_call(
        _make_fused_kernel(bb, Lm, Lp),
        out_shape=jax.ShapeDtypeStruct((b_pad, 1), jnp.float32),
        grid=(b_pad // bb,),
        in_specs=batch_specs + weight_specs,
        # NOTE: lane-sparse (bb, 1) writeback; bytes are tiny so leaving it
        # (the reviewed lane-dense variant is a few-% polish only).
        out_specs=pl.BlockSpec((bb, 1), lambda i: (i, 0)),
        compiler_params=pltpu.CompilerParams(**cp_kwargs),
    )(bert_bf16, mhc_flat, pep_flat, *weights)
    return out[:B] if b_pad != B else out


# ---------------------------------------------------------------------------
# Glue: parameter init, physchem embedding (host-side string -> indices).
# ---------------------------------------------------------------------------
def init_params(key, hidden_dim):
    ks = jax.random.split(key, 6)
    H2, H4 = hidden_dim // 2, hidden_dim // 4
    total = hidden_dim + CONV2_OUT * 2

    def w(k, shape, scale=0.1):
        return jax.random.normal(k, shape, jnp.float32) * scale

    return dict(
        # conv weights stored (K, Cin, Cout); torch Conv1d weight (Cout, Cin, K)
        # maps via w_torch.transpose(2, 1, 0)
        conv1_w=w(ks[0], (3, AA_FEATURE_DIM, CONV1_OUT)),
        conv1_b=jnp.zeros((1, CONV1_OUT), jnp.float32),
        conv2_w=w(ks[1], (3, CONV1_OUT, CONV2_OUT)),
        conv2_b=jnp.zeros((1, CONV2_OUT), jnp.float32),
        fusion_w=w(ks[2], (total, H2)),
        fusion_b=jnp.zeros((1, H2), jnp.float32),
        ln1_g=jnp.ones((1, H2), jnp.float32),
        ln1_b=jnp.zeros((1, H2), jnp.float32),
        cls1_w=w(ks[3], (H2, H4)),
        cls1_b=jnp.zeros((1, H4), jnp.float32),
        ln2_g=jnp.ones((1, H4), jnp.float32),
        ln2_b=jnp.zeros((1, H4), jnp.float32),
        cls2_w=w(ks[4], (H4, 1)),
        cls2_b=jnp.zeros((1, 1), jnp.float32),
    )


def get_physchem_features(sequences, feature_matrix):
    """Host-side equivalent of get_physchem_features (embedding lookup + pad)."""
    max_len = max(len(s) for s in sequences)
    pad_idx = AA_TO_IDX['<PAD>']
    idx = [[AA_TO_IDX.get(aa, AA_TO_IDX['X']) for aa in s] +
           [pad_idx] * (max_len - len(s)) for s in sequences]
    idx = jnp.array(idx, jnp.int32)                      # (B, L)
    return jnp.take(feature_matrix, idx, axis=0)         # (B, L, 5)


if __name__ == "__main__":
    key = jax.random.PRNGKey(0)
    B = 2
    HIDDEN = 128          # stand-in for hidden_dim=1024 (small-shape demo)

    feature_matrix = jnp.array([AA_FEATURES[aa] for aa in AA_FEATURES], jnp.float32)

    mhc_sequences = ["ARNDCEQGHILKMFPS", "TWYVAGILKRNDCEQH"]   # len 16 each
    peptide_sequences = ["KLMFPSTW", "GHILARND"]               # len 8 each

    mhc_phys = get_physchem_features(mhc_sequences, feature_matrix)      # (2, 16, 5)
    pep_phys = get_physchem_features(peptide_sequences, feature_matrix)  # (2, 8, 5)

    kp, kb = jax.random.split(key)
    params = init_params(kp, HIDDEN)
    # Stand-in for ProteinBertModel.get_pooler_output(...) -> (B, hidden_dim)
    bert_features = jax.random.normal(kb, (B, HIDDEN), jnp.float32) * 0.1

    def _run(single_buffer):
        fn = functools.partial(mhc_peptide_forward,
                               single_buffer_weights=single_buffer)
        return jax.block_until_ready(
            jax.jit(fn)(bert_features, mhc_phys, pep_phys, params))

    try:
        out = _run(True)     # single-buffered resident weights (pl.Buffered(1))
    except Exception:
        out = _run(False)    # fallback if pipeline_mode isn't supported here

    assert out.shape == (B, 1) and bool(jnp.all((out >= 0.0) & (out <= 1.0)))
    print("KERNEL_OK")
</pallas_src>

<mosaic_0001>
module attributes {stable_mosaic.version = 11 : i64} {
  func.func @kernel(%arg0: i32, %arg1: memref<2x128xbf16, #tpu.memory_space<vmem>>, %arg2: memref<32x5xbf16, #tpu.memory_space<vmem>>, %arg3: memref<16x5xbf16, #tpu.memory_space<vmem>>, %arg4: memref<15x32xbf16, #tpu.memory_space<vmem>>, %arg5: memref<1x32xf32, #tpu.memory_space<vmem>>, %arg6: memref<96x64xbf16, #tpu.memory_space<vmem>>, %arg7: memref<1x64xf32, #tpu.memory_space<vmem>>, %arg8: memref<128x64xbf16, #tpu.memory_space<vmem>>, %arg9: memref<64x64xbf16, #tpu.memory_space<vmem>>, %arg10: memref<64x64xbf16, #tpu.memory_space<vmem>>, %arg11: memref<1x64xf32, #tpu.memory_space<vmem>>, %arg12: memref<1x64xf32, #tpu.memory_space<vmem>>, %arg13: memref<1x64xf32, #tpu.memory_space<vmem>>, %arg14: memref<64x32xbf16, #tpu.memory_space<vmem>>, %arg15: memref<1x32xf32, #tpu.memory_space<vmem>>, %arg16: memref<1x32xf32, #tpu.memory_space<vmem>>, %arg17: memref<1x32xf32, #tpu.memory_space<vmem>>, %arg18: memref<1x32xf32, #tpu.memory_space<vmem>>, %arg19: memref<1x1xf32, #tpu.memory_space<vmem>>, %arg20: memref<2x1xf32, #tpu.memory_space<vmem>>) attributes {dimension_semantics = [#tpu.dimension_semantics<parallel>], iteration_bounds = array<i64: 1>, scalar_prefetch = 0 : i64, scratch_operands = 0 : i64, tpu.core_type = #tpu.core_type<tc>, window_params = [{transform_indices = @transform_0, window_bounds = array<i64: 2, 128>}, {transform_indices = @transform_1, window_bounds = array<i64: 32, 5>}, {transform_indices = @transform_2, window_bounds = array<i64: 16, 5>}, {pipeline_mode = #tpu.pipeline_mode<synchronous>, transform_indices = @transform_3, window_bounds = array<i64: 15, 32>}, {pipeline_mode = #tpu.pipeline_mode<synchronous>, transform_indices = @transform_4, window_bounds = array<i64: 1, 32>}, {pipeline_mode = #tpu.pipeline_mode<synchronous>, transform_indices = @transform_5, window_bounds = array<i64: 96, 64>}, {pipeline_mode = #tpu.pipeline_mode<synchronous>, transform_indices = @transform_6, window_bounds = array<i64: 1, 64>}, {pipeline_mode = #tpu.pipeline_mode<synchronous>, transform_indices = @transform_7, window_bounds = array<i64: 128, 64>}, {pipeline_mode = #tpu.pipeline_mode<synchronous>, transform_indices = @transform_8, window_bounds = array<i64: 64, 64>}, {pipeline_mode = #tpu.pipeline_mode<synchronous>, transform_indices = @transform_9, window_bounds = array<i64: 64, 64>}, {pipeline_mode = #tpu.pipeline_mode<synchronous>, transform_indices = @transform_10, window_bounds = array<i64: 1, 64>}, {pipeline_mode = #tpu.pipeline_mode<synchronous>, transform_indices = @transform_11, window_bounds = array<i64: 1, 64>}, {pipeline_mode = #tpu.pipeline_mode<synchronous>, transform_indices = @transform_12, window_bounds = array<i64: 1, 64>}, {pipeline_mode = #tpu.pipeline_mode<synchronous>, transform_indices = @transform_13, window_bounds = array<i64: 64, 32>}, {pipeline_mode = #tpu.pipeline_mode<synchronous>, transform_indices = @transform_14, window_bounds = array<i64: 1, 32>}, {pipeline_mode = #tpu.pipeline_mode<synchronous>, transform_indices = @transform_15, window_bounds = array<i64: 1, 32>}, {pipeline_mode = #tpu.pipeline_mode<synchronous>, transform_indices = @transform_16, window_bounds = array<i64: 1, 32>}, {pipeline_mode = #tpu.pipeline_mode<synchronous>, transform_indices = @transform_17, window_bounds = array<i64: 1, 32>}, {pipeline_mode = #tpu.pipeline_mode<synchronous>, transform_indices = @transform_18, window_bounds = array<i64: 1, 1>}, {transform_indices = @transform_19, window_bounds = array<i64: 2, 1>}]} {
    %c0 = arith.constant 0 : index
    %c0_0 = arith.constant 0 : index
    %0 = vector.load %arg4[%c0, %c0_0] : memref<15x32xbf16, #tpu.memory_space<vmem>>, vector<15x32xbf16>
    %c0_1 = arith.constant 0 : index
    %c0_2 = arith.constant 0 : index
    %1 = vector.load %arg5[%c0_1, %c0_2] : memref<1x32xf32, #tpu.memory_space<vmem>>, vector<1x32xf32>
    %c0_3 = arith.constant 0 : index
    %c0_4 = arith.constant 0 : index
    %2 = vector.load %arg6[%c0_3, %c0_4] : memref<96x64xbf16, #tpu.memory_space<vmem>>, vector<96x64xbf16>
    %c0_5 = arith.constant 0 : index
    %c0_6 = arith.constant 0 : index
    %3 = vector.load %arg7[%c0_5, %c0_6] : memref<1x64xf32, #tpu.memory_space<vmem>>, vector<1x64xf32>
    %c0_7 = arith.constant 0 : index
    %c0_8 = arith.constant 0 : index
    %4 = vector.load %arg2[%c0_7, %c0_8] : memref<32x5xbf16, #tpu.memory_space<vmem>>, vector<32x5xbf16>
    %5 = arith.extf %4 : vector<32x5xbf16> to vector<32x5xf32>
    %6 = tpu.iota {dimensions = array<i32: 0>} : vector<32x1xi32>
    %c16_i32 = arith.constant 16 : i32
    %c0_i32 = arith.constant 0 : i32
    %7 = arith.cmpi eq, %c16_i32, %c0_i32 : i32
    %c1_i32 = arith.constant 1 : i32
    %8 = arith.select %7, %c1_i32, %c16_i32 : i32
    %9 = vector.broadcast %8 : i32 to vector<32x1xi32>
    %10 = arith.remsi %6, %9 : vector<32x1xi32>
    %c0_i32_9 = arith.constant 0 : i32
    %11 = vector.broadcast %c0_i32_9 : i32 to vector<32x1xi32>
    %12 = arith.cmpi ne, %10, %11 : vector<32x1xi32>
    %c0_i32_10 = arith.constant 0 : i32
    %13 = vector.broadcast %c0_i32_10 : i32 to vector<32x1xi32>
    %14 = arith.cmpi slt, %10, %13 : vector<32x1xi32>
    %c0_i32_11 = arith.constant 0 : i32
    %15 = arith.cmpi slt, %8, %c0_i32_11 : i32
    %16 = vector.broadcast %15 : i1 to vector<32x1xi1>
    %17 = vector.broadcast %16 : vector<32x1xi1> to vector<32x1xi1>
    %18 = arith.xori %14, %17 : vector<32x1xi1>
    %19 = arith.andi %18, %12 : vector<32x1xi1>
    %20 = vector.broadcast %8 : i32 to vector<32x1xi32>
    %21 = arith.addi %10, %20 : vector<32x1xi32>
    %22 = arith.select %19, %21, %10 : vector<32x1xi1>, vector<32x1xi32>
    %c0_i32_12 = arith.constant 0 : i32
    %23 = vector.broadcast %c0_i32_12 : i32 to vector<32x1xi32>
    %24 = arith.cmpi eq, %22, %23 : vector<32x1xi32>
    %c15_i32 = arith.constant 15 : i32
    %25 = vector.broadcast %c15_i32 : i32 to vector<32x1xi32>
    %26 = arith.cmpi eq, %22, %25 : vector<32x1xi32>
    %c1_i32_13 = arith.constant 1 : i32
    %27 = tpu.dynamic_rotate %5 by %c1_i32_13 dim 0 : vector<32x5xf32>, i32 -> vector<32x5xf32>
    %cst = arith.constant 0.000000e+00 : f32
    %28 = vector.shape_cast %24 : vector<32x1xi1> to vector<32x1xi1>
    %29 = vector.broadcast %28 : vector<32x1xi1> to vector<32x5xi1>
    %30 = vector.broadcast %cst : f32 to vector<32x5xf32>
    %31 = arith.select %29, %30, %27 : vector<32x5xi1>, vector<32x5xf32>
    %c31_i32 = arith.constant 31 : i32
    %32 = tpu.dynamic_rotate %5 by %c31_i32 dim 0 : vector<32x5xf32>, i32 -> vector<32x5xf32>
    %cst_14 = arith.constant 0.000000e+00 : f32
    %33 = vector.shape_cast %26 : vector<32x1xi1> to vector<32x1xi1>
    %34 = vector.broadcast %33 : vector<32x1xi1> to vector<32x5xi1>
    %35 = vector.broadcast %cst_14 : f32 to vector<32x5xf32>
    %36 = arith.select %34, %35, %32 : vector<32x5xi1>, vector<32x5xf32>
    %37 = tpu.concatenate %31, %5, %36 in 1 : vector<32x5xf32>, vector<32x5xf32>, vector<32x5xf32> -> vector<32x15xf32>
    %38 = arith.truncf %37 : vector<32x15xf32> to vector<32x15xbf16>
    %cst_15 = arith.constant dense<0.000000e+00> : vector<32x32xf32>
    %39 = tpu.matmul %38, %0, %cst_15 {dimension_numbers = #tpu.dot_dimension_numbers<[1], [0], [0], [1], [0, 0, 1, 1], [], []>} : vector<32x15xbf16>, vector<15x32xbf16>, vector<32x32xf32> -> vector<32x32xf32>
    %40 = vector.broadcast %1 : vector<1x32xf32> to vector<32x32xf32>
    %41 = arith.addf %39, %40 : vector<32x32xf32>
    %cst_16 = arith.constant 0.000000e+00 : f32
    %42 = vector.broadcast %cst_16 : f32 to vector<32x32xf32>
    %43 = arith.maximumf %41, %42 : vector<32x32xf32>
    %c1_i32_17 = arith.constant 1 : i32
    %44 = tpu.dynamic_rotate %43 by %c1_i32_17 dim 0 : vector<32x32xf32>, i32 -> vector<32x32xf32>
    %cst_18 = arith.constant 0.000000e+00 : f32
    %45 = vector.shape_cast %24 : vector<32x1xi1> to vector<32x1xi1>
    %46 = vector.broadcast %45 : vector<32x1xi1> to vector<32x32xi1>
    %47 = vector.broadcast %cst_18 : f32 to vector<32x32xf32>
    %48 = arith.select %46, %47, %44 : vector<32x32xi1>, vector<32x32xf32>
    %c31_i32_19 = arith.constant 31 : i32
    %49 = tpu.dynamic_rotate %43 by %c31_i32_19 dim 0 : vector<32x32xf32>, i32 -> vector<32x32xf32>
    %cst_20 = arith.constant 0.000000e+00 : f32
    %50 = vector.shape_cast %26 : vector<32x1xi1> to vector<32x1xi1>
    %51 = vector.broadcast %50 : vector<32x1xi1> to vector<32x32xi1>
    %52 = vector.broadcast %cst_20 : f32 to vector<32x32xf32>
    %53 = arith.select %51, %52, %49 : vector<32x32xi1>, vector<32x32xf32>
    %54 = tpu.concatenate %48, %43, %53 in 1 : vector<32x32xf32>, vector<32x32xf32>, vector<32x32xf32> -> vector<32x96xf32>
    %55 = arith.truncf %54 : vector<32x96xf32> to vector<32x96xbf16>
    %cst_21 = arith.constant dense<0.000000e+00> : vector<32x64xf32>
    %56 = tpu.matmul %55, %2, %cst_21 {dimension_numbers = #tpu.dot_dimension_numbers<[1], [0], [0], [1], [0, 0, 1, 1], [], []>} : vector<32x96xbf16>, vector<96x64xbf16>, vector<32x64xf32> -> vector<32x64xf32>
    %57 = vector.broadcast %3 : vector<1x64xf32> to vector<32x64xf32>
    %58 = arith.addf %56, %57 : vector<32x64xf32>
    %cst_22 = arith.constant 0.000000e+00 : f32
    %59 = vector.broadcast %cst_22 : f32 to vector<32x64xf32>
    %60 = arith.maximumf %58, %59 : vector<32x64xf32>
    %61 = vector.shape_cast %60 : vector<32x64xf32> to vector<2x16x64xf32>
    %cst_23 = arith.constant dense<0xFF800000> : vector<2x64xf32>
    %62 = vector.multi_reduction <maximumf>, %61, %cst_23 [1] : vector<2x16x64xf32> to vector<2x64xf32>
    %c0_24 = arith.constant 0 : index
    %c0_25 = arith.constant 0 : index
    %63 = vector.load %arg3[%c0_24, %c0_25] : memref<16x5xbf16, #tpu.memory_space<vmem>>, vector<16x5xbf16>
    %64 = arith.extf %63 : vector<16x5xbf16> to vector<16x5xf32>
    %65 = tpu.iota {dimensions = array<i32: 0>} : vector<16x1xi32>
    %c8_i32 = arith.constant 8 : i32
    %c0_i32_26 = arith.constant 0 : i32
    %66 = arith.cmpi eq, %c8_i32, %c0_i32_26 : i32
    %c1_i32_27 = arith.constant 1 : i32
    %67 = arith.select %66, %c1_i32_27, %c8_i32 : i32
    %68 = vector.broadcast %67 : i32 to vector<16x1xi32>
    %69 = arith.remsi %65, %68 : vector<16x1xi32>
    %c0_i32_28 = arith.constant 0 : i32
    %70 = vector.broadcast %c0_i32_28 : i32 to vector<16x1xi32>
    %71 = arith.cmpi ne, %69, %70 : vector<16x1xi32>
    %c0_i32_29 = arith.constant 0 : i32
    %72 = vector.broadcast %c0_i32_29 : i32 to vector<16x1xi32>
    %73 = arith.cmpi slt, %69, %72 : vector<16x1xi32>
    %c0_i32_30 = arith.constant 0 : i32
    %74 = arith.cmpi slt, %67, %c0_i32_30 : i32
    %75 = vector.broadcast %74 : i1 to vector<16x1xi1>
    %76 = vector.broadcast %75 : vector<16x1xi1> to vector<16x1xi1>
    %77 = arith.xori %73, %76 : vector<16x1xi1>
    %78 = arith.andi %77, %71 : vector<16x1xi1>
    %79 = vector.broadcast %67 : i32 to vector<16x1xi32>
    %80 = arith.addi %69, %79 : vector<16x1xi32>
    %81 = arith.select %78, %80, %69 : vector<16x1xi1>, vector<16x1xi32>
    %c0_i32_31 = arith.constant 0 : i32
    %82 = vector.broadcast %c0_i32_31 : i32 to vector<16x1xi32>
    %83 = arith.cmpi eq, %81, %82 : vector<16x1xi32>
    %c7_i32 = arith.constant 7 : i32
    %84 = vector.broadcast %c7_i32 : i32 to vector<16x1xi32>
    %85 = arith.cmpi eq, %81, %84 : vector<16x1xi32>
    %c1_i32_32 = arith.constant 1 : i32
    %86 = tpu.dynamic_rotate %64 by %c1_i32_32 dim 0 : vector<16x5xf32>, i32 -> vector<16x5xf32>
    %cst_33 = arith.constant 0.000000e+00 : f32
    %87 = vector.shape_cast %83 : vector<16x1xi1> to vector<16x1xi1>
    %88 = vector.broadcast %87 : vector<16x1xi1> to vector<16x5xi1>
    %89 = vector.broadcast %cst_33 : f32 to vector<16x5xf32>
    %90 = arith.select %88, %89, %86 : vector<16x5xi1>, vector<16x5xf32>
    %c15_i32_34 = arith.constant 15 : i32
    %91 = tpu.dynamic_rotate %64 by %c15_i32_34 dim 0 : vector<16x5xf32>, i32 -> vector<16x5xf32>
    %cst_35 = arith.constant 0.000000e+00 : f32
    %92 = vector.shape_cast %85 : vector<16x1xi1> to vector<16x1xi1>
    %93 = vector.broadcast %92 : vector<16x1xi1> to vector<16x5xi1>
    %94 = vector.broadcast %cst_35 : f32 to vector<16x5xf32>
    %95 = arith.select %93, %94, %91 : vector<16x5xi1>, vector<16x5xf32>
    %96 = tpu.concatenate %90, %64, %95 in 1 : vector<16x5xf32>, vector<16x5xf32>, vector<16x5xf32> -> vector<16x15xf32>
    %97 = arith.truncf %96 : vector<16x15xf32> to vector<16x15xbf16>
    %cst_36 = arith.constant dense<0.000000e+00> : vector<16x32xf32>
    %98 = tpu.matmul %97, %0, %cst_36 {dimension_numbers = #tpu.dot_dimension_numbers<[1], [0], [0], [1], [0, 0, 1, 1], [], []>} : vector<16x15xbf16>, vector<15x32xbf16>, vector<16x32xf32> -> vector<16x32xf32>
    %99 = vector.broadcast %1 : vector<1x32xf32> to vector<16x32xf32>
    %100 = arith.addf %98, %99 : vector<16x32xf32>
    %cst_37 = arith.constant 0.000000e+00 : f32
    %101 = vector.broadcast %cst_37 : f32 to vector<16x32xf32>
    %102 = arith.maximumf %100, %101 : vector<16x32xf32>
    %c1_i32_38 = arith.constant 1 : i32
    %103 = tpu.dynamic_rotate %102 by %c1_i32_38 dim 0 : vector<16x32xf32>, i32 -> vector<16x32xf32>
    %cst_39 = arith.constant 0.000000e+00 : f32
    %104 = vector.shape_cast %83 : vector<16x1xi1> to vector<16x1xi1>
    %105 = vector.broadcast %104 : vector<16x1xi1> to vector<16x32xi1>
    %106 = vector.broadcast %cst_39 : f32 to vector<16x32xf32>
    %107 = arith.select %105, %106, %103 : vector<16x32xi1>, vector<16x32xf32>
    %c15_i32_40 = arith.constant 15 : i32
    %108 = tpu.dynamic_rotate %102 by %c15_i32_40 dim 0 : vector<16x32xf32>, i32 -> vector<16x32xf32>
    %cst_41 = arith.constant 0.000000e+00 : f32
    %109 = vector.shape_cast %85 : vector<16x1xi1> to vector<16x1xi1>
    %110 = vector.broadcast %109 : vector<16x1xi1> to vector<16x32xi1>
    %111 = vector.broadcast %cst_41 : f32 to vector<16x32xf32>
    %112 = arith.select %110, %111, %108 : vector<16x32xi1>, vector<16x32xf32>
    %113 = tpu.concatenate %107, %102, %112 in 1 : vector<16x32xf32>, vector<16x32xf32>, vector<16x32xf32> -> vector<16x96xf32>
    %114 = arith.truncf %113 : vector<16x96xf32> to vector<16x96xbf16>
    %cst_42 = arith.constant dense<0.000000e+00> : vector<16x64xf32>
    %115 = tpu.matmul %114, %2, %cst_42 {dimension_numbers = #tpu.dot_dimension_numbers<[1], [0], [0], [1], [0, 0, 1, 1], [], []>} : vector<16x96xbf16>, vector<96x64xbf16>, vector<16x64xf32> -> vector<16x64xf32>
    %116 = vector.broadcast %3 : vector<1x64xf32> to vector<16x64xf32>
    %117 = arith.addf %115, %116 : vector<16x64xf32>
    %cst_43 = arith.constant 0.000000e+00 : f32
    %118 = vector.broadcast %cst_43 : f32 to vector<16x64xf32>
    %119 = arith.maximumf %117, %118 : vector<16x64xf32>
    %120 = vector.shape_cast %119 : vector<16x64xf32> to vector<2x8x64xf32>
    %cst_44 = arith.constant dense<0xFF800000> : vector<2x64xf32>
    %121 = vector.multi_reduction <maximumf>, %120, %cst_44 [1] : vector<2x8x64xf32> to vector<2x64xf32>
    %c0_45 = arith.constant 0 : index
    %c0_46 = arith.constant 0 : index
    %122 = vector.load %arg1[%c0_45, %c0_46] : memref<2x128xbf16, #tpu.memory_space<vmem>>, vector<2x128xbf16>
    %c0_47 = arith.constant 0 : index
    %c0_48 = arith.constant 0 : index
    %123 = vector.load %arg8[%c0_47, %c0_48] : memref<128x64xbf16, #tpu.memory_space<vmem>>, vector<128x64xbf16>
    %cst_49 = arith.constant dense<0.000000e+00> : vector<2x64xf32>
    %124 = tpu.matmul %122, %123, %cst_49 {dimension_numbers = #tpu.dot_dimension_numbers<[1], [0], [0], [1], [0, 0, 1, 1], [], []>} : vector<2x128xbf16>, vector<128x64xbf16>, vector<2x64xf32> -> vector<2x64xf32>
    %125 = arith.truncf %62 : vector<2x64xf32> to vector<2x64xbf16>
    %c0_50 = arith.constant 0 : index
    %c0_51 = arith.constant 0 : index
    %126 = vector.load %arg9[%c0_50, %c0_51] : memref<64x64xbf16, #tpu.memory_space<vmem>>, vector<64x64xbf16>
    %cst_52 = arith.constant dense<0.000000e+00> : vector<2x64xf32>
    %127 = tpu.matmul %125, %126, %cst_52 {dimension_numbers = #tpu.dot_dimension_numbers<[1], [0], [0], [1], [0, 0, 1, 1], [], []>} : vector<2x64xbf16>, vector<64x64xbf16>, vector<2x64xf32> -> vector<2x64xf32>
    %128 = arith.addf %124, %127 : vector<2x64xf32>
    %129 = arith.truncf %121 : vector<2x64xf32> to vector<2x64xbf16>
    %c0_53 = arith.constant 0 : index
    %c0_54 = arith.constant 0 : index
    %130 = vector.load %arg10[%c0_53, %c0_54] : memref<64x64xbf16, #tpu.memory_space<vmem>>, vector<64x64xbf16>
    %cst_55 = arith.constant dense<0.000000e+00> : vector<2x64xf32>
    %131 = tpu.matmul %129, %130, %cst_55 {dimension_numbers = #tpu.dot_dimension_numbers<[1], [0], [0], [1], [0, 0, 1, 1], [], []>} : vector<2x64xbf16>, vector<64x64xbf16>, vector<2x64xf32> -> vector<2x64xf32>
    %132 = arith.addf %128, %131 : vector<2x64xf32>
    %c0_56 = arith.constant 0 : index
    %c0_57 = arith.constant 0 : index
    %133 = vector.load %arg11[%c0_56, %c0_57] : memref<1x64xf32, #tpu.memory_space<vmem>>, vector<1x64xf32>
    %134 = vector.broadcast %133 : vector<1x64xf32> to vector<2x64xf32>
    %135 = arith.addf %132, %134 : vector<2x64xf32>
    %c0_58 = arith.constant 0 : index
    %c0_59 = arith.constant 0 : index
    %136 = vector.load %arg12[%c0_58, %c0_59] : memref<1x64xf32, #tpu.memory_space<vmem>>, vector<1x64xf32>
    %c0_60 = arith.constant 0 : index
    %c0_61 = arith.constant 0 : index
    %137 = vector.load %arg13[%c0_60, %c0_61] : memref<1x64xf32, #tpu.memory_space<vmem>>, vector<1x64xf32>
    %cst_62 = arith.constant dense<0.000000e+00> : vector<2xf32>
    %138 = vector.multi_reduction <add>, %135, %cst_62 [1] : vector<2x64xf32> to vector<2xf32>
    %139 = vector.shape_cast %138 : vector<2xf32> to vector<2x1xf32>
    %cst_63 = arith.constant 6.400000e+01 : f32
    %140 = vector.broadcast %cst_63 : f32 to vector<2x1xf32>
    %141 = arith.divf %139, %140 : vector<2x1xf32>
    %142 = vector.broadcast %141 : vector<2x1xf32> to vector<2x64xf32>
    %143 = arith.subf %135, %142 : vector<2x64xf32>
    %144 = vector.broadcast %141 : vector<2x1xf32> to vector<2x64xf32>
    %145 = arith.subf %135, %144 : vector<2x64xf32>
    %146 = arith.mulf %143, %145 : vector<2x64xf32>
    %cst_64 = arith.constant dense<0.000000e+00> : vector<2xf32>
    %147 = vector.multi_reduction <add>, %146, %cst_64 [1] : vector<2x64xf32> to vector<2xf32>
    %148 = vector.shape_cast %147 : vector<2xf32> to vector<2x1xf32>
    %cst_65 = arith.constant 6.400000e+01 : f32
    %149 = vector.broadcast %cst_65 : f32 to vector<2x1xf32>
    %150 = arith.divf %148, %149 : vector<2x1xf32>
    %151 = vector.broadcast %141 : vector<2x1xf32> to vector<2x64xf32>
    %152 = arith.subf %135, %151 : vector<2x64xf32>
    %cst_66 = arith.constant 9.99999974E-6 : f32
    %153 = vector.broadcast %cst_66 : f32 to vector<2x1xf32>
    %154 = arith.addf %150, %153 : vector<2x1xf32>
    %155 = math.rsqrt %154 : vector<2x1xf32>
    %156 = vector.broadcast %155 : vector<2x1xf32> to vector<2x64xf32>
    %157 = arith.mulf %152, %156 : vector<2x64xf32>
    %158 = vector.broadcast %136 : vector<1x64xf32> to vector<2x64xf32>
    %159 = arith.mulf %157, %158 : vector<2x64xf32>
    %160 = vector.broadcast %137 : vector<1x64xf32> to vector<2x64xf32>
    %161 = arith.addf %159, %160 : vector<2x64xf32>
    %cst_67 = arith.constant 0.000000e+00 : f32
    %162 = vector.broadcast %cst_67 : f32 to vector<2x64xf32>
    %163 = arith.maximumf %161, %162 : vector<2x64xf32>
    %164 = arith.truncf %163 : vector<2x64xf32> to vector<2x64xbf16>
    %c0_68 = arith.constant 0 : index
    %c0_69 = arith.constant 0 : index
    %165 = vector.load %arg14[%c0_68, %c0_69] : memref<64x32xbf16, #tpu.memory_space<vmem>>, vector<64x32xbf16>
    %cst_70 = arith.constant dense<0.000000e+00> : vector<2x32xf32>
    %166 = tpu.matmul %164, %165, %cst_70 {dimension_numbers = #tpu.dot_dimension_numbers<[1], [0], [0], [1], [0, 0, 1, 1], [], []>} : vector<2x64xbf16>, vector<64x32xbf16>, vector<2x32xf32> -> vector<2x32xf32>
    %c0_71 = arith.constant 0 : index
    %c0_72 = arith.constant 0 : index
    %167 = vector.load %arg15[%c0_71, %c0_72] : memref<1x32xf32, #tpu.memory_space<vmem>>, vector<1x32xf32>
    %168 = vector.broadcast %167 : vector<1x32xf32> to vector<2x32xf32>
    %169 = arith.addf %166, %168 : vector<2x32xf32>
    %c0_73 = arith.constant 0 : index
    %c0_74 = arith.constant 0 : index
    %170 = vector.load %arg16[%c0_73, %c0_74] : memref<1x32xf32, #tpu.memory_space<vmem>>, vector<1x32xf32>
    %c0_75 = arith.constant 0 : index
    %c0_76 = arith.constant 0 : index
    %171 = vector.load %arg17[%c0_75, %c0_76] : memref<1x32xf32, #tpu.memory_space<vmem>>, vector<1x32xf32>
    %cst_77 = arith.constant dense<0.000000e+00> : vector<2xf32>
    %172 = vector.multi_reduction <add>, %169, %cst_77 [1] : vector<2x32xf32> to vector<2xf32>
    %173 = vector.shape_cast %172 : vector<2xf32> to vector<2x1xf32>
    %cst_78 = arith.constant 3.200000e+01 : f32
    %174 = vector.broadcast %cst_78 : f32 to vector<2x1xf32>
    %175 = arith.divf %173, %174 : vector<2x1xf32>
    %176 = vector.broadcast %175 : vector<2x1xf32> to vector<2x32xf32>
    %177 = arith.subf %169, %176 : vector<2x32xf32>
    %178 = vector.broadcast %175 : vector<2x1xf32> to vector<2x32xf32>
    %179 = arith.subf %169, %178 : vector<2x32xf32>
    %180 = arith.mulf %177, %179 : vector<2x32xf32>
    %cst_79 = arith.constant dense<0.000000e+00> : vector<2xf32>
    %181 = vector.multi_reduction <add>, %180, %cst_79 [1] : vector<2x32xf32> to vector<2xf32>
    %182 = vector.shape_cast %181 : vector<2xf32> to vector<2x1xf32>
    %cst_80 = arith.constant 3.200000e+01 : f32
    %183 = vector.broadcast %cst_80 : f32 to vector<2x1xf32>
    %184 = arith.divf %182, %183 : vector<2x1xf32>
    %185 = vector.broadcast %175 : vector<2x1xf32> to vector<2x32xf32>
    %186 = arith.subf %169, %185 : vector<2x32xf32>
    %cst_81 = arith.constant 9.99999974E-6 : f32
    %187 = vector.broadcast %cst_81 : f32 to vector<2x1xf32>
    %188 = arith.addf %184, %187 : vector<2x1xf32>
    %189 = math.rsqrt %188 : vector<2x1xf32>
    %190 = vector.broadcast %189 : vector<2x1xf32> to vector<2x32xf32>
    %191 = arith.mulf %186, %190 : vector<2x32xf32>
    %192 = vector.broadcast %170 : vector<1x32xf32> to vector<2x32xf32>
    %193 = arith.mulf %191, %192 : vector<2x32xf32>
    %194 = vector.broadcast %171 : vector<1x32xf32> to vector<2x32xf32>
    %195 = arith.addf %193, %194 : vector<2x32xf32>
    %cst_82 = arith.constant 0.000000e+00 : f32
    %196 = vector.broadcast %cst_82 : f32 to vector<2x32xf32>
    %197 = arith.maximumf %195, %196 : vector<2x32xf32>
    %c0_83 = arith.constant 0 : index
    %c0_84 = arith.constant 0 : index
    %198 = vector.load %arg18[%c0_83, %c0_84] : memref<1x32xf32, #tpu.memory_space<vmem>>, vector<1x32xf32>
    %199 = vector.broadcast %198 : vector<1x32xf32> to vector<2x32xf32>
    %200 = arith.mulf %197, %199 : vector<2x32xf32>
    %cst_85 = arith.constant dense<0.000000e+00> : vector<2xf32>
    %201 = vector.multi_reduction <add>, %200, %cst_85 [1] : vector<2x32xf32> to vector<2xf32>
    %202 = vector.shape_cast %201 : vector<2xf32> to vector<2x1xf32>
    %c0_86 = arith.constant 0 : index
    %c0_87 = arith.constant 0 : index
    %203 = vector.load %arg19[%c0_86, %c0_87] : memref<1x1xf32, #tpu.memory_space<vmem>>, vector<1x1xf32>
    %204 = vector.broadcast %203 : vector<1x1xf32> to vector<2x1xf32>
    %205 = arith.addf %202, %204 : vector<2x1xf32>
    %206 = arith.negf %205 : vector<2x1xf32>
    %207 = math.exp %206 : vector<2x1xf32>
    %cst_88 = arith.constant 1.000000e+00 : f32
    %208 = vector.broadcast %cst_88 : f32 to vector<2x1xf32>
    %209 = arith.addf %208, %207 : vector<2x1xf32>
    %210 = arith.divf %208, %209 : vector<2x1xf32>
    %c0_89 = arith.constant 0 : index
    %c0_90 = arith.constant 0 : index
    %211 = vector.load %arg20[%c0_89, %c0_90] : memref<2x1xf32, #tpu.memory_space<vmem>>, vector<2x1xf32>
    tpu.vector_store %arg20[%c0_89, %c0_90], %210 {strides = array<i32>} : memref<2x1xf32, #tpu.memory_space<vmem>>, vector<2x1xf32>,
    return
  }
  func.func @transform_0(%arg0: i32) -> (i32, i32) {
    %c0_i32 = arith.constant 0 : i32
    %c0_i32_0 = arith.constant 0 : i32
    return %arg0, %c0_i32 : i32, i32
  }
  func.func @transform_1(%arg0: i32) -> (i32, i32) {
    %c0_i32 = arith.constant 0 : i32
    %c0_i32_0 = arith.constant 0 : i32
    return %arg0, %c0_i32 : i32, i32
  }
  func.func @transform_2(%arg0: i32) -> (i32, i32) {
    %c0_i32 = arith.constant 0 : i32
    %c0_i32_0 = arith.constant 0 : i32
    return %arg0, %c0_i32 : i32, i32
  }
  func.func @transform_3(%arg0: i32) -> (i32, i32) {
    %c0_i32 = arith.constant 0 : i32
    %c0_i32_0 = arith.constant 0 : i32
    %c0_i32_1 = arith.constant 0 : i32
    return %c0_i32, %c0_i32_0 : i32, i32
  }
  func.func @transform_4(%arg0: i32) -> (i32, i32) {
    %c0_i32 = arith.constant 0 : i32
    %c0_i32_0 = arith.constant 0 : i32
    %c0_i32_1 = arith.constant 0 : i32
    return %c0_i32, %c0_i32_0 : i32, i32
  }
  func.func @transform_5(%arg0: i32) -> (i32, i32) {
    %c0_i32 = arith.constant 0 : i32
    %c0_i32_0 = arith.constant 0 : i32
    %c0_i32_1 = arith.constant 0 : i32
    return %c0_i32, %c0_i32_0 : i32, i32
  }
  func.func @transform_6(%arg0: i32) -> (i32, i32) {
    %c0_i32 = arith.constant 0 : i32
    %c0_i32_0 = arith.constant 0 : i32
    %c0_i32_1 = arith.constant 0 : i32
    return %c0_i32, %c0_i32_0 : i32, i32
  }
  func.func @transform_7(%arg0: i32) -> (i32, i32) {
    %c0_i32 = arith.constant 0 : i32
    %c0_i32_0 = arith.constant 0 : i32
    %c0_i32_1 = arith.constant 0 : i32
    return %c0_i32, %c0_i32_0 : i32, i32
  }
  func.func @transform_8(%arg0: i32) -> (i32, i32) {
    %c0_i32 = arith.constant 0 : i32
    %c0_i32_0 = arith.constant 0 : i32
    %c0_i32_1 = arith.constant 0 : i32
    return %c0_i32, %c0_i32_0 : i32, i32
  }
  func.func @transform_9(%arg0: i32) -> (i32, i32) {
    %c0_i32 = arith.constant 0 : i32
    %c0_i32_0 = arith.constant 0 : i32
    %c0_i32_1 = arith.constant 0 : i32
    return %c0_i32, %c0_i32_0 : i32, i32
  }
  func.func @transform_10(%arg0: i32) -> (i32, i32) {
    %c0_i32 = arith.constant 0 : i32
    %c0_i32_0 = arith.constant 0 : i32
    %c0_i32_1 = arith.constant 0 : i32
    return %c0_i32, %c0_i32_0 : i32, i32
  }
  func.func @transform_11(%arg0: i32) -> (i32, i32) {
    %c0_i32 = arith.constant 0 : i32
    %c0_i32_0 = arith.constant 0 : i32
    %c0_i32_1 = arith.constant 0 : i32
    return %c0_i32, %c0_i32_0 : i32, i32
  }
  func.func @transform_12(%arg0: i32) -> (i32, i32) {
    %c0_i32 = arith.constant 0 : i32
    %c0_i32_0 = arith.constant 0 : i32
    %c0_i32_1 = arith.constant 0 : i32
    return %c0_i32, %c0_i32_0 : i32, i32
  }
  func.func @transform_13(%arg0: i32) -> (i32, i32) {
    %c0_i32 = arith.constant 0 : i32
    %c0_i32_0 = arith.constant 0 : i32
    %c0_i32_1 = arith.constant 0 : i32
    return %c0_i32, %c0_i32_0 : i32, i32
  }
  func.func @transform_14(%arg0: i32) -> (i32, i32) {
    %c0_i32 = arith.constant 0 : i32
    %c0_i32_0 = arith.constant 0 : i32
    %c0_i32_1 = arith.constant 0 : i32
    return %c0_i32, %c0_i32_0 : i32, i32
  }
  func.func @transform_15(%arg0: i32) -> (i32, i32) {
    %c0_i32 = arith.constant 0 : i32
    %c0_i32_0 = arith.constant 0 : i32
    %c0_i32_1 = arith.constant 0 : i32
    return %c0_i32, %c0_i32_0 : i32, i32
  }
  func.func @transform_16(%arg0: i32) -> (i32, i32) {
    %c0_i32 = arith.constant 0 : i32
    %c0_i32_0 = arith.constant 0 : i32
    %c0_i32_1 = arith.constant 0 : i32
    return %c0_i32, %c0_i32_0 : i32, i32
  }
  func.func @transform_17(%arg0: i32) -> (i32, i32) {
    %c0_i32 = arith.constant 0 : i32
    %c0_i32_0 = arith.constant 0 : i32
    %c0_i32_1 = arith.constant 0 : i32
    return %c0_i32, %c0_i32_0 : i32, i32
  }
  func.func @transform_18(%arg0: i32) -> (i32, i32) {
    %c0_i32 = arith.constant 0 : i32
    %c0_i32_0 = arith.constant 0 : i32
    %c0_i32_1 = arith.constant 0 : i32
    return %c0_i32, %c0_i32_0 : i32, i32
  }
  func.func @transform_19(%arg0: i32) -> (i32, i32) {
    %c0_i32 = arith.constant 0 : i32
    %c0_i32_0 = arith.constant 0 : i32
    return %arg0, %c0_i32 : i32, i32
  }
}

module attributes {stable_mosaic.version = 11 : i64} {
  func.func @kernel(%arg0: i32, %arg1: memref<2x128xbf16, #tpu.memory_space<vmem>>, %arg2: memref<32x5xbf16, #tpu.memory_space<vmem>>, %arg3: memref<16x5xbf16, #tpu.memory_space<vmem>>, %arg4: memref<15x32xbf16, #tpu.memory_space<vmem>>, %arg5: memref<1x32xf32, #tpu.memory_space<vmem>>, %arg6: memref<96x64xbf16, #tpu.memory_space<vmem>>, %arg7: memref<1x64xf32, #tpu.memory_space<vmem>>, %arg8: memref<128x64xbf16, #tpu.memory_space<vmem>>, %arg9: memref<64x64xbf16, #tpu.memory_space<vmem>>, %arg10: memref<64x64xbf16, #tpu.memory_space<vmem>>, %arg11: memref<1x64xf32, #tpu.memory_space<vmem>>, %arg12: memref<1x64xf32, #tpu.memory_space<vmem>>, %arg13: memref<1x64xf32, #tpu.memory_space<vmem>>, %arg14: memref<64x32xbf16, #tpu.memory_space<vmem>>, %arg15: memref<1x32xf32, #tpu.memory_space<vmem>>, %arg16: memref<1x32xf32, #tpu.memory_space<vmem>>, %arg17: memref<1x32xf32, #tpu.memory_space<vmem>>, %arg18: memref<1x32xf32, #tpu.memory_space<vmem>>, %arg19: memref<1x1xf32, #tpu.memory_space<vmem>>, %arg20: memref<2x1xf32, #tpu.memory_space<vmem>>) attributes {dimension_semantics = [#tpu.dimension_semantics<parallel>], iteration_bounds = array<i64: 1>, scalar_prefetch = 0 : i64, scratch_operands = 0 : i64, tpu.core_type = #tpu.core_type<tc>, window_params = [{transform_indices = @transform_0, window_bounds = array<i64: 2, 128>}, {transform_indices = @transform_1, window_bounds = array<i64: 32, 5>}, {transform_indices = @transform_2, window_bounds = array<i64: 16, 5>}, {pipeline_mode = #tpu.pipeline_mode<synchronous>, transform_indices = @transform_3, window_bounds = array<i64: 15, 32>}, {pipeline_mode = #tpu.pipeline_mode<synchronous>, transform_indices = @transform_4, window_bounds = array<i64: 1, 32>}, {pipeline_mode = #tpu.pipeline_mode<synchronous>, transform_indices = @transform_5, window_bounds = array<i64: 96, 64>}, {pipeline_mode = #tpu.pipeline_mode<synchronous>, transform_indices = @transform_6, window_bounds = array<i64: 1, 64>}, {pipeline_mode = #tpu.pipeline_mode<synchronous>, transform_indices = @transform_7, window_bounds = array<i64: 128, 64>}, {pipeline_mode = #tpu.pipeline_mode<synchronous>, transform_indices = @transform_8, window_bounds = array<i64: 64, 64>}, {pipeline_mode = #tpu.pipeline_mode<synchronous>, transform_indices = @transform_9, window_bounds = array<i64: 64, 64>}, {pipeline_mode = #tpu.pipeline_mode<synchronous>, transform_indices = @transform_10, window_bounds = array<i64: 1, 64>}, {pipeline_mode = #tpu.pipeline_mode<synchronous>, transform_indices = @transform_11, window_bounds = array<i64: 1, 64>}, {pipeline_mode = #tpu.pipeline_mode<synchronous>, transform_indices = @transform_12, window_bounds = array<i64: 1, 64>}, {pipeline_mode = #tpu.pipeline_mode<synchronous>, transform_indices = @transform_13, window_bounds = array<i64: 64, 32>}, {pipeline_mode = #tpu.pipeline_mode<synchronous>, transform_indices = @transform_14, window_bounds = array<i64: 1, 32>}, {pipeline_mode = #tpu.pipeline_mode<synchronous>, transform_indices = @transform_15, window_bounds = array<i64: 1, 32>}, {pipeline_mode = #tpu.pipeline_mode<synchronous>, transform_indices = @transform_16, window_bounds = array<i64: 1, 32>}, {pipeline_mode = #tpu.pipeline_mode<synchronous>, transform_indices = @transform_17, window_bounds = array<i64: 1, 32>}, {pipeline_mode = #tpu.pipeline_mode<synchronous>, transform_indices = @transform_18, window_bounds = array<i64: 1, 1>}, {transform_indices = @transform_19, window_bounds = array<i64: 2, 1>}]} {
    %c0 = arith.constant 0 : index
    %c0_0 = arith.constant 0 : index
    %0 = vector.load %arg4[%c0, %c0_0] : memref<15x32xbf16, #tpu.memory_space<vmem>>, vector<15x32xbf16>
    %c0_1 = arith.constant 0 : index
    %c0_2 = arith.constant 0 : index
    %1 = vector.load %arg5[%c0_1, %c0_2] : memref<1x32xf32, #tpu.memory_space<vmem>>, vector<1x32xf32>
    %c0_3 = arith.constant 0 : index
    %c0_4 = arith.constant 0 : index
    %2 = vector.load %arg6[%c0_3, %c0_4] : memref<96x64xbf16, #tpu.memory_space<vmem>>, vector<96x64xbf16>
    %c0_5 = arith.constant 0 : index
    %c0_6 = arith.constant 0 : index
    %3 = vector.load %arg7[%c0_5, %c0_6] : memref<1x64xf32, #tpu.memory_space<vmem>>, vector<1x64xf32>
    %c0_7 = arith.constant 0 : index
    %c0_8 = arith.constant 0 : index
    %4 = vector.load %arg2[%c0_7, %c0_8] : memref<32x5xbf16, #tpu.memory_space<vmem>>, vector<32x5xbf16>
    %5 = arith.extf %4 : vector<32x5xbf16> to vector<32x5xf32>
    %6 = tpu.iota {dimensions = array<i32: 0>} : vector<32x1xi32>
    %c16_i32 = arith.constant 16 : i32
    %c0_i32 = arith.constant 0 : i32
    %7 = arith.cmpi eq, %c16_i32, %c0_i32 : i32
    %c1_i32 = arith.constant 1 : i32
    %8 = arith.select %7, %c1_i32, %c16_i32 : i32
    %9 = vector.broadcast %8 : i32 to vector<32x1xi32>
    %10 = arith.remsi %6, %9 : vector<32x1xi32>
    %c0_i32_9 = arith.constant 0 : i32
    %11 = vector.broadcast %c0_i32_9 : i32 to vector<32x1xi32>
    %12 = arith.cmpi ne, %10, %11 : vector<32x1xi32>
    %c0_i32_10 = arith.constant 0 : i32
    %13 = vector.broadcast %c0_i32_10 : i32 to vector<32x1xi32>
    %14 = arith.cmpi slt, %10, %13 : vector<32x1xi32>
    %c0_i32_11 = arith.constant 0 : i32
    %15 = arith.cmpi slt, %8, %c0_i32_11 : i32
    %16 = vector.broadcast %15 : i1 to vector<32x1xi1>
    %17 = vector.broadcast %16 : vector<32x1xi1> to vector<32x1xi1>
    %18 = arith.xori %14, %17 : vector<32x1xi1>
    %19 = arith.andi %18, %12 : vector<32x1xi1>
    %20 = vector.broadcast %8 : i32 to vector<32x1xi32>
    %21 = arith.addi %10, %20 : vector<32x1xi32>
    %22 = arith.select %19, %21, %10 : vector<32x1xi1>, vector<32x1xi32>
    %c0_i32_12 = arith.constant 0 : i32
    %23 = vector.broadcast %c0_i32_12 : i32 to vector<32x1xi32>
    %24 = arith.cmpi eq, %22, %23 : vector<32x1xi32>
    %c15_i32 = arith.constant 15 : i32
    %25 = vector.broadcast %c15_i32 : i32 to vector<32x1xi32>
    %26 = arith.cmpi eq, %22, %25 : vector<32x1xi32>
    %c1_i32_13 = arith.constant 1 : i32
    %27 = tpu.dynamic_rotate %5 by %c1_i32_13 dim 0 : vector<32x5xf32>, i32 -> vector<32x5xf32>
    %cst = arith.constant 0.000000e+00 : f32
    %28 = vector.shape_cast %24 : vector<32x1xi1> to vector<32x1xi1>
    %29 = vector.broadcast %28 : vector<32x1xi1> to vector<32x5xi1>
    %30 = vector.broadcast %cst : f32 to vector<32x5xf32>
    %31 = arith.select %29, %30, %27 : vector<32x5xi1>, vector<32x5xf32>
    %c31_i32 = arith.constant 31 : i32
    %32 = tpu.dynamic_rotate %5 by %c31_i32 dim 0 : vector<32x5xf32>, i32 -> vector<32x5xf32>
    %cst_14 = arith.constant 0.000000e+00 : f32
    %33 = vector.shape_cast %26 : vector<32x1xi1> to vector<32x1xi1>
    %34 = vector.broadcast %33 : vector<32x1xi1> to vector<32x5xi1>
    %35 = vector.broadcast %cst_14 : f32 to vector<32x5xf32>
    %36 = arith.select %34, %35, %32 : vector<32x5xi1>, vector<32x5xf32>
    %37 = tpu.concatenate %31, %5, %36 in 1 : vector<32x5xf32>, vector<32x5xf32>, vector<32x5xf32> -> vector<32x15xf32>
    %38 = arith.truncf %37 : vector<32x15xf32> to vector<32x15xbf16>
    %cst_15 = arith.constant dense<0.000000e+00> : vector<32x32xf32>
    %39 = tpu.matmul %38, %0, %cst_15 {dimension_numbers = #tpu.dot_dimension_numbers<[1], [0], [0], [1], [0, 0, 1, 1], [], []>} : vector<32x15xbf16>, vector<15x32xbf16>, vector<32x32xf32> -> vector<32x32xf32>
    %40 = vector.broadcast %1 : vector<1x32xf32> to vector<32x32xf32>
    %41 = arith.addf %39, %40 : vector<32x32xf32>
    %cst_16 = arith.constant 0.000000e+00 : f32
    %42 = vector.broadcast %cst_16 : f32 to vector<32x32xf32>
    %43 = arith.maximumf %41, %42 : vector<32x32xf32>
    %c1_i32_17 = arith.constant 1 : i32
    %44 = tpu.dynamic_rotate %43 by %c1_i32_17 dim 0 : vector<32x32xf32>, i32 -> vector<32x32xf32>
    %cst_18 = arith.constant 0.000000e+00 : f32
    %45 = vector.shape_cast %24 : vector<32x1xi1> to vector<32x1xi1>
    %46 = vector.broadcast %45 : vector<32x1xi1> to vector<32x32xi1>
    %47 = vector.broadcast %cst_18 : f32 to vector<32x32xf32>
    %48 = arith.select %46, %47, %44 : vector<32x32xi1>, vector<32x32xf32>
    %c31_i32_19 = arith.constant 31 : i32
    %49 = tpu.dynamic_rotate %43 by %c31_i32_19 dim 0 : vector<32x32xf32>, i32 -> vector<32x32xf32>
    %cst_20 = arith.constant 0.000000e+00 : f32
    %50 = vector.shape_cast %26 : vector<32x1xi1> to vector<32x1xi1>
    %51 = vector.broadcast %50 : vector<32x1xi1> to vector<32x32xi1>
    %52 = vector.broadcast %cst_20 : f32 to vector<32x32xf32>
    %53 = arith.select %51, %52, %49 : vector<32x32xi1>, vector<32x32xf32>
    %54 = tpu.concatenate %48, %43, %53 in 1 : vector<32x32xf32>, vector<32x32xf32>, vector<32x32xf32> -> vector<32x96xf32>
    %55 = arith.truncf %54 : vector<32x96xf32> to vector<32x96xbf16>
    %cst_21 = arith.constant dense<0.000000e+00> : vector<32x64xf32>
    %56 = tpu.matmul %55, %2, %cst_21 {dimension_numbers = #tpu.dot_dimension_numbers<[1], [0], [0], [1], [0, 0, 1, 1], [], []>} : vector<32x96xbf16>, vector<96x64xbf16>, vector<32x64xf32> -> vector<32x64xf32>
    %57 = vector.broadcast %3 : vector<1x64xf32> to vector<32x64xf32>
    %58 = arith.addf %56, %57 : vector<32x64xf32>
    %cst_22 = arith.constant 0.000000e+00 : f32
    %59 = vector.broadcast %cst_22 : f32 to vector<32x64xf32>
    %60 = arith.maximumf %58, %59 : vector<32x64xf32>
    %61 = vector.shape_cast %60 : vector<32x64xf32> to vector<2x16x64xf32>
    %cst_23 = arith.constant dense<0xFF800000> : vector<2x64xf32>
    %62 = vector.multi_reduction <maximumf>, %61, %cst_23 [1] : vector<2x16x64xf32> to vector<2x64xf32>
    %c0_24 = arith.constant 0 : index
    %c0_25 = arith.constant 0 : index
    %63 = vector.load %arg3[%c0_24, %c0_25] : memref<16x5xbf16, #tpu.memory_space<vmem>>, vector<16x5xbf16>
    %64 = arith.extf %63 : vector<16x5xbf16> to vector<16x5xf32>
    %65 = tpu.iota {dimensions = array<i32: 0>} : vector<16x1xi32>
    %c8_i32 = arith.constant 8 : i32
    %c0_i32_26 = arith.constant 0 : i32
    %66 = arith.cmpi eq, %c8_i32, %c0_i32_26 : i32
    %c1_i32_27 = arith.constant 1 : i32
    %67 = arith.select %66, %c1_i32_27, %c8_i32 : i32
    %68 = vector.broadcast %67 : i32 to vector<16x1xi32>
    %69 = arith.remsi %65, %68 : vector<16x1xi32>
    %c0_i32_28 = arith.constant 0 : i32
    %70 = vector.broadcast %c0_i32_28 : i32 to vector<16x1xi32>
    %71 = arith.cmpi ne, %69, %70 : vector<16x1xi32>
    %c0_i32_29 = arith.constant 0 : i32
    %72 = vector.broadcast %c0_i32_29 : i32 to vector<16x1xi32>
    %73 = arith.cmpi slt, %69, %72 : vector<16x1xi32>
    %c0_i32_30 = arith.constant 0 : i32
    %74 = arith.cmpi slt, %67, %c0_i32_30 : i32
    %75 = vector.broadcast %74 : i1 to vector<16x1xi1>
    %76 = vector.broadcast %75 : vector<16x1xi1> to vector<16x1xi1>
    %77 = arith.xori %73, %76 : vector<16x1xi1>
    %78 = arith.andi %77, %71 : vector<16x1xi1>
    %79 = vector.broadcast %67 : i32 to vector<16x1xi32>
    %80 = arith.addi %69, %79 : vector<16x1xi32>
    %81 = arith.select %78, %80, %69 : vector<16x1xi1>, vector<16x1xi32>
    %c0_i32_31 = arith.constant 0 : i32
    %82 = vector.broadcast %c0_i32_31 : i32 to vector<16x1xi32>
    %83 = arith.cmpi eq, %81, %82 : vector<16x1xi32>
    %c7_i32 = arith.constant 7 : i32
    %84 = vector.broadcast %c7_i32 : i32 to vector<16x1xi32>
    %85 = arith.cmpi eq, %81, %84 : vector<16x1xi32>
    %c1_i32_32 = arith.constant 1 : i32
    %86 = tpu.dynamic_rotate %64 by %c1_i32_32 dim 0 : vector<16x5xf32>, i32 -> vector<16x5xf32>
    %cst_33 = arith.constant 0.000000e+00 : f32
    %87 = vector.shape_cast %83 : vector<16x1xi1> to vector<16x1xi1>
    %88 = vector.broadcast %87 : vector<16x1xi1> to vector<16x5xi1>
    %89 = vector.broadcast %cst_33 : f32 to vector<16x5xf32>
    %90 = arith.select %88, %89, %86 : vector<16x5xi1>, vector<16x5xf32>
    %c15_i32_34 = arith.constant 15 : i32
    %91 = tpu.dynamic_rotate %64 by %c15_i32_34 dim 0 : vector<16x5xf32>, i32 -> vector<16x5xf32>
    %cst_35 = arith.constant 0.000000e+00 : f32
    %92 = vector.shape_cast %85 : vector<16x1xi1> to vector<16x1xi1>
    %93 = vector.broadcast %92 : vector<16x1xi1> to vector<16x5xi1>
    %94 = vector.broadcast %cst_35 : f32 to vector<16x5xf32>
    %95 = arith.select %93, %94, %91 : vector<16x5xi1>, vector<16x5xf32>
    %96 = tpu.concatenate %90, %64, %95 in 1 : vector<16x5xf32>, vector<16x5xf32>, vector<16x5xf32> -> vector<16x15xf32>
    %97 = arith.truncf %96 : vector<16x15xf32> to vector<16x15xbf16>
    %cst_36 = arith.constant dense<0.000000e+00> : vector<16x32xf32>
    %98 = tpu.matmul %97, %0, %cst_36 {dimension_numbers = #tpu.dot_dimension_numbers<[1], [0], [0], [1], [0, 0, 1, 1], [], []>} : vector<16x15xbf16>, vector<15x32xbf16>, vector<16x32xf32> -> vector<16x32xf32>
    %99 = vector.broadcast %1 : vector<1x32xf32> to vector<16x32xf32>
    %100 = arith.addf %98, %99 : vector<16x32xf32>
    %cst_37 = arith.constant 0.000000e+00 : f32
    %101 = vector.broadcast %cst_37 : f32 to vector<16x32xf32>
    %102 = arith.maximumf %100, %101 : vector<16x32xf32>
    %c1_i32_38 = arith.constant 1 : i32
    %103 = tpu.dynamic_rotate %102 by %c1_i32_38 dim 0 : vector<16x32xf32>, i32 -> vector<16x32xf32>
    %cst_39 = arith.constant 0.000000e+00 : f32
    %104 = vector.shape_cast %83 : vector<16x1xi1> to vector<16x1xi1>
    %105 = vector.broadcast %104 : vector<16x1xi1> to vector<16x32xi1>
    %106 = vector.broadcast %cst_39 : f32 to vector<16x32xf32>
    %107 = arith.select %105, %106, %103 : vector<16x32xi1>, vector<16x32xf32>
    %c15_i32_40 = arith.constant 15 : i32
    %108 = tpu.dynamic_rotate %102 by %c15_i32_40 dim 0 : vector<16x32xf32>, i32 -> vector<16x32xf32>
    %cst_41 = arith.constant 0.000000e+00 : f32
    %109 = vector.shape_cast %85 : vector<16x1xi1> to vector<16x1xi1>
    %110 = vector.broadcast %109 : vector<16x1xi1> to vector<16x32xi1>
    %111 = vector.broadcast %cst_41 : f32 to vector<16x32xf32>
    %112 = arith.select %110, %111, %108 : vector<16x32xi1>, vector<16x32xf32>
    %113 = tpu.concatenate %107, %102, %112 in 1 : vector<16x32xf32>, vector<16x32xf32>, vector<16x32xf32> -> vector<16x96xf32>
    %114 = arith.truncf %113 : vector<16x96xf32> to vector<16x96xbf16>
    %cst_42 = arith.constant dense<0.000000e+00> : vector<16x64xf32>
    %115 = tpu.matmul %114, %2, %cst_42 {dimension_numbers = #tpu.dot_dimension_numbers<[1], [0], [0], [1], [0, 0, 1, 1], [], []>} : vector<16x96xbf16>, vector<96x64xbf16>, vector<16x64xf32> -> vector<16x64xf32>
    %116 = vector.broadcast %3 : vector<1x64xf32> to vector<16x64xf32>
    %117 = arith.addf %115, %116 : vector<16x64xf32>
    %cst_43 = arith.constant 0.000000e+00 : f32
    %118 = vector.broadcast %cst_43 : f32 to vector<16x64xf32>
    %119 = arith.maximumf %117, %118 : vector<16x64xf32>
    %120 = vector.shape_cast %119 : vector<16x64xf32> to vector<2x8x64xf32>
    %cst_44 = arith.constant dense<0xFF800000> : vector<2x64xf32>
    %121 = vector.multi_reduction <maximumf>, %120, %cst_44 [1] : vector<2x8x64xf32> to vector<2x64xf32>
    %c0_45 = arith.constant 0 : index
    %c0_46 = arith.constant 0 : index
    %122 = vector.load %arg1[%c0_45, %c0_46] : memref<2x128xbf16, #tpu.memory_space<vmem>>, vector<2x128xbf16>
    %c0_47 = arith.constant 0 : index
    %c0_48 = arith.constant 0 : index
    %123 = vector.load %arg8[%c0_47, %c0_48] : memref<128x64xbf16, #tpu.memory_space<vmem>>, vector<128x64xbf16>
    %cst_49 = arith.constant dense<0.000000e+00> : vector<2x64xf32>
    %124 = tpu.matmul %122, %123, %cst_49 {dimension_numbers = #tpu.dot_dimension_numbers<[1], [0], [0], [1], [0, 0, 1, 1], [], []>} : vector<2x128xbf16>, vector<128x64xbf16>, vector<2x64xf32> -> vector<2x64xf32>
    %125 = arith.truncf %62 : vector<2x64xf32> to vector<2x64xbf16>
    %c0_50 = arith.constant 0 : index
    %c0_51 = arith.constant 0 : index
    %126 = vector.load %arg9[%c0_50, %c0_51] : memref<64x64xbf16, #tpu.memory_space<vmem>>, vector<64x64xbf16>
    %cst_52 = arith.constant dense<0.000000e+00> : vector<2x64xf32>
    %127 = tpu.matmul %125, %126, %cst_52 {dimension_numbers = #tpu.dot_dimension_numbers<[1], [0], [0], [1], [0, 0, 1, 1], [], []>} : vector<2x64xbf16>, vector<64x64xbf16>, vector<2x64xf32> -> vector<2x64xf32>
    %128 = arith.addf %124, %127 : vector<2x64xf32>
    %129 = arith.truncf %121 : vector<2x64xf32> to vector<2x64xbf16>
    %c0_53 = arith.constant 0 : index
    %c0_54 = arith.constant 0 : index
    %130 = vector.load %arg10[%c0_53, %c0_54] : memref<64x64xbf16, #tpu.memory_space<vmem>>, vector<64x64xbf16>
    %cst_55 = arith.constant dense<0.000000e+00> : vector<2x64xf32>
    %131 = tpu.matmul %129, %130, %cst_55 {dimension_numbers = #tpu.dot_dimension_numbers<[1], [0], [0], [1], [0, 0, 1, 1], [], []>} : vector<2x64xbf16>, vector<64x64xbf16>, vector<2x64xf32> -> vector<2x64xf32>
    %132 = arith.addf %128, %131 : vector<2x64xf32>
    %c0_56 = arith.constant 0 : index
    %c0_57 = arith.constant 0 : index
    %133 = vector.load %arg11[%c0_56, %c0_57] : memref<1x64xf32, #tpu.memory_space<vmem>>, vector<1x64xf32>
    %134 = vector.broadcast %133 : vector<1x64xf32> to vector<2x64xf32>
    %135 = arith.addf %132, %134 : vector<2x64xf32>
    %c0_58 = arith.constant 0 : index
    %c0_59 = arith.constant 0 : index
    %136 = vector.load %arg12[%c0_58, %c0_59] : memref<1x64xf32, #tpu.memory_space<vmem>>, vector<1x64xf32>
    %c0_60 = arith.constant 0 : index
    %c0_61 = arith.constant 0 : index
    %137 = vector.load %arg13[%c0_60, %c0_61] : memref<1x64xf32, #tpu.memory_space<vmem>>, vector<1x64xf32>
    %cst_62 = arith.constant dense<0.000000e+00> : vector<2xf32>
    %138 = vector.multi_reduction <add>, %135, %cst_62 [1] : vector<2x64xf32> to vector<2xf32>
    %139 = vector.shape_cast %138 : vector<2xf32> to vector<2x1xf32>
    %cst_63 = arith.constant 6.400000e+01 : f32
    %140 = vector.broadcast %cst_63 : f32 to vector<2x1xf32>
    %141 = arith.divf %139, %140 : vector<2x1xf32>
    %142 = vector.broadcast %141 : vector<2x1xf32> to vector<2x64xf32>
    %143 = arith.subf %135, %142 : vector<2x64xf32>
    %144 = vector.broadcast %141 : vector<2x1xf32> to vector<2x64xf32>
    %145 = arith.subf %135, %144 : vector<2x64xf32>
    %146 = arith.mulf %143, %145 : vector<2x64xf32>
    %cst_64 = arith.constant dense<0.000000e+00> : vector<2xf32>
    %147 = vector.multi_reduction <add>, %146, %cst_64 [1] : vector<2x64xf32> to vector<2xf32>
    %148 = vector.shape_cast %147 : vector<2xf32> to vector<2x1xf32>
    %cst_65 = arith.constant 6.400000e+01 : f32
    %149 = vector.broadcast %cst_65 : f32 to vector<2x1xf32>
    %150 = arith.divf %148, %149 : vector<2x1xf32>
    %151 = vector.broadcast %141 : vector<2x1xf32> to vector<2x64xf32>
    %152 = arith.subf %135, %151 : vector<2x64xf32>
    %cst_66 = arith.constant 9.99999974E-6 : f32
    %153 = vector.broadcast %cst_66 : f32 to vector<2x1xf32>
    %154 = arith.addf %150, %153 : vector<2x1xf32>
    %155 = math.rsqrt %154 : vector<2x1xf32>
    %156 = vector.broadcast %155 : vector<2x1xf32> to vector<2x64xf32>
    %157 = arith.mulf %152, %156 : vector<2x64xf32>
    %158 = vector.broadcast %136 : vector<1x64xf32> to vector<2x64xf32>
    %159 = arith.mulf %157, %158 : vector<2x64xf32>
    %160 = vector.broadcast %137 : vector<1x64xf32> to vector<2x64xf32>
    %161 = arith.addf %159, %160 : vector<2x64xf32>
    %cst_67 = arith.constant 0.000000e+00 : f32
    %162 = vector.broadcast %cst_67 : f32 to vector<2x64xf32>
    %163 = arith.maximumf %161, %162 : vector<2x64xf32>
    %164 = arith.truncf %163 : vector<2x64xf32> to vector<2x64xbf16>
    %c0_68 = arith.constant 0 : index
    %c0_69 = arith.constant 0 : index
    %165 = vector.load %arg14[%c0_68, %c0_69] : memref<64x32xbf16, #tpu.memory_space<vmem>>, vector<64x32xbf16>
    %cst_70 = arith.constant dense<0.000000e+00> : vector<2x32xf32>
    %166 = tpu.matmul %164, %165, %cst_70 {dimension_numbers = #tpu.dot_dimension_numbers<[1], [0], [0], [1], [0, 0, 1, 1], [], []>} : vector<2x64xbf16>, vector<64x32xbf16>, vector<2x32xf32> -> vector<2x32xf32>
    %c0_71 = arith.constant 0 : index
    %c0_72 = arith.constant 0 : index
    %167 = vector.load %arg15[%c0_71, %c0_72] : memref<1x32xf32, #tpu.memory_space<vmem>>, vector<1x32xf32>
    %168 = vector.broadcast %167 : vector<1x32xf32> to vector<2x32xf32>
    %169 = arith.addf %166, %168 : vector<2x32xf32>
    %c0_73 = arith.constant 0 : index
    %c0_74 = arith.constant 0 : index
    %170 = vector.load %arg16[%c0_73, %c0_74] : memref<1x32xf32, #tpu.memory_space<vmem>>, vector<1x32xf32>
    %c0_75 = arith.constant 0 : index
    %c0_76 = arith.constant 0 : index
    %171 = vector.load %arg17[%c0_75, %c0_76] : memref<1x32xf32, #tpu.memory_space<vmem>>, vector<1x32xf32>
    %cst_77 = arith.constant dense<0.000000e+00> : vector<2xf32>
    %172 = vector.multi_reduction <add>, %169, %cst_77 [1] : vector<2x32xf32> to vector<2xf32>
    %173 = vector.shape_cast %172 : vector<2xf32> to vector<2x1xf32>
    %cst_78 = arith.constant 3.200000e+01 : f32
    %174 = vector.broadcast %cst_78 : f32 to vector<2x1xf32>
    %175 = arith.divf %173, %174 : vector<2x1xf32>
    %176 = vector.broadcast %175 : vector<2x1xf32> to vector<2x32xf32>
    %177 = arith.subf %169, %176 : vector<2x32xf32>
    %178 = vector.broadcast %175 : vector<2x1xf32> to vector<2x32xf32>
    %179 = arith.subf %169, %178 : vector<2x32xf32>
    %180 = arith.mulf %177, %179 : vector<2x32xf32>
    %cst_79 = arith.constant dense<0.000000e+00> : vector<2xf32>
    %181 = vector.multi_reduction <add>, %180, %cst_79 [1] : vector<2x32xf32> to vector<2xf32>
    %182 = vector.shape_cast %181 : vector<2xf32> to vector<2x1xf32>
    %cst_80 = arith.constant 3.200000e+01 : f32
    %183 = vector.broadcast %cst_80 : f32 to vector<2x1xf32>
    %184 = arith.divf %182, %183 : vector<2x1xf32>
    %185 = vector.broadcast %175 : vector<2x1xf32> to vector<2x32xf32>
    %186 = arith.subf %169, %185 : vector<2x32xf32>
    %cst_81 = arith.constant 9.99999974E-6 : f32
    %187 = vector.broadcast %cst_81 : f32 to vector<2x1xf32>
    %188 = arith.addf %184, %187 : vector<2x1xf32>
    %189 = math.rsqrt %188 : vector<2x1xf32>
    %190 = vector.broadcast %189 : vector<2x1xf32> to vector<2x32xf32>
    %191 = arith.mulf %186, %190 : vector<2x32xf32>
    %192 = vector.broadcast %170 : vector<1x32xf32> to vector<2x32xf32>
    %193 = arith.mulf %191, %192 : vector<2x32xf32>
    %194 = vector.broadcast %171 : vector<1x32xf32> to vector<2x32xf32>
    %195 = arith.addf %193, %194 : vector<2x32xf32>
    %cst_82 = arith.constant 0.000000e+00 : f32
    %196 = vector.broadcast %cst_82 : f32 to vector<2x32xf32>
    %197 = arith.maximumf %195, %196 : vector<2x32xf32>
    %c0_83 = arith.constant 0 : index
    %c0_84 = arith.constant 0 : index
    %198 = vector.load %arg18[%c0_83, %c0_84] : memref<1x32xf32, #tpu.memory_space<vmem>>, vector<1x32xf32>
    %199 = vector.broadcast %198 : vector<1x32xf32> to vector<2x32xf32>
    %200 = arith.mulf %197, %199 : vector<2x32xf32>
    %cst_85 = arith.constant dense<0.000000e+00> : vector<2xf32>
    %201 = vector.multi_reduction <add>, %200, %cst_85 [1] : vector<2x32xf32> to vector<2xf32>
    %202 = vector.shape_cast %201 : vector<2xf32> to vector<2x1xf32>
    %c0_86 = arith.constant 0 : index
    %c0_87 = arith.constant 0 : index
    %203 = vector.load %arg19[%c0_86, %c0_87] : memref<1x1xf32, #tpu.memory_space<vmem>>, vector<1x1xf32>
    %204 = vector.broadcast %203 : vector<1x1xf32> to vector<2x1xf32>
    %205 = arith.addf %202, %204 : vector<2x1xf32>
    %206 = arith.negf %205 : vector<2x1xf32>
    %207 = math.exp %206 : vector<2x1xf32>
    %cst_88 = arith.constant 1.000000e+00 : f32
    %208 = vector.broadcast %cst_88 : f32 to vector<2x1xf32>
    %209 = arith.addf %208, %207 : vector<2x1xf32>
    %210 = arith.divf %208, %209 : vector<2x1xf32>
    %c0_89 = arith.constant 0 : index
    %c0_90 = arith.constant 0 : index
    %211 = vector.load %arg20[%c0_89, %c0_90] : memref<2x1xf32, #tpu.memory_space<vmem>>, vector<2x1xf32>
    tpu.vector_store %arg20[%c0_89, %c0_90], %210 {strides = array<i32>} : memref<2x1xf32, #tpu.memory_space<vmem>>, vector<2x1xf32>,
    return
  }
  func.func @transform_0(%arg0: i32) -> (i32, i32) {
    %c0_i32 = arith.constant 0 : i32
    %c0_i32_0 = arith.constant 0 : i32
    return %arg0, %c0_i32 : i32, i32
  }
  func.func @transform_1(%arg0: i32) -> (i32, i32) {
    %c0_i32 = arith.constant 0 : i32
    %c0_i32_0 = arith.constant 0 : i32
    return %arg0, %c0_i32 : i32, i32
  }
  func.func @transform_2(%arg0: i32) -> (i32, i32) {
    %c0_i32 = arith.constant 0 : i32
    %c0_i32_0 = arith.constant 0 : i32
    return %arg0, %c0_i32 : i32, i32
  }
  func.func @transform_3(%arg0: i32) -> (i32, i32) {
    %c0_i32 = arith.constant 0 : i32
    %c0_i32_0 = arith.constant 0 : i32
    %c0_i32_1 = arith.constant 0 : i32
    return %c0_i32, %c0_i32_0 : i32, i32
  }
  func.func @transform_4(%arg0: i32) -> (i32, i32) {
    %c0_i32 = arith.constant 0 : i32
    %c0_i32_0 = arith.constant 0 : i32
    %c0_i32_1 = arith.constant 0 : i32
    return %c0_i32, %c0_i32_0 : i32, i32
  }
  func.func @transform_5(%arg0: i32) -> (i32, i32) {
    %c0_i32 = arith.constant 0 : i32
    %c0_i32_0 = arith.constant 0 : i32
    %c0_i32_1 = arith.constant 0 : i32
    return %c0_i32, %c0_i32_0 : i32, i32
  }
  func.func @transform_6(%arg0: i32) -> (i32, i32) {
    %c0_i32 = arith.constant 0 : i32
    %c0_i32_0 = arith.constant 0 : i32
    %c0_i32_1 = arith.constant 0 : i32
    return %c0_i32, %c0_i32_0 : i32, i32
  }
  func.func @transform_7(%arg0: i32) -> (i32, i32) {
    %c0_i32 = arith.constant 0 : i32
    %c0_i32_0 = arith.constant 0 : i32
    %c0_i32_1 = arith.constant 0 : i32
    return %c0_i32, %c0_i32_0 : i32, i32
  }
  func.func @transform_8(%arg0: i32) -> (i32, i32) {
    %c0_i32 = arith.constant 0 : i32
    %c0_i32_0 = arith.constant 0 : i32
    %c0_i32_1 = arith.constant 0 : i32
    return %c0_i32, %c0_i32_0 : i32, i32
  }
  func.func @transform_9(%arg0: i32) -> (i32, i32) {
    %c0_i32 = arith.constant 0 : i32
    %c0_i32_0 = arith.constant 0 : i32
    %c0_i32_1 = arith.constant 0 : i32
    return %c0_i32, %c0_i32_0 : i32, i32
  }
  func.func @transform_10(%arg0: i32) -> (i32, i32) {
    %c0_i32 = arith.constant 0 : i32
    %c0_i32_0 = arith.constant 0 : i32
    %c0_i32_1 = arith.constant 0 : i32
    return %c0_i32, %c0_i32_0 : i32, i32
  }
  func.func @transform_11(%arg0: i32) -> (i32, i32) {
    %c0_i32 = arith.constant 0 : i32
    %c0_i32_0 = arith.constant 0 : i32
    %c0_i32_1 = arith.constant 0 : i32
    return %c0_i32, %c0_i32_0 : i32, i32
  }
  func.func @transform_12(%arg0: i32) -> (i32, i32) {
    %c0_i32 = arith.constant 0 : i32
    %c0_i32_0 = arith.constant 0 : i32
    %c0_i32_1 = arith.constant 0 : i32
    return %c0_i32, %c0_i32_0 : i32, i32
  }
  func.func @transform_13(%arg0: i32) -> (i32, i32) {
    %c0_i32 = arith.constant 0 : i32
    %c0_i32_0 = arith.constant 0 : i32
    %c0_i32_1 = arith.constant 0 : i32
    return %c0_i32, %c0_i32_0 : i32, i32
  }
  func.func @transform_14(%arg0: i32) -> (i32, i32) {
    %c0_i32 = arith.constant 0 : i32
    %c0_i32_0 = arith.constant 0 : i32
    %c0_i32_1 = arith.constant 0 : i32
    return %c0_i32, %c0_i32_0 : i32, i32
  }
  func.func @transform_15(%arg0: i32) -> (i32, i32) {
    %c0_i32 = arith.constant 0 : i32
    %c0_i32_0 = arith.constant 0 : i32
    %c0_i32_1 = arith.constant 0 : i32
    return %c0_i32, %c0_i32_0 : i32, i32
  }
  func.func @transform_16(%arg0: i32) -> (i32, i32) {
    %c0_i32 = arith.constant 0 : i32
    %c0_i32_0 = arith.constant 0 : i32
    %c0_i32_1 = arith.constant 0 : i32
    return %c0_i32, %c0_i32_0 : i32, i32
  }
  func.func @transform_17(%arg0: i32) -> (i32, i32) {
    %c0_i32 = arith.constant 0 : i32
    %c0_i32_0 = arith.constant 0 : i32
    %c0_i32_1 = arith.constant 0 : i32
    return %c0_i32, %c0_i32_0 : i32, i32
  }
  func.func @transform_18(%arg0: i32) -> (i32, i32) {
    %c0_i32 = arith.constant 0 : i32
    %c0_i32_0 = arith.constant 0 : i32
    %c0_i32_1 = arith.constant 0 : i32
    return %c0_i32, %c0_i32_0 : i32, i32
  }
  func.func @transform_19(%arg0: i32) -> (i32, i32) {
    %c0_i32 = arith.constant 0 : i32
    %c0_i32_0 = arith.constant 0 : i32
    return %arg0, %c0_i32 : i32, i32
  }
}

</mosaic_0001>

<llo_original>
// kernel: mhc_peptide_forward.1
$region0: #{mhc_peptide_forward.1}
  #allocation0 [shape = 'u32[]', space=smem, size = 0x4, offset = 0x4, fixed_abs, tag = 'smem constant byte address 0x4 - core index']
  #allocation1 [shape = 'u32[144,128]{1,0:T(1,128)}', space=vmem, size = 0x12000, scoped, tag = 'internal scratch']
  #allocation2 [shape = 'f32[1,1]{1,0:T(1,128)S(1)}', space=vmem, size = 0x200, scoped, tag = 'scoped memory for mhc_peptide_forward.1']
  %s0 = inlined_call_operand.vmem [shape: bf16[2,128], index: 0, kind: input, shape index: {}]
  %s1 = inlined_call_operand.vmem [shape: bf16[32,5], index: 1, kind: input, shape index: {}]
  %s2 = inlined_call_operand.vmem [shape: bf16[16,5], index: 2, kind: input, shape index: {}]
  %s3 = inlined_call_operand.vmem [shape: bf16[15,32], index: 3, kind: input, shape index: {}]
  %s4 = inlined_call_operand.vmem [shape: f32[1,32], index: 4, kind: input, shape index: {}]
  %s5 = inlined_call_operand.vmem [shape: bf16[96,64], index: 5, kind: input, shape index: {}]
  %s6 = inlined_call_operand.vmem [shape: f32[1,64], index: 6, kind: input, shape index: {}]
  %s7 = inlined_call_operand.vmem [shape: bf16[128,64], index: 7, kind: input, shape index: {}]
  %s8 = inlined_call_operand.vmem [shape: bf16[64,64], index: 8, kind: input, shape index: {}]
  %s9 = inlined_call_operand.vmem [shape: bf16[64,64], index: 9, kind: input, shape index: {}]
  %s10 = inlined_call_operand.vmem [shape: f32[1,64], index: 10, kind: input, shape index: {}]
  %s11 = inlined_call_operand.vmem [shape: f32[1,64], index: 11, kind: input, shape index: {}]
  %s12 = inlined_call_operand.vmem [shape: f32[1,64], index: 12, kind: input, shape index: {}]
  %s13 = inlined_call_operand.vmem [shape: bf16[64,32], index: 13, kind: input, shape index: {}]
  %s14 = inlined_call_operand.vmem [shape: f32[1,32], index: 14, kind: input, shape index: {}]
  %s15 = inlined_call_operand.vmem [shape: f32[1,32], index: 15, kind: input, shape index: {}]
  %s16 = inlined_call_operand.vmem [shape: f32[1,32], index: 16, kind: input, shape index: {}]
  %s17 = inlined_call_operand.vmem [shape: f32[1,32], index: 17, kind: input, shape index: {}]
  %s18 = inlined_call_operand.<no memory space> [shape: f32[1,1], index: 18, kind: input, shape index: {}]
  %s19 = inlined_call_operand.vmem [shape: f32[2,1], index: 19, kind: output, shape index: {}]
  %s20 = sld [smem:[#allocation0]]
  $region86: #{mhc_peptide_forward.1} parent=0
    _
  %s22 = ssub.s32 1, %s20
  %s23 = scalar_select 0, %s22, %s20
  %v24 = vstv %s18
  %25 = vst [vmem:[#allocation2] sm:$0x1] %v24
  // Predicated region
  $region2: #{mhc_peptide_forward.1} parent=0 // pred_check
    _
  $region3: #{mhc_peptide_forward.1} parent=0 // pred_check_branch
    %27 = sbr.rel (0) target = $region5
  $region4: #{mhc_peptide_forward.1} parent=0 // pred_region
    _
  $region5: #{mhc_peptide_forward.1} parent=0 // pred_fallthru
    _
  // Predicated region
  $region6: #{mhc_peptide_forward.1} parent=0 // pred_check
    _
  $region7: #{mhc_peptide_forward.1} parent=0 // pred_check_branch
    %29 = sbr.rel (0) target = $region9
  $region8: #{mhc_peptide_forward.1} parent=0 // pred_region
    _
  $region9: #{mhc_peptide_forward.1} parent=0 // pred_fallthru
    _
  // Predicated region
  $region10: #{mhc_peptide_forward.1} parent=0 // pred_check
    _
  $region11: #{mhc_peptide_forward.1} parent=0 // pred_check_branch
    %31 = sbr.rel (0) target = $region13
  $region12: #{mhc_peptide_forward.1} parent=0 // pred_region
    _
  $region13: #{mhc_peptide_forward.1} parent=0 // pred_fallthru
    _
  // Predicated region
  $region14: #{mhc_peptide_forward.1} parent=0 // pred_check
    _
  $region15: #{mhc_peptide_forward.1} parent=0 // pred_check_branch
    %33 = sbr.rel (0) target = $region17
  $region16: #{mhc_peptide_forward.1} parent=0 // pred_region
    _
  $region17: #{mhc_peptide_forward.1} parent=0 // pred_fallthru
    _
  // Predicated region
  $region18: #{mhc_peptide_forward.1} parent=0 // pred_check
    _
  $region19: #{mhc_peptide_forward.1} parent=0 // pred_check_branch
    %35 = sbr.rel (0) target = $region21
  $region20: #{mhc_peptide_forward.1} parent=0 // pred_region
    _
  $region21: #{mhc_peptide_forward.1} parent=0 // pred_fallthru
    _
  // Predicated region
  $region22: #{mhc_peptide_forward.1} parent=0 // pred_check
    _
  $region23: #{mhc_peptide_forward.1} parent=0 // pred_check_branch
    %37 = sbr.rel (0) target = $region25
  $region24: #{mhc_peptide_forward.1} parent=0 // pred_region
    _
  $region25: #{mhc_peptide_forward.1} parent=0 // pred_fallthru
    _
  // Predicated region
  $region26: #{mhc_peptide_forward.1} parent=0 // pred_check
    _
  $region27: #{mhc_peptide_forward.1} parent=0 // pred_check_branch
    %39 = sbr.rel (0) target = $region29
  $region28: #{mhc_peptide_forward.1} parent=0 // pred_region
    _
  $region29: #{mhc_peptide_forward.1} parent=0 // pred_fallthru
    _
  // Predicated region
  $region30: #{mhc_peptide_forward.1} parent=0 // pred_check
    _
  $region31: #{mhc_peptide_forward.1} parent=0 // pred_check_branch
    %41 = sbr.rel (0) target = $region33
  $region32: #{mhc_peptide_forward.1} parent=0 // pred_region
    _
  $region33: #{mhc_peptide_forward.1} parent=0 // pred_fallthru
    _
  // Predicated region
  $region34: #{mhc_peptide_forward.1} parent=0 // pred_check
    _
  $region35: #{mhc_peptide_forward.1} parent=0 // pred_check_branch
    %43 = sbr.rel (0) target = $region37
  $region36: #{mhc_peptide_forward.1} parent=0 // pred_region
    _
  $region37: #{mhc_peptide_forward.1} parent=0 // pred_fallthru
    _
  // Predicated region
  $region38: #{mhc_peptide_forward.1} parent=0 // pred_check
    _
  $region39: #{mhc_peptide_forward.1} parent=0 // pred_check_branch
    %45 = sbr.rel (0) target = $region41
  $region40: #{mhc_peptide_forward.1} parent=0 // pred_region
    _
  $region41: #{mhc_peptide_forward.1} parent=0 // pred_fallthru
    _
  // Predicated region
  $region42: #{mhc_peptide_forward.1} parent=0 // pred_check
    _
  $region43: #{mhc_peptide_forward.1} parent=0 // pred_check_branch
    %47 = sbr.rel (0) target = $region45
  $region44: #{mhc_peptide_forward.1} parent=0 // pred_region
    _
  $region45: #{mhc_peptide_forward.1} parent=0 // pred_fallthru
    _
  // Predicated region
  $region46: #{mhc_peptide_forward.1} parent=0 // pred_check
    _
  $region47: #{mhc_peptide_forward.1} parent=0 // pred_check_branch
    %49 = sbr.rel (0) target = $region49
  $region48: #{mhc_peptide_forward.1} parent=0 // pred_region
    _
  $region49: #{mhc_peptide_forward.1} parent=0 // pred_fallthru
    _
  // Predicated region
  $region50: #{mhc_peptide_forward.1} parent=0 // pred_check
    _
  $region51: #{mhc_peptide_forward.1} parent=0 // pred_check_branch
    %51 = sbr.rel (0) target = $region53
  $region52: #{mhc_peptide_forward.1} parent=0 // pred_region
    _
  $region53: #{mhc_peptide_forward.1} parent=0 // pred_fallthru
    _
  // Predicated region
  $region54: #{mhc_peptide_forward.1} parent=0 // pred_check
    _
  $region55: #{mhc_peptide_forward.1} parent=0 // pred_check_branch
    %53 = sbr.rel (0) target = $region57
  $region56: #{mhc_peptide_forward.1} parent=0 // pred_region
    _
  $region57: #{mhc_peptide_forward.1} parent=0 // pred_fallthru
    _
  // Predicated region
  $region58: #{mhc_peptide_forward.1} parent=0 // pred_check
    _
  $region59: #{mhc_peptide_forward.1} parent=0 // pred_check_branch
    %55 = sbr.rel (0) target = $region61
  $region60: #{mhc_peptide_forward.1} parent=0 // pred_region
    _
  $region61: #{mhc_peptide_forward.1} parent=0 // pred_fallthru
    _
  // Predicated region
  $region62: #{mhc_peptide_forward.1} parent=0 // pred_check
    _
  $region63: #{mhc_peptide_forward.1} parent=0 // pred_check_branch
    %57 = sbr.rel (0) target = $region65
  $region64: #{mhc_peptide_forward.1} parent=0 // pred_region
    _
  $region65: #{mhc_peptide_forward.1} parent=0 // pred_fallthru
    _
  // Predicated region
  $region66: #{mhc_peptide_forward.1} parent=0 // pred_check
    _
  $region67: #{mhc_peptide_forward.1} parent=0 // pred_check_branch
    %59 = sbr.rel (0) target = $region69
  $region68: #{mhc_peptide_forward.1} parent=0 // pred_region
    _
  $region69: #{mhc_peptide_forward.1} parent=0 // pred_fallthru
    _
  // Predicated region
  $region70: #{mhc_peptide_forward.1} parent=0 // pred_check
    _
  $region71: #{mhc_peptide_forward.1} parent=0 // pred_check_branch
    %61 = sbr.rel (0) target = $region73
  $region72: #{mhc_peptide_forward.1} parent=0 // pred_region
    _
  $region73: #{mhc_peptide_forward.1} parent=0 // pred_fallthru
    _
  // Predicated region
  $region74: #{mhc_peptide_forward.1} parent=0 // pred_check
    _
  $region75: #{mhc_peptide_forward.1} parent=0 // pred_check_branch
    %63 = sbr.rel (0) target = $region77
  $region76: #{mhc_peptide_forward.1} parent=0 // pred_region
    _
  $region77: #{mhc_peptide_forward.1} parent=0 // pred_fallthru
    _
  %v65 = vld [vmem:[%s3] sm:$0xf]
  %v66 = vld [vmem:[%s3 + $0x4] sm:$0xf]
  %v67 = vld [vmem:[%s4] sm:$0x1]
  %v68 = vld [vmem:[%s5] sm:$0xf]
  %v69 = vld [vmem:[%s5 + $0x4] sm:$0xf]
  %v70 = vld [vmem:[%s5 + $0x8] sm:$0xf]
  %v71 = vld [vmem:[%s5 + $0xc] sm:$0xf]
  %v72 = vld [vmem:[%s5 + $0x10] sm:$0xf]
  %v73 = vld [vmem:[%s5 + $0x14] sm:$0xf]
  %v74 = vld [vmem:[%s5 + $0x18] sm:$0xf]
  %v75 = vld [vmem:[%s5 + $0x1c] sm:$0xf]
  %v76 = vld [vmem:[%s5 + $0x20] sm:$0xf]
  %v77 = vld [vmem:[%s5 + $0x24] sm:$0xf]
  %v78 = vld [vmem:[%s5 + $0x28] sm:$0xf]
  %v79 = vld [vmem:[%s5 + $0x2c] sm:$0xf]
  %v80 = vld [vmem:[%s6] sm:$0x1]
  %v81 = vld [vmem:[%s1] sm:$0xf]
  %v82 = vld [vmem:[%s1 + $0x4] sm:$0xf]
  %v83 = vld [vmem:[%s1 + $0x8] sm:$0xf]
  %v84 = vld [vmem:[%s1 + $0xc] sm:$0xf]
  %v85 = vunpack.c.l.bf16 %v81
  %v86 = vunpack.c.l.bf16 %v82
  %v87 = vunpack.c.l.bf16 %v83
  %v88 = vunpack.c.l.bf16 %v84
  %v89 = vlaneseq
  %v90 = vshrl.u32 %v89, 7
  %v91 = vadd.s32 %v90, 8
  %v92 = vadd.s32 %v90, 16
  %v93 = vadd.s32 %v90, 24
  %vm94 = vcmp.lt.s32.totalorder %v90, 0
  %v95 = vsub.s32 0, %v90
  %v96 = vsel %vm94, %v95, %v90
  %v97 = vshrl.u32 %v96, 4
  %v98 = vand.u32 %v96, 15
  %v99 = vsub.s32 0, %v98
  %v100 = vsel %vm94, %v99, %v98
  %vm101 = vcmp.lt.s32.totalorder %v91, 0
  %v102 = vsub.s32 0, %v91
  %v103 = vsel %vm101, %v102, %v91
  %v104 = vshrl.u32 %v103, 4
  %v105 = vand.u32 %v103, 15
  %v106 = vsub.s32 0, %v105
  %v107 = vsel %vm101, %v106, %v105
  %vm108 = vcmp.lt.s32.totalorder %v92, 0
  %v109 = vsub.s32 0, %v92
  %v110 = vsel %vm108, %v109, %v92
  %v111 = vshrl.u32 %v110, 4
  %v112 = vand.u32 %v110, 15
  %v113 = vsub.s32 0, %v112
  %v114 = vsel %vm108, %v113, %v112
  %vm115 = vcmp.lt.s32.totalorder %v93, 0
  %v116 = vsub.s32 0, %v93
  %v117 = vsel %vm115, %v116, %v93
  %v118 = vshrl.u32 %v117, 4
  %v119 = vand.u32 %v117, 15
  %v120 = vsub.s32 0, %v119
  %v121 = vsel %vm115, %v120, %v119
  %vm122 = vcmp.ne.s32.totalorder %v100, 0
  %vm123 = vcmp.ne.s32.totalorder %v107, 0
  %vm124 = vcmp.ne.s32.totalorder %v114, 0
  %vm125 = vcmp.ne.s32.totalorder %v121, 0
  %vm126 = vcmp.lt.s32.totalorder %v100, 0
  %vm127 = vcmp.lt.s32.totalorder %v107, 0
  %vm128 = vcmp.lt.s32.totalorder %v114, 0
  %vm129 = vcmp.lt.s32.totalorder %v121, 0
  %vm130 = vmand %vm126, %vm122
  %vm131 = vmand %vm127, %vm123
  %vm132 = vmand %vm128, %vm124
  %vm133 = vmand %vm129, %vm125
  %v134 = vadd.s32 %v100, 16
  %v135 = vadd.s32 %v107, 16
  %v136 = vadd.s32 %v114, 16
  %v137 = vadd.s32 %v121, 16
  %v138 = vsel %vm130, %v134, %v100
  %v139 = vsel %vm131, %v135, %v107
  %v140 = vsel %vm132, %v136, %v114
  %v141 = vsel %vm133, %v137, %v121
  %vm142 = vcmp.eq.s32.totalorder %v138, 0
  %vm143 = vcmp.eq.s32.totalorder %v139, 0
  %vm144 = vcmp.eq.s32.totalorder %v140, 0
  %vm145 = vcmp.eq.s32.totalorder %v141, 0
  %vm146 = vcmp.eq.s32.totalorder %v138, 15
  %vm147 = vcmp.eq.s32.totalorder %v139, 15
  %vm148 = vcmp.eq.s32.totalorder %v140, 15
  %vm149 = vcmp.eq.s32.totalorder %v141, 15
  %v150 = vrot.slane %v85, 7
  %v151 = vrot.slane %v86, 7
  %v152 = vrot.slane %v87, 7
  %v153 = vrot.slane %v88, 7
  %vm154 = vcmp.lt.s32.totalorder %v90, 1
  %v155 = vsel %vm154, %v152, %v153
  %v156 = vsel %vm154, %v151, %v152
  %v157 = vsel %vm154, %v150, %v151
  %v158 = vsel %vm154, %v153, %v150
  %v159 = vsel %vm142, 1, 0
  %v160 = vsel %vm143, 1, 0
  %v161 = vsel %vm144, 1, 0
  %v162 = vsel %vm145, 1, 0
  %vm163 = vcmp.eq.s32.totalorder %v159, 1
  %vm164 = vcmp.eq.s32.totalorder %v160, 1
  %vm165 = vcmp.eq.s32.totalorder %v161, 1
  %vm166 = vcmp.eq.s32.totalorder %v162, 1
  %v167 = vsel %vm163, 0.0, %v158
  %v168 = vsel %vm164, 0.0, %v157
  %v169 = vsel %vm165, 0.0, %v156
  %v170 = vsel %vm166, 0.0, %v155
  %v171 = vrot.slane %v85, 1
  %v172 = vrot.slane %v86, 1
  %v173 = vrot.slane %v87, 1
  %v174 = vrot.slane %v88, 1
  %vm175 = vcmp.lt.s32.totalorder %v90, 7
  %v176 = vsel %vm175, %v173, %v174
  %v177 = vsel %vm175, %v172, %v173
  %v178 = vsel %vm175, %v171, %v172
  %v179 = vsel %vm175, %v174, %v171
  %v180 = vsel %vm146, 1, 0
  %v181 = vsel %vm147, 1, 0
  %v182 = vsel %vm148, 1, 0
  %v183 = vsel %vm149, 1, 0
  %vm184 = vcmp.eq.s32.totalorder %v180, 1
  %vm185 = vcmp.eq.s32.totalorder %v181, 1
  %vm186 = vcmp.eq.s32.totalorder %v182, 1
  %vm187 = vcmp.eq.s32.totalorder %v183, 1
  %v188 = vsel %vm184, 0.0, %v178
  %v189 = vsel %vm185, 0.0, %v177
  %v190 = vsel %vm186, 0.0, %v176
  %v191 = vsel %vm187, 0.0, %v179
  %196 = vrot.lane.b32.xlu0 %v85, 5
  %v197 = vpop.permute.xlu0 %196
  %198 = vrot.lane.b32.xlu0 %v86, 5
  %v199 = vpop.permute.xlu0 %198
  %200 = vrot.lane.b32.xlu0 %v87, 5
  %v201 = vpop.permute.xlu0 %200
  %202 = vrot.lane.b32.xlu0 %v88, 5
  %v203 = vpop.permute.xlu0 %202
  %212 = vrot.lane.b32.xlu0 %v188, 10
  %v213 = vpop.permute.xlu0 %212
  %214 = vrot.lane.b32.xlu0 %v189, 10
  %v215 = vpop.permute.xlu0 %214
  %216 = vrot.lane.b32.xlu0 %v190, 10
  %v217 = vpop.permute.xlu0 %216
  %218 = vrot.lane.b32.xlu0 %v191, 10
  %v219 = vpop.permute.xlu0 %218
  %vm224 = vcmask 39936
  %v225 = vsel %vm224, %v167, %v197
  %v226 = vsel %vm224, %v168, %v199
  %v227 = vsel %vm224, %v169, %v201
  %v228 = vsel %vm224, %v170, %v203
  %vm229 = vcmask 80896
  %v230 = vsel %vm229, %v225, %v213
  %v231 = vsel %vm229, %v226, %v215
  %v232 = vsel %vm229, %v227, %v217
  %v233 = vsel %vm229, %v228, %v219
  %v234 = vpack.c.bf16 %v231, %v230
  %v235 = vpack.c.bf16 %v233, %v232
  %v237 = vlaneseq
  %v238 = vshrl.u32 %v237, 7
  %v239 = vsub.s32 0, %v238
  %v240 = vrot.slane %v67, %v239
  %v244 = vunpack.c.l.b16 %v65
  %v245 = vunpack.c.l.b16 %v66
  %v246 = vpack.c.b16 %v245, %v244
  %vm247 = vcmask 121856
  %v249 = vsel %vm247, %v234, 0
  %v252 = vsel %vm247, %v235, 0
  %vm254 = vcmask 1046528
  %vm255 = vcmask 1047552
  %v256 = vsel %vm254, 4294967295, 65535
  %v257 = vsel %vm255, %v256, 0
  %v259 = vand.u32 %v246, %v257
  %261 = vmatprep.subr.bf16.mxu0 0
  %262 = vmatpush1.bf16.msra.mxu0 0
  %263 = vmatprep.subr.bf16.mxu0 0
  %264 = vmatpush1.bf16.msra.mxu0 0
  %265 = vmatprep.subr.bf16.mxu0 0
  %266 = vmatpush1.bf16.msra.mxu0 0
  %267 = vmatprep.subr.bf16.mxu0 0
  %268 = vmatpush1.bf16.msra.mxu0 0
  %269 = vmatprep.subr.bf16.mxu0 0
  %270 = vmatpush1.bf16.msra.mxu0 0
  %271 = vmatprep.subr.bf16.mxu0 0
  %272 = vmatpush1.bf16.msra.mxu0 0
  %273 = vmatprep.subr.bf16.mxu0 0
  %274 = vmatpush1.bf16.msra.mxu0 0
  %275 = vmatprep.subr.bf16.mxu0 0
  %276 = vmatpush1.bf16.msra.mxu0 %v259
  %277 = vmatprep.subr.bf16.mxu0 0
  %278 = vmatpush2.bf16.msra.mxu0 0
  %279 = vmatprep.subr.bf16.mxu0 0
  %280 = vmatpush2.bf16.msra.mxu0 0
  %281 = vmatprep.subr.bf16.mxu0 0
  %282 = vmatpush2.bf16.msra.mxu0 0
  %283 = vmatprep.subr.bf16.mxu0 0
  %284 = vmatpush2.bf16.msra.mxu0 0
  %285 = vmatprep.subr.bf16.mxu0 0
  %286 = vmatpush2.bf16.msra.mxu0 0
  %287 = vmatprep.subr.bf16.mxu0 0
  %288 = vmatpush2.bf16.msra.mxu0 0
  %289 = vmatprep.subr.bf16.mxu0 0
  %290 = vmatpush2.bf16.msra.mxu0 0
  %291 = vmatprep.subr.bf16.mxu0 0
  %292 = vmatpush2.bf16.msra.mxu0 0
  %293 = vmatprep.mubr.bf16.mxu0 0
  %294 = vmatmul.mubr.bf16.gmra.mxu0 %v249
  %v295 = vpop.f32.mrf.mxu0
  %v296 = vadd.f32 %v240, %v295
  %v297 = vpop.f32.mrf.mxu0
  %v298 = vpop.f32.mrf.mxu0
  %v299 = vadd.f32 %v240, %v298
  %v300 = vpop.f32.mrf.mxu0
  %301 = vmatprep.mubr.bf16.mxu0 0
  %302 = vmatmul.mubr.bf16.gmra.mxu0 %v252
  %v303 = vpop.f32.mrf.mxu0
  %v304 = vadd.f32 %v240, %v303
  %v305 = vpop.f32.mrf.mxu0
  %v306 = vpop.f32.mrf.mxu0
  %v307 = vadd.f32 %v240, %v306
  %v308 = vpop.f32.mrf.mxu0
  %309 = vdwg.mxu0
  %v310 = vmax.f32 %v296, 0.0
  %v311 = vmax.f32 %v299, 0.0
  %v312 = vmax.f32 %v304, 0.0
  %v313 = vmax.f32 %v307, 0.0
  %v314 = vrot.slane %v310, 7
  %v315 = vrot.slane %v311, 7
  %v316 = vrot.slane %v312, 7
  %v317 = vrot.slane %v313, 7
  %v318 = vsel %vm154, %v316, %v317
  %v319 = vsel %vm154, %v315, %v316
  %v320 = vsel %vm154, %v314, %v315
  %v321 = vsel %vm154, %v317, %v314
  %v322 = vsel %vm163, 0.0, %v321
  %v323 = vsel %vm164, 0.0, %v320
  %v324 = vsel %vm165, 0.0, %v319
  %v325 = vsel %vm166, 0.0, %v318
  %v326 = vrot.slane %v310, 1
  %v327 = vrot.slane %v311, 1
  %v328 = vrot.slane %v312, 1
  %v329 = vrot.slane %v313, 1
  %v330 = vsel %vm175, %v328, %v329
  %v331 = vsel %vm175, %v327, %v328
  %v332 = vsel %vm175, %v326, %v327
  %v333 = vsel %vm175, %v329, %v326
  %v334 = vsel %vm184, 0.0, %v332
  %v335 = vsel %vm185, 0.0, %v331
  %v336 = vsel %vm186, 0.0, %v330
  %v337 = vsel %vm187, 0.0, %v333
  %342 = vrot.lane.b32.xlu0 %v310, 32
  %v343 = vpop.permute.xlu0 %342
  %344 = vrot.lane.b32.xlu0 %v311, 32
  %v345 = vpop.permute.xlu0 %344
  %346 = vrot.lane.b32.xlu0 %v312, 32
  %v347 = vpop.permute.xlu0 %346
  %348 = vrot.lane.b32.xlu0 %v313, 32
  %v349 = vpop.permute.xlu0 %348
  %358 = vrot.lane.b32.xlu0 %v334, 64
  %v359 = vpop.permute.xlu0 %358
  %360 = vrot.lane.b32.xlu0 %v335, 64
  %v361 = vpop.permute.xlu0 %360
  %362 = vrot.lane.b32.xlu0 %v336, 64
  %v363 = vpop.permute.xlu0 %362
  %364 = vrot.lane.b32.xlu0 %v337, 64
  %v365 = vpop.permute.xlu0 %364
  %vm370 = vcmask 261120
  %v371 = vsel %vm370, %v322, %v343
  %v372 = vsel %vm370, %v323, %v345
  %v373 = vsel %vm370, %v324, %v347
  %v374 = vsel %vm370, %v325, %v349
  %vm375 = vcmask 523264
  %v376 = vsel %vm375, %v371, %v359
  %v377 = vsel %vm375, %v372, %v361
  %v378 = vsel %vm375, %v373, %v363
  %v379 = vsel %vm375, %v374, %v365
  %v380 = vpack.c.bf16 %v377, %v376
  %v381 = vpack.c.bf16 %v379, %v378
  %v383 = vlaneseq
  %v384 = vshrl.u32 %v383, 7
  %v385 = vsub.s32 0, %v384
  %v386 = vrot.slane %v80, %v385
  %v400 = vunpack.c.l.b16 %v68
  %v401 = vunpack.c.l.b16 %v69
  %v402 = vunpack.c.l.b16 %v70
  %v403 = vunpack.c.l.b16 %v71
  %v404 = vunpack.c.l.b16 %v72
  %v405 = vunpack.c.l.b16 %v73
  %v406 = vunpack.c.l.b16 %v74
  %v407 = vunpack.c.l.b16 %v75
  %v408 = vunpack.c.l.b16 %v76
  %v409 = vunpack.c.l.b16 %v77
  %v410 = vunpack.c.l.b16 %v78
  %v411 = vunpack.c.l.b16 %v79
  %v412 = vpack.c.b16 %v401, %v400
  %v413 = vpack.c.b16 %v403, %v402
  %v414 = vpack.c.b16 %v405, %v404
  %v415 = vpack.c.b16 %v407, %v406
  %v416 = vpack.c.b16 %v409, %v408
  %v417 = vpack.c.b16 %v411, %v410
  %vm424 = vcmask 785408
  %v426 = vsel %vm424, %v380, 0
  %v429 = vsel %vm424, %v381, 0
  %431 = vmatprep.subr.bf16.mxu0 0
  %432 = vmatpush1.bf16.msra.mxu0 0
  %433 = vmatprep.subr.bf16.mxu0 0
  %434 = vmatpush1.bf16.msra.mxu0 0
  %435 = vmatprep.subr.bf16.mxu0 0
  %436 = vmatpush1.bf16.msra.mxu0 %v417
  %437 = vmatprep.subr.bf16.mxu0 0
  %438 = vmatpush1.bf16.msra.mxu0 %v416
  %439 = vmatprep.subr.bf16.mxu0 0
  %440 = vmatpush1.bf16.msra.mxu0 %v415
  %441 = vmatprep.subr.bf16.mxu0 0
  %442 = vmatpush1.bf16.msra.mxu0 %v414
  %443 = vmatprep.subr.bf16.mxu0 0
  %444 = vmatpush1.bf16.msra.mxu0 %v413
  %445 = vmatprep.subr.bf16.mxu0 0
  %446 = vmatpush1.bf16.msra.mxu0 %v412
  %447 = vmatprep.subr.bf16.mxu0 0
  %448 = vmatpush2.bf16.msra.mxu0 0
  %449 = vmatprep.subr.bf16.mxu0 0
  %450 = vmatpush2.bf16.msra.mxu0 0
  %451 = vmatprep.subr.bf16.mxu0 0
  %452 = vmatpush2.bf16.msra.mxu0 0
  %453 = vmatprep.subr.bf16.mxu0 0
  %454 = vmatpush2.bf16.msra.mxu0 0
  %455 = vmatprep.subr.bf16.mxu0 0
  %456 = vmatpush2.bf16.msra.mxu0 0
  %457 = vmatprep.subr.bf16.mxu0 0
  %458 = vmatpush2.bf16.msra.mxu0 0
  %459 = vmatprep.subr.bf16.mxu0 0
  %460 = vmatpush2.bf16.msra.mxu0 0
  %461 = vmatprep.subr.bf16.mxu0 0
  %462 = vmatpush2.bf16.msra.mxu0 0
  %463 = vmatprep.mubr.bf16.mxu0 0
  %464 = vmatmul.mubr.bf16.gmra.mxu0 %v426
  %v465 = vpop.f32.mrf.mxu0
  %v466 = vadd.f32 %v386, %v465
  %v467 = vpop.f32.mrf.mxu0
  %v468 = vpop.f32.mrf.mxu0
  %v469 = vadd.f32 %v386, %v468
  %v470 = vpop.f32.mrf.mxu0
  %471 = vmatprep.mubr.bf16.mxu0 0
  %472 = vmatmul.mubr.bf16.gmra.mxu0 %v429
  %v473 = vpop.f32.mrf.mxu0
  %v474 = vadd.f32 %v386, %v473
  %v475 = vpop.f32.mrf.mxu0
  %v476 = vpop.f32.mrf.mxu0
  %v477 = vadd.f32 %v386, %v476
  %v478 = vpop.f32.mrf.mxu0
  %479 = vdwg.mxu0
  %v480 = vmax.f32 %v466, 0.0
  %v481 = vmax.f32 %v469, 0.0
  %v482 = vmax.f32 %v474, 0.0
  %v483 = vmax.f32 %v477, 0.0
  %v484 = vsel %vm375, %v480, -inf
  %v485 = vsel %vm375, %v481, -inf
  %v486 = vmax.f32 %v484, %v485
  %v487 = vrot.slane %v486, 4
  %v488 = vmax.f32 %v486, %v487
  %v489 = vrot.slane %v488, 2
  %v490 = vmax.f32 %v488, %v489
  %v491 = vrot.slane %v490, 1
  %v492 = vmax.f32 %v490, %v491
  %v493 = vsel %vm375, %v482, -inf
  %v494 = vsel %vm375, %v483, -inf
  %v495 = vmax.f32 %v493, %v494
  %v496 = vrot.slane %v495, 4
  %v497 = vmax.f32 %v495, %v496
  %v498 = vrot.slane %v497, 2
  %v499 = vmax.f32 %v497, %v498
  %v500 = vrot.slane %v499, 1
  %v501 = vmax.f32 %v499, %v500
  %v502 = vld [vmem:[%s2] sm:$0xf]
  %v503 = vld [vmem:[%s2 + $0x4] sm:$0xf]
  %v504 = vunpack.c.l.bf16 %v502
  %v505 = vunpack.c.l.bf16 %v503
  %vm506 = vcmp.lt.s32.totalorder %v90, 0
  %v507 = vsub.s32 0, %v90
  %v508 = vsel %vm506, %v507, %v90
  %v509 = vshrl.u32 %v508, 3
  %v510 = vand.u32 %v508, 7
  %v511 = vsub.s32 0, %v510
  %v512 = vsel %vm506, %v511, %v510
  %vm513 = vcmp.lt.s32.totalorder %v91, 0
  %v514 = vsub.s32 0, %v91
  %v515 = vsel %vm513, %v514, %v91
  %v516 = vshrl.u32 %v515, 3
  %v517 = vand.u32 %v515, 7
  %v518 = vsub.s32 0, %v517
  %v519 = vsel %vm513, %v518, %v517
  %vm520 = vcmp.ne.s32.totalorder %v512, 0
  %vm521 = vcmp.ne.s32.totalorder %v519, 0
  %vm522 = vcmp.lt.s32.totalorder %v512, 0
  %vm523 = vcmp.lt.s32.totalorder %v519, 0
  %vm524 = vmand %vm522, %vm520
  %vm525 = vmand %vm523, %vm521
  %v526 = vadd.s32 %v512, 8
  %v527 = vadd.s32 %v519, 8
  %v528 = vsel %vm524, %v526, %v512
  %v529 = vsel %vm525, %v527, %v519
  %vm530 = vcmp.eq.s32.totalorder %v528, 0
  %vm531 = vcmp.eq.s32.totalorder %v529, 0
  %vm532 = vcmp.eq.s32.totalorder %v528, 7
  %vm533 = vcmp.eq.s32.totalorder %v529, 7
  %v534 = vrot.slane %v504, 7
  %v535 = vrot.slane %v505, 7
  %v536 = vsel %vm154, %v534, %v535
  %v537 = vsel %vm154, %v535, %v534
  %v538 = vsel %vm530, 1, 0
  %v539 = vsel %vm531, 1, 0
  %vm540 = vcmp.eq.s32.totalorder %v538, 1
  %vm541 = vcmp.eq.s32.totalorder %v539, 1
  %v542 = vsel %vm540, 0.0, %v537
  %v543 = vsel %vm541, 0.0, %v536
  %v544 = vrot.slane %v504, 1
  %v545 = vrot.slane %v505, 1
  %v546 = vsel %vm175, %v544, %v545
  %v547 = vsel %vm175, %v545, %v544
  %v548 = vsel %vm532, 1, 0
  %v549 = vsel %vm533, 1, 0
  %vm550 = vcmp.eq.s32.totalorder %v548, 1
  %vm551 = vcmp.eq.s32.totalorder %v549, 1
  %v552 = vsel %vm550, 0.0, %v546
  %v553 = vsel %vm551, 0.0, %v547
  %556 = vrot.lane.b32.xlu0 %v504, 5
  %v557 = vpop.permute.xlu0 %556
  %558 = vrot.lane.b32.xlu0 %v505, 5
  %v559 = vpop.permute.xlu0 %558
  %564 = vrot.lane.b32.xlu0 %v552, 10
  %v565 = vpop.permute.xlu0 %564
  %566 = vrot.lane.b32.xlu0 %v553, 10
  %v567 = vpop.permute.xlu0 %566
  %v570 = vsel %vm224, %v542, %v557
  %v571 = vsel %vm224, %v543, %v559
  %v572 = vsel %vm229, %v570, %v565
  %v573 = vsel %vm229, %v571, %v567
  %v574 = vpack.c.bf16 %v573, %v572
  %v576 = vsel %vm247, %v574, 0
  %578 = vmatprep.subr.bf16.mxu0 0
  %579 = vmatpush1.bf16.msra.mxu0 0
  %580 = vmatprep.subr.bf16.mxu0 0
  %581 = vmatpush1.bf16.msra.mxu0 0
  %582 = vmatprep.subr.bf16.mxu0 0
  %583 = vmatpush1.bf16.msra.mxu0 0
  %584 = vmatprep.subr.bf16.mxu0 0
  %585 = vmatpush1.bf16.msra.mxu0 0
  %586 = vmatprep.subr.bf16.mxu0 0
  %587 = vmatpush1.bf16.msra.mxu0 0
  %588 = vmatprep.subr.bf16.mxu0 0
  %589 = vmatpush1.bf16.msra.mxu0 0
  %590 = vmatprep.subr.bf16.mxu0 0
  %591 = vmatpush1.bf16.msra.mxu0 0
  %592 = vmatprep.subr.bf16.mxu0 0
  %593 = vmatpush1.bf16.msra.mxu0 %v259
  %594 = vmatprep.subr.bf16.mxu0 0
  %595 = vmatpush2.bf16.msra.mxu0 0
  %596 = vmatprep.subr.bf16.mxu0 0
  %597 = vmatpush2.bf16.msra.mxu0 0
  %598 = vmatprep.subr.bf16.mxu0 0
  %599 = vmatpush2.bf16.msra.mxu0 0
  %600 = vmatprep.subr.bf16.mxu0 0
  %601 = vmatpush2.bf16.msra.mxu0 0
  %602 = vmatprep.subr.bf16.mxu0 0
  %603 = vmatpush2.bf16.msra.mxu0 0
  %604 = vmatprep.subr.bf16.mxu0 0
  %605 = vmatpush2.bf16.msra.mxu0 0
  %606 = vmatprep.subr.bf16.mxu0 0
  %607 = vmatpush2.bf16.msra.mxu0 0
  %608 = vmatprep.subr.bf16.mxu0 0
  %609 = vmatpush2.bf16.msra.mxu0 0
  %610 = vmatprep.mubr.bf16.mxu0 0
  %611 = vmatmul.mubr.bf16.gmra.mxu0 %v576
  %v612 = vpop.f32.mrf.mxu0
  %v613 = vadd.f32 %v240, %v612
  %v614 = vpop.f32.mrf.mxu0
  %v615 = vpop.f32.mrf.mxu0
  %v616 = vadd.f32 %v240, %v615
  %v617 = vpop.f32.mrf.mxu0
  %618 = vdwg.mxu0
  %v619 = vmax.f32 %v613, 0.0
  %v620 = vmax.f32 %v616, 0.0
  %v621 = vrot.slane %v619, 7
  %v622 = vrot.slane %v620, 7
  %v623 = vsel %vm154, %v621, %v622
  %v624 = vsel %vm154, %v622, %v621
  %v625 = vsel %vm540, 0.0, %v624
  %v626 = vsel %vm541, 0.0, %v623
  %v627 = vrot.slane %v619, 1
  %v628 = vrot.slane %v620, 1
  %v629 = vsel %vm175, %v627, %v628
  %v630 = vsel %vm175, %v628, %v627
  %v631 = vsel %vm550, 0.0, %v629
  %v632 = vsel %vm551, 0.0, %v630
  %635 = vrot.lane.b32.xlu0 %v619, 32
  %v636 = vpop.permute.xlu0 %635
  %637 = vrot.lane.b32.xlu0 %v620, 32
  %v638 = vpop.permute.xlu0 %637
  %643 = vrot.lane.b32.xlu0 %v631, 64
  %v644 = vpop.permute.xlu0 %643
  %645 = vrot.lane.b32.xlu0 %v632, 64
  %v646 = vpop.permute.xlu0 %645
  %v649 = vsel %vm370, %v625, %v636
  %v650 = vsel %vm370, %v626, %v638
  %v651 = vsel %vm375, %v649, %v644
  %v652 = vsel %vm375, %v650, %v646
  %v653 = vpack.c.bf16 %v652, %v651
  %v655 = vsel %vm424, %v653, 0
  %657 = vmatprep.subr.bf16.mxu0 0
  %658 = vmatpush1.bf16.msra.mxu0 0
  %659 = vmatprep.subr.bf16.mxu0 0
  %660 = vmatpush1.bf16.msra.mxu0 0
  %661 = vmatprep.subr.bf16.mxu0 0
  %662 = vmatpush1.bf16.msra.mxu0 %v417
  %663 = vmatprep.subr.bf16.mxu0 0
  %664 = vmatpush1.bf16.msra.mxu0 %v416
  %665 = vmatprep.subr.bf16.mxu0 0
  %666 = vmatpush1.bf16.msra.mxu0 %v415
  %667 = vmatprep.subr.bf16.mxu0 0
  %668 = vmatpush1.bf16.msra.mxu0 %v414
  %669 = vmatprep.subr.bf16.mxu0 0
  %670 = vmatpush1.bf16.msra.mxu0 %v413
  %671 = vmatprep.subr.bf16.mxu0 0
  %672 = vmatpush1.bf16.msra.mxu0 %v412
  %673 = vmatprep.subr.bf16.mxu0 0
  %674 = vmatpush2.bf16.msra.mxu0 0
  %675 = vmatprep.subr.bf16.mxu0 0
  %676 = vmatpush2.bf16.msra.mxu0 0
  %677 = vmatprep.subr.bf16.mxu0 0
  %678 = vmatpush2.bf16.msra.mxu0 0
  %679 = vmatprep.subr.bf16.mxu0 0
  %680 = vmatpush2.bf16.msra.mxu0 0
  %681 = vmatprep.subr.bf16.mxu0 0
  %682 = vmatpush2.bf16.msra.mxu0 0
  %683 = vmatprep.subr.bf16.mxu0 0
  %684 = vmatpush2.bf16.msra.mxu0 0
  %685 = vmatprep.subr.bf16.mxu0 0
  %686 = vmatpush2.bf16.msra.mxu0 0
  %687 = vmatprep.subr.bf16.mxu0 0
  %688 = vmatpush2.bf16.msra.mxu0 0
  %689 = vmatprep.mubr.bf16.mxu0 0
  %690 = vmatmul.mubr.bf16.gmra.mxu0 %v655
  %v691 = vpop.f32.mrf.mxu0
  %v692 = vadd.f32 %v386, %v691
  %v693 = vpop.f32.mrf.mxu0
  %v694 = vpop.f32.mrf.mxu0
  %v695 = vadd.f32 %v386, %v694
  %v696 = vpop.f32.mrf.mxu0
  %697 = vdwg.mxu0
  %v698 = vmax.f32 %v692, 0.0
  %v699 = vmax.f32 %v695, 0.0
  %v700 = vsel %vm375, %v698, -inf
  %v701 = vrot.slane %v700, 4
  %v702 = vmax.f32 %v700, %v701
  %v703 = vrot.slane %v702, 2
  %v704 = vmax.f32 %v702, %v703
  %v705 = vrot.slane %v704, 1
  %v706 = vmax.f32 %v704, %v705
  %v707 = vsel %vm375, %v699, -inf
  %v708 = vrot.slane %v707, 4
  %v709 = vmax.f32 %v707, %v708
  %v710 = vrot.slane %v709, 2
  %v711 = vmax.f32 %v709, %v710
  %v712 = vrot.slane %v711, 1
  %v713 = vmax.f32 %v711, %v712
  %v714 = vld [vmem:[%s0] sm:$0x1]
  %v715 = vld [vmem:[%s7] sm:$0xf]
  %v716 = vld [vmem:[%s7 + $0x4] sm:$0xf]
  %v717 = vld [vmem:[%s7 + $0x8] sm:$0xf]
  %v718 = vld [vmem:[%s7 + $0xc] sm:$0xf]
  %v719 = vld [vmem:[%s7 + $0x10] sm:$0xf]
  %v720 = vld [vmem:[%s7 + $0x14] sm:$0xf]
  %v721 = vld [vmem:[%s7 + $0x18] sm:$0xf]
  %v722 = vld [vmem:[%s7 + $0x1c] sm:$0xf]
  %v723 = vld [vmem:[%s7 + $0x20] sm:$0xf]
  %v724 = vld [vmem:[%s7 + $0x24] sm:$0xf]
  %v725 = vld [vmem:[%s7 + $0x28] sm:$0xf]
  %v726 = vld [vmem:[%s7 + $0x2c] sm:$0xf]
  %v727 = vld [vmem:[%s7 + $0x30] sm:$0xf]
  %v728 = vld [vmem:[%s7 + $0x34] sm:$0xf]
  %v729 = vld [vmem:[%s7 + $0x38] sm:$0xf]
  %v730 = vld [vmem:[%s7 + $0x3c] sm:$0xf]
  %v731 = vpack.c.bf16 %v492, %v492
  %v732 = vpack.c.bf16 %v501, %v501
  %v733 = vld [vmem:[%s8] sm:$0xf]
  %v734 = vld [vmem:[%s8 + $0x4] sm:$0xf]
  %v735 = vld [vmem:[%s8 + $0x8] sm:$0xf]
  %v736 = vld [vmem:[%s8 + $0xc] sm:$0xf]
  %v737 = vld [vmem:[%s8 + $0x10] sm:$0xf]
  %v738 = vld [vmem:[%s8 + $0x14] sm:$0xf]
  %v739 = vld [vmem:[%s8 + $0x18] sm:$0xf]
  %v740 = vld [vmem:[%s8 + $0x1c] sm:$0xf]
  %v743 = vunpack.c.l.b16 %v731
  %v744 = vunpack.c.l.b16 %v732
  %vm745 = vcmask 1041409
  %v746 = vsel %vm745, %v744, %v743
  %v747 = vpack.c.b16 %v746, %v746
  %v756 = vunpack.c.l.b16 %v733
  %v757 = vunpack.c.l.b16 %v734
  %v758 = vunpack.c.l.b16 %v735
  %v759 = vunpack.c.l.b16 %v736
  %v760 = vunpack.c.l.b16 %v737
  %v761 = vunpack.c.l.b16 %v738
  %v762 = vunpack.c.l.b16 %v739
  %v763 = vunpack.c.l.b16 %v740
  %v764 = vpack.c.b16 %v757, %v756
  %v765 = vpack.c.b16 %v759, %v758
  %v766 = vpack.c.b16 %v761, %v760
  %v767 = vpack.c.b16 %v763, %v762
  %v773 = vsel %vm375, %v747, 0
  %775 = vmatprep.subr.bf16.mxu0 0
  %776 = vmatpush1.bf16.msra.mxu0 0
  %777 = vmatprep.subr.bf16.mxu0 0
  %778 = vmatpush1.bf16.msra.mxu0 0
  %779 = vmatprep.subr.bf16.mxu0 0
  %780 = vmatpush1.bf16.msra.mxu0 0
  %781 = vmatprep.subr.bf16.mxu0 0
  %782 = vmatpush1.bf16.msra.mxu0 0
  %783 = vmatprep.subr.bf16.mxu0 0
  %784 = vmatpush1.bf16.msra.mxu0 %v767
  %785 = vmatprep.subr.bf16.mxu0 0
  %786 = vmatpush1.bf16.msra.mxu0 %v766
  %787 = vmatprep.subr.bf16.mxu0 0
  %788 = vmatpush1.bf16.msra.mxu0 %v765
  %789 = vmatprep.subr.bf16.mxu0 0
  %790 = vmatpush1.bf16.msra.mxu0 %v764
  %791 = vmatprep.subr.bf16.mxu0 0
  %792 = vmatpush2.bf16.msra.mxu0 0
  %793 = vmatprep.subr.bf16.mxu0 0
  %794 = vmatpush2.bf16.msra.mxu0 0
  %795 = vmatprep.subr.bf16.mxu0 0
  %796 = vmatpush2.bf16.msra.mxu0 0
  %797 = vmatprep.subr.bf16.mxu0 0
  %798 = vmatpush2.bf16.msra.mxu0 0
  %799 = vmatprep.subr.bf16.mxu0 0
  %800 = vmatpush2.bf16.msra.mxu0 0
  %801 = vmatprep.subr.bf16.mxu0 0
  %802 = vmatpush2.bf16.msra.mxu0 0
  %803 = vmatprep.subr.bf16.mxu0 0
  %804 = vmatpush2.bf16.msra.mxu0 0
  %805 = vmatprep.subr.bf16.mxu0 0
  %806 = vmatpush2.bf16.msra.mxu0 0
  %807 = vmatprep.mubr.bf16.mxu0 0
  %808 = vmatmul.mubr.bf16.gmra.mxu0 %v773
  %v809 = vpop.f32.mrf.mxu0
  %v810 = vadd.f32 0.0, %v809
  %v811 = vpop.f32.mrf.mxu0
  %v812 = vpop.f32.mrf.mxu0
  %v813 = vpop.f32.mrf.mxu0
  %814 = vdwg.mxu0
  %v831 = vunpack.c.l.b16 %v715
  %v832 = vunpack.c.l.b16 %v716
  %v833 = vunpack.c.l.b16 %v717
  %v834 = vunpack.c.l.b16 %v718
  %v835 = vunpack.c.l.b16 %v719
  %v836 = vunpack.c.l.b16 %v720
  %v837 = vunpack.c.l.b16 %v721
  %v838 = vunpack.c.l.b16 %v722
  %v839 = vunpack.c.l.b16 %v723
  %v840 = vunpack.c.l.b16 %v724
  %v841 = vunpack.c.l.b16 %v725
  %v842 = vunpack.c.l.b16 %v726
  %v843 = vunpack.c.l.b16 %v727
  %v844 = vunpack.c.l.b16 %v728
  %v845 = vunpack.c.l.b16 %v729
  %v846 = vunpack.c.l.b16 %v730
  %v847 = vpack.c.b16 %v832, %v831
  %v848 = vpack.c.b16 %v834, %v833
  %v849 = vpack.c.b16 %v836, %v835
  %v850 = vpack.c.b16 %v838, %v837
  %v851 = vpack.c.b16 %v840, %v839
  %v852 = vpack.c.b16 %v842, %v841
  %v853 = vpack.c.b16 %v844, %v843
  %v854 = vpack.c.b16 %v846, %v845
  %863 = vmatprep.subr.bf16.mxu0 0
  %864 = vmatpush1.bf16.msra.mxu0 %v854
  %865 = vmatprep.subr.bf16.mxu0 0
  %866 = vmatpush1.bf16.msra.mxu0 %v853
  %867 = vmatprep.subr.bf16.mxu0 0
  %868 = vmatpush1.bf16.msra.mxu0 %v852
  %869 = vmatprep.subr.bf16.mxu0 0
  %870 = vmatpush1.bf16.msra.mxu0 %v851
  %871 = vmatprep.subr.bf16.mxu0 0
  %872 = vmatpush1.bf16.msra.mxu0 %v850
  %873 = vmatprep.subr.bf16.mxu0 0
  %874 = vmatpush1.bf16.msra.mxu0 %v849
  %875 = vmatprep.subr.bf16.mxu0 0
  %876 = vmatpush1.bf16.msra.mxu0 %v848
  %877 = vmatprep.subr.bf16.mxu0 0
  %878 = vmatpush1.bf16.msra.mxu0 %v847
  %879 = vmatprep.subr.bf16.mxu0 0
  %880 = vmatpush2.bf16.msra.mxu0 0
  %881 = vmatprep.subr.bf16.mxu0 0
  %882 = vmatpush2.bf16.msra.mxu0 0
  %883 = vmatprep.subr.bf16.mxu0 0
  %884 = vmatpush2.bf16.msra.mxu0 0
  %885 = vmatprep.subr.bf16.mxu0 0
  %886 = vmatpush2.bf16.msra.mxu0 0
  %887 = vmatprep.subr.bf16.mxu0 0
  %888 = vmatpush2.bf16.msra.mxu0 0
  %889 = vmatprep.subr.bf16.mxu0 0
  %890 = vmatpush2.bf16.msra.mxu0 0
  %891 = vmatprep.subr.bf16.mxu0 0
  %892 = vmatpush2.bf16.msra.mxu0 0
  %893 = vmatprep.subr.bf16.mxu0 0
  %894 = vmatpush2.bf16.msra.mxu0 0
  %895 = vmatprep.mubr.bf16.mxu0 0
  %896 = vmatmul.mubr.bf16.gmra.mxu0 %v714
  %v897 = vpop.f32.mrf.mxu0
  %v898 = vadd.f32 %v810, %v897
  %v899 = vpop.f32.mrf.mxu0
  %v900 = vpop.f32.mrf.mxu0
  %v901 = vpop.f32.mrf.mxu0
  %902 = vdwg.mxu0
  %v903 = vpack.c.bf16 %v706, %v706
  %v904 = vpack.c.bf16 %v713, %v713
  %v905 = vld [vmem:[%s9] sm:$0xf]
  %v906 = vld [vmem:[%s9 + $0x4] sm:$0xf]
  %v907 = vld [vmem:[%s9 + $0x8] sm:$0xf]
  %v908 = vld [vmem:[%s9 + $0xc] sm:$0xf]
  %v909 = vld [vmem:[%s9 + $0x10] sm:$0xf]
  %v910 = vld [vmem:[%s9 + $0x14] sm:$0xf]
  %v911 = vld [vmem:[%s9 + $0x18] sm:$0xf]
  %v912 = vld [vmem:[%s9 + $0x1c] sm:$0xf]
  %v915 = vunpack.c.l.b16 %v903
  %v916 = vunpack.c.l.b16 %v904
  %v917 = vsel %vm745, %v916, %v915
  %v918 = vpack.c.b16 %v917, %v917
  %v927 = vunpack.c.l.b16 %v905
  %v928 = vunpack.c.l.b16 %v906
  %v929 = vunpack.c.l.b16 %v907
  %v930 = vunpack.c.l.b16 %v908
  %v931 = vunpack.c.l.b16 %v909
  %v932 = vunpack.c.l.b16 %v910
  %v933 = vunpack.c.l.b16 %v911
  %v934 = vunpack.c.l.b16 %v912
  %v935 = vpack.c.b16 %v928, %v927
  %v936 = vpack.c.b16 %v930, %v929
  %v937 = vpack.c.b16 %v932, %v931
  %v938 = vpack.c.b16 %v934, %v933
  %v944 = vsel %vm375, %v918, 0
  %946 = vmatprep.subr.bf16.mxu0 0
  %947 = vmatpush1.bf16.msra.mxu0 0
  %948 = vmatprep.subr.bf16.mxu0 0
  %949 = vmatpush1.bf16.msra.mxu0 0
  %950 = vmatprep.subr.bf16.mxu0 0
  %951 = vmatpush1.bf16.msra.mxu0 0
  %952 = vmatprep.subr.bf16.mxu0 0
  %953 = vmatpush1.bf16.msra.mxu0 0
  %954 = vmatprep.subr.bf16.mxu0 0
  %955 = vmatpush1.bf16.msra.mxu0 %v938
  %956 = vmatprep.subr.bf16.mxu0 0
  %957 = vmatpush1.bf16.msra.mxu0 %v937
  %958 = vmatprep.subr.bf16.mxu0 0
  %959 = vmatpush1.bf16.msra.mxu0 %v936
  %960 = vmatprep.subr.bf16.mxu0 0
  %961 = vmatpush1.bf16.msra.mxu0 %v935
  %962 = vmatprep.subr.bf16.mxu0 0
  %963 = vmatpush2.bf16.msra.mxu0 0
  %964 = vmatprep.subr.bf16.mxu0 0
  %965 = vmatpush2.bf16.msra.mxu0 0
  %966 = vmatprep.subr.bf16.mxu0 0
  %967 = vmatpush2.bf16.msra.mxu0 0
  %968 = vmatprep.subr.bf16.mxu0 0
  %969 = vmatpush2.bf16.msra.mxu0 0
  %970 = vmatprep.subr.bf16.mxu0 0
  %971 = vmatpush2.bf16.msra.mxu0 0
  %972 = vmatprep.subr.bf16.mxu0 0
  %973 = vmatpush2.bf16.msra.mxu0 0
  %974 = vmatprep.subr.bf16.mxu0 0
  %975 = vmatpush2.bf16.msra.mxu0 0
  %976 = vmatprep.subr.bf16.mxu0 0
  %977 = vmatpush2.bf16.msra.mxu0 0
  %978 = vmatprep.mubr.bf16.mxu0 0
  %979 = vmatmul.mubr.bf16.gmra.mxu0 %v944
  %v980 = vpop.f32.mrf.mxu0
  %v981 = vadd.f32 0.0, %v980
  %v982 = vpop.f32.mrf.mxu0
  %v983 = vpop.f32.mrf.mxu0
  %v984 = vpop.f32.mrf.mxu0
  %985 = vdwg.mxu0
  %v986 = vadd.f32 %v898, %v981
  %v987 = vld [vmem:[%s10] sm:$0x1]
  %v989 = vlaneseq
  %v990 = vshrl.u32 %v989, 7
  %v991 = vsub.s32 0, %v990
  %v992 = vrot.slane %v987, %v991
  %v994 = vadd.f32 %v986, %v992
  %v995 = vld [vmem:[%s11] sm:$0x1]
  %v996 = vld [vmem:[%s12] sm:$0x1]
  %vm997 = vcmask 517120
  %v998 = vsel %vm997, %v994, 0.0
  %999 = vadd.xlane.f32.xlu0 %v998
  %v1000 = vpop.xlane.xlu0 %999
  %v1001 = vrcp.pop 64.0
  %v1002 = vmul.f32 %v1000, %v1001
  %v1003 = vsub.f32 %v994, %v1002
  %v1004 = vmul.f32 %v1003, %v1003
  %v1005 = vsel %vm997, %v1004, 0.0
  %1006 = vadd.xlane.f32.xlu0 %v1005
  %v1007 = vpop.xlane.xlu0 %1006
  %v1008 = vmul.f32 %v1007, %v1001
  %v1009 = vadd.f32 %v1008, 1e-05
  %v1010 = vrsqrt.pop %v1009
  %v1011 = vmul.f32 %v1003, %v1010
  %v1013 = vlaneseq
  %v1014 = vshrl.u32 %v1013, 7
  %v1015 = vsub.s32 0, %v1014
  %v1016 = vrot.slane %v995, %v1015
  %v1018 = vmul.f32 %v1011, %v1016
  %v1020 = vlaneseq
  %v1021 = vshrl.u32 %v1020, 7
  %v1022 = vsub.s32 0, %v1021
  %v1023 = vrot.slane %v996, %v1022
  %v1025 = vadd.f32 %v1018, %v1023
  %v1026 = vmax.f32 %v1025, 0.0
  %v1027 = vpack.c.bf16 %v1026, %v1026
  %v1028 = vld [vmem:[%s13] sm:$0xf]
  %v1029 = vld [vmem:[%s13 + $0x4] sm:$0xf]
  %v1030 = vld [vmem:[%s13 + $0x8] sm:$0xf]
  %v1031 = vld [vmem:[%s13 + $0xc] sm:$0xf]
  %v1032 = vld [vmem:[%s13 + $0x10] sm:$0xf]
  %v1033 = vld [vmem:[%s13 + $0x14] sm:$0xf]
  %v1034 = vld [vmem:[%s13 + $0x18] sm:$0xf]
  %v1035 = vld [vmem:[%s13 + $0x1c] sm:$0xf]
  %v1036 = vld [vmem:[%s14] sm:$0x1]
  %v1038 = vlaneseq
  %v1039 = vshrl.u32 %v1038, 7
  %v1040 = vsub.s32 0, %v1039
  %v1041 = vrot.slane %v1036, %v1040
  %v1051 = vunpack.c.l.b16 %v1028
  %v1052 = vunpack.c.l.b16 %v1029
  %v1053 = vunpack.c.l.b16 %v1030
  %v1054 = vunpack.c.l.b16 %v1031
  %v1055 = vunpack.c.l.b16 %v1032
  %v1056 = vunpack.c.l.b16 %v1033
  %v1057 = vunpack.c.l.b16 %v1034
  %v1058 = vunpack.c.l.b16 %v1035
  %v1059 = vpack.c.b16 %v1052, %v1051
  %v1060 = vpack.c.b16 %v1054, %v1053
  %v1061 = vpack.c.b16 %v1056, %v1055
  %v1062 = vpack.c.b16 %v1058, %v1057
  %v1068 = vsel %vm375, %v1027, 0
  %1070 = vmatprep.subr.bf16.mxu0 0
  %1071 = vmatpush1.bf16.msra.mxu0 0
  %1072 = vmatprep.subr.bf16.mxu0 0
  %1073 = vmatpush1.bf16.msra.mxu0 0
  %1074 = vmatprep.subr.bf16.mxu0 0
  %1075 = vmatpush1.bf16.msra.mxu0 0
  %1076 = vmatprep.subr.bf16.mxu0 0
  %1077 = vmatpush1.bf16.msra.mxu0 0
  %1078 = vmatprep.subr.bf16.mxu0 0
  %1079 = vmatpush1.bf16.msra.mxu0 %v1062
  %1080 = vmatprep.subr.bf16.mxu0 0
  %1081 = vmatpush1.bf16.msra.mxu0 %v1061
  %1082 = vmatprep.subr.bf16.mxu0 0
  %1083 = vmatpush1.bf16.msra.mxu0 %v1060
  %1084 = vmatprep.subr.bf16.mxu0 0
  %1085 = vmatpush1.bf16.msra.mxu0 %v1059
  %1086 = vmatprep.subr.bf16.mxu0 0
  %1087 = vmatpush2.bf16.msra.mxu0 0
  %1088 = vmatprep.subr.bf16.mxu0 0
  %1089 = vmatpush2.bf16.msra.mxu0 0
  %1090 = vmatprep.subr.bf16.mxu0 0
  %1091 = vmatpush2.bf16.msra.mxu0 0
  %1092 = vmatprep.subr.bf16.mxu0 0
  %1093 = vmatpush2.bf16.msra.mxu0 0
  %1094 = vmatprep.subr.bf16.mxu0 0
  %1095 = vmatpush2.bf16.msra.mxu0 0
  %1096 = vmatprep.subr.bf16.mxu0 0
  %1097 = vmatpush2.bf16.msra.mxu0 0
  %1098 = vmatprep.subr.bf16.mxu0 0
  %1099 = vmatpush2.bf16.msra.mxu0 0
  %1100 = vmatprep.subr.bf16.mxu0 0
  %1101 = vmatpush2.bf16.msra.mxu0 0
  %1102 = vmatprep.mubr.bf16.mxu0 0
  %1103 = vmatmul.mubr.bf16.gmra.mxu0 %v1068
  %v1104 = vpop.f32.mrf.mxu0
  %v1105 = vadd.f32 %v1041, %v1104
  %v1106 = vpop.f32.mrf.mxu0
  %v1107 = vpop.f32.mrf.mxu0
  %v1108 = vpop.f32.mrf.mxu0
  %1109 = vdwg.mxu0
  %v1110 = vld [vmem:[%s15] sm:$0x1]
  %v1111 = vld [vmem:[%s16] sm:$0x1]
  %vm1112 = vcmask 254976
  %v1113 = vsel %vm1112, %v1105, 0.0
  %1114 = vadd.xlane.f32.xlu0 %v1113
  %v1115 = vpop.xlane.xlu0 %1114
  %v1116 = vrcp.pop 32.0
  %v1117 = vmul.f32 %v1115, %v1116
  %v1118 = vsub.f32 %v1105, %v1117
  %v1119 = vmul.f32 %v1118, %v1118
  %v1120 = vsel %vm1112, %v1119, 0.0
  %1121 = vadd.xlane.f32.xlu0 %v1120
  %v1122 = vpop.xlane.xlu0 %1121
  %v1123 = vmul.f32 %v1122, %v1116
  %v1124 = vadd.f32 %v1123, 1e-05
  %v1125 = vrsqrt.pop %v1124
  %v1126 = vmul.f32 %v1118, %v1125
  %v1128 = vlaneseq
  %v1129 = vshrl.u32 %v1128, 7
  %v1130 = vsub.s32 0, %v1129
  %v1131 = vrot.slane %v1110, %v1130
  %v1133 = vmul.f32 %v1126, %v1131
  %v1135 = vlaneseq
  %v1136 = vshrl.u32 %v1135, 7
  %v1137 = vsub.s32 0, %v1136
  %v1138 = vrot.slane %v1111, %v1137
  %v1140 = vadd.f32 %v1133, %v1138
  %v1141 = vmax.f32 %v1140, 0.0
  %v1142 = vld [vmem:[%s17] sm:$0x1]
  %v1144 = vlaneseq
  %v1145 = vshrl.u32 %v1144, 7
  %v1146 = vsub.s32 0, %v1145
  %v1147 = vrot.slane %v1142, %v1146
  %v1149 = vmul.f32 %v1141, %v1147
  %v1150 = vsel %vm1112, %v1149, 0.0
  %1151 = vadd.xlane.f32.xlu0 %v1150
  %v1152 = vpop.xlane.xlu0 %1151
  %v1153 = vld [vmem:[#allocation2] sm:$0x1]
  %v1155 = vlaneseq
  %v1156 = vshrl.u32 %v1155, 7
  %v1157 = vsub.s32 0, %v1156
  %v1158 = vrot.slane %v1153, %v1157
  %v1160 = vadd.f32 %v1152, %v1158
  %v1161 = vxor.u32 %v1160, 2147483648
  %v1162 = vmul.f32 %v1161, 1.442695
  %v1163 = vpow.pop %v1162
  %v1164 = vadd.f32 %v1163, 1.0
  %v1165 = vrcp.pop %v1164
  %v1166 = vmul.f32 1.0, %v1165
  %vm1167 = vcmask 1024
  %1168 = vst.msk [vmem:[%s19] sm:$0x3] %vm1167, %v1166
  // Predicated region
  $region78: #{mhc_peptide_forward.1} parent=0 // pred_check
    _
  $region79: #{mhc_peptide_forward.1} parent=0 // pred_check_branch
    %1170 = sbr.rel (0) target = $region81
  $region80: #{mhc_peptide_forward.1} parent=0 // pred_region
    _
  $region81: #{mhc_peptide_forward.1} parent=0 // pred_fallthru
    _
  // Predicated region
  $region82: #{mhc_peptide_forward.1} parent=0 // pred_check
    _
  $region83: #{mhc_peptide_forward.1} parent=0 // pred_check_branch
    %1172 = sbr.rel (0) target = $region85
  $region84: #{mhc_peptide_forward.1} parent=0 // pred_region
    _
  $region85: #{mhc_peptide_forward.1} parent=0 // pred_fallthru
    _

// kernel: mhc_peptide_forward.1
$region0: #{mhc_peptide_forward.1}
  #allocation0 [shape = 'u32[]', space=smem, size = 0x4, offset = 0x4, fixed_abs, tag = 'smem constant byte address 0x4 - core index']
  #allocation1 [shape = 'u32[144,128]{1,0:T(1,128)}', space=vmem, size = 0x12000, scoped, tag = 'internal scratch']
  #allocation2 [shape = 'f32[1,1]{1,0:T(1,128)S(1)}', space=vmem, size = 0x200, scoped, tag = 'scoped memory for mhc_peptide_forward.1']
  %s0 = inlined_call_operand.vmem [shape: bf16[2,128], index: 0, kind: input, shape index: {}]
  %s1 = inlined_call_operand.vmem [shape: bf16[32,5], index: 1, kind: input, shape index: {}]
  %s2 = inlined_call_operand.vmem [shape: bf16[16,5], index: 2, kind: input, shape index: {}]
  %s3 = inlined_call_operand.vmem [shape: bf16[15,32], index: 3, kind: input, shape index: {}]
  %s4 = inlined_call_operand.vmem [shape: f32[1,32], index: 4, kind: input, shape index: {}]
  %s5 = inlined_call_operand.vmem [shape: bf16[96,64], index: 5, kind: input, shape index: {}]
  %s6 = inlined_call_operand.vmem [shape: f32[1,64], index: 6, kind: input, shape index: {}]
  %s7 = inlined_call_operand.vmem [shape: bf16[128,64], index: 7, kind: input, shape index: {}]
  %s8 = inlined_call_operand.vmem [shape: bf16[64,64], index: 8, kind: input, shape index: {}]
  %s9 = inlined_call_operand.vmem [shape: bf16[64,64], index: 9, kind: input, shape index: {}]
  %s10 = inlined_call_operand.vmem [shape: f32[1,64], index: 10, kind: input, shape index: {}]
  %s11 = inlined_call_operand.vmem [shape: f32[1,64], index: 11, kind: input, shape index: {}]
  %s12 = inlined_call_operand.vmem [shape: f32[1,64], index: 12, kind: input, shape index: {}]
  %s13 = inlined_call_operand.vmem [shape: bf16[64,32], index: 13, kind: input, shape index: {}]
  %s14 = inlined_call_operand.vmem [shape: f32[1,32], index: 14, kind: input, shape index: {}]
  %s15 = inlined_call_operand.vmem [shape: f32[1,32], index: 15, kind: input, shape index: {}]
  %s16 = inlined_call_operand.vmem [shape: f32[1,32], index: 16, kind: input, shape index: {}]
  %s17 = inlined_call_operand.vmem [shape: f32[1,32], index: 17, kind: input, shape index: {}]
  %s18 = inlined_call_operand.<no memory space> [shape: f32[1,1], index: 18, kind: input, shape index: {}]
  %s19 = inlined_call_operand.vmem [shape: f32[2,1], index: 19, kind: output, shape index: {}]
  %s20 = sld [smem:[#allocation0]]
  $region86: #{mhc_peptide_forward.1} parent=0
    _
  %s22 = ssub.s32 1, %s20
  %s23 = scalar_select 0, %s22, %s20
  %v24 = vstv %s18
  %25 = vst [vmem:[#allocation2] sm:$0x1] %v24
  // Predicated region
  $region2: #{mhc_peptide_forward.1} parent=0 // pred_check
    _
  $region3: #{mhc_peptide_forward.1} parent=0 // pred_check_branch
    %27 = sbr.rel (0) target = $region5
  $region4: #{mhc_peptide_forward.1} parent=0 // pred_region
    _
  $region5: #{mhc_peptide_forward.1} parent=0 // pred_fallthru
    _
  // Predicated region
  $region6: #{mhc_peptide_forward.1} parent=0 // pred_check
    _
  $region7: #{mhc_peptide_forward.1} parent=0 // pred_check_branch
    %29 = sbr.rel (0) target = $region9
  $region8: #{mhc_peptide_forward.1} parent=0 // pred_region
    _
  $region9: #{mhc_peptide_forward.1} parent=0 // pred_fallthru
    _
  // Predicated region
  $region10: #{mhc_peptide_forward.1} parent=0 // pred_check
    _
  $region11: #{mhc_peptide_forward.1} parent=0 // pred_check_branch
    %31 = sbr.rel (0) target = $region13
  $region12: #{mhc_peptide_forward.1} parent=0 // pred_region
    _
  $region13: #{mhc_peptide_forward.1} parent=0 // pred_fallthru
    _
  // Predicated region
  $region14: #{mhc_peptide_forward.1} parent=0 // pred_check
    _
  $region15: #{mhc_peptide_forward.1} parent=0 // pred_check_branch
    %33 = sbr.rel (0) target = $region17
  $region16: #{mhc_peptide_forward.1} parent=0 // pred_region
    _
  $region17: #{mhc_peptide_forward.1} parent=0 // pred_fallthru
    _
  // Predicated region
  $region18: #{mhc_peptide_forward.1} parent=0 // pred_check
    _
  $region19: #{mhc_peptide_forward.1} parent=0 // pred_check_branch
    %35 = sbr.rel (0) target = $region21
  $region20: #{mhc_peptide_forward.1} parent=0 // pred_region
    _
  $region21: #{mhc_peptide_forward.1} parent=0 // pred_fallthru
    _
  // Predicated region
  $region22: #{mhc_peptide_forward.1} parent=0 // pred_check
    _
  $region23: #{mhc_peptide_forward.1} parent=0 // pred_check_branch
    %37 = sbr.rel (0) target = $region25
  $region24: #{mhc_peptide_forward.1} parent=0 // pred_region
    _
  $region25: #{mhc_peptide_forward.1} parent=0 // pred_fallthru
    _
  // Predicated region
  $region26: #{mhc_peptide_forward.1} parent=0 // pred_check
    _
  $region27: #{mhc_peptide_forward.1} parent=0 // pred_check_branch
    %39 = sbr.rel (0) target = $region29
  $region28: #{mhc_peptide_forward.1} parent=0 // pred_region
    _
  $region29: #{mhc_peptide_forward.1} parent=0 // pred_fallthru
    _
  // Predicated region
  $region30: #{mhc_peptide_forward.1} parent=0 // pred_check
    _
  $region31: #{mhc_peptide_forward.1} parent=0 // pred_check_branch
    %41 = sbr.rel (0) target = $region33
  $region32: #{mhc_peptide_forward.1} parent=0 // pred_region
    _
  $region33: #{mhc_peptide_forward.1} parent=0 // pred_fallthru
    _
  // Predicated region
  $region34: #{mhc_peptide_forward.1} parent=0 // pred_check
    _
  $region35: #{mhc_peptide_forward.1} parent=0 // pred_check_branch
    %43 = sbr.rel (0) target = $region37
  $region36: #{mhc_peptide_forward.1} parent=0 // pred_region
    _
  $region37: #{mhc_peptide_forward.1} parent=0 // pred_fallthru
    _
  // Predicated region
  $region38: #{mhc_peptide_forward.1} parent=0 // pred_check
    _
  $region39: #{mhc_peptide_forward.1} parent=0 // pred_check_branch
    %45 = sbr.rel (0) target = $region41
  $region40: #{mhc_peptide_forward.1} parent=0 // pred_region
    _
  $region41: #{mhc_peptide_forward.1} parent=0 // pred_fallthru
    _
  // Predicated region
  $region42: #{mhc_peptide_forward.1} parent=0 // pred_check
    _
  $region43: #{mhc_peptide_forward.1} parent=0 // pred_check_branch
    %47 = sbr.rel (0) target = $region45
  $region44: #{mhc_peptide_forward.1} parent=0 // pred_region
    _
  $region45: #{mhc_peptide_forward.1} parent=0 // pred_fallthru
    _
  // Predicated region
  $region46: #{mhc_peptide_forward.1} parent=0 // pred_check
    _
  $region47: #{mhc_peptide_forward.1} parent=0 // pred_check_branch
    %49 = sbr.rel (0) target = $region49
  $region48: #{mhc_peptide_forward.1} parent=0 // pred_region
    _
  $region49: #{mhc_peptide_forward.1} parent=0 // pred_fallthru
    _
  // Predicated region
  $region50: #{mhc_peptide_forward.1} parent=0 // pred_check
    _
  $region51: #{mhc_peptide_forward.1} parent=0 // pred_check_branch
    %51 = sbr.rel (0) target = $region53
  $region52: #{mhc_peptide_forward.1} parent=0 // pred_region
    _
  $region53: #{mhc_peptide_forward.1} parent=0 // pred_fallthru
    _
  // Predicated region
  $region54: #{mhc_peptide_forward.1} parent=0 // pred_check
    _
  $region55: #{mhc_peptide_forward.1} parent=0 // pred_check_branch
    %53 = sbr.rel (0) target = $region57
  $region56: #{mhc_peptide_forward.1} parent=0 // pred_region
    _
  $region57: #{mhc_peptide_forward.1} parent=0 // pred_fallthru
    _
  // Predicated region
  $region58: #{mhc_peptide_forward.1} parent=0 // pred_check
    _
  $region59: #{mhc_peptide_forward.1} parent=0 // pred_check_branch
    %55 = sbr.rel (0) target = $region61
  $region60: #{mhc_peptide_forward.1} parent=0 // pred_region
    _
  $region61: #{mhc_peptide_forward.1} parent=0 // pred_fallthru
    _
  // Predicated region
  $region62: #{mhc_peptide_forward.1} parent=0 // pred_check
    _
  $region63: #{mhc_peptide_forward.1} parent=0 // pred_check_branch
    %57 = sbr.rel (0) target = $region65
  $region64: #{mhc_peptide_forward.1} parent=0 // pred_region
    _
  $region65: #{mhc_peptide_forward.1} parent=0 // pred_fallthru
    _
  // Predicated region
  $region66: #{mhc_peptide_forward.1} parent=0 // pred_check
    _
  $region67: #{mhc_peptide_forward.1} parent=0 // pred_check_branch
    %59 = sbr.rel (0) target = $region69
  $region68: #{mhc_peptide_forward.1} parent=0 // pred_region
    _
  $region69: #{mhc_peptide_forward.1} parent=0 // pred_fallthru
    _
  // Predicated region
  $region70: #{mhc_peptide_forward.1} parent=0 // pred_check
    _
  $region71: #{mhc_peptide_forward.1} parent=0 // pred_check_branch
    %61 = sbr.rel (0) target = $region73
  $region72: #{mhc_peptide_forward.1} parent=0 // pred_region
    _
  $region73: #{mhc_peptide_forward.1} parent=0 // pred_fallthru
    _
  // Predicated region
  $region74: #{mhc_peptide_forward.1} parent=0 // pred_check
    _
  $region75: #{mhc_peptide_forward.1} parent=0 // pred_check_branch
    %63 = sbr.rel (0) target = $region77
  $region76: #{mhc_peptide_forward.1} parent=0 // pred_region
    _
  $region77: #{mhc_peptide_forward.1} parent=0 // pred_fallthru
    _
  %v65 = vld [vmem:[%s3] sm:$0xf]
  %v66 = vld [vmem:[%s3 + $0x4] sm:$0xf]
  %v67 = vld [vmem:[%s4] sm:$0x1]
  %v68 = vld [vmem:[%s5] sm:$0xf]
  %v69 = vld [vmem:[%s5 + $0x4] sm:$0xf]
  %v70 = vld [vmem:[%s5 + $0x8] sm:$0xf]
  %v71 = vld [vmem:[%s5 + $0xc] sm:$0xf]
  %v72 = vld [vmem:[%s5 + $0x10] sm:$0xf]
  %v73 = vld [vmem:[%s5 + $0x14] sm:$0xf]
  %v74 = vld [vmem:[%s5 + $0x18] sm:$0xf]
  %v75 = vld [vmem:[%s5 + $0x1c] sm:$0xf]
  %v76 = vld [vmem:[%s5 + $0x20] sm:$0xf]
  %v77 = vld [vmem:[%s5 + $0x24] sm:$0xf]
  %v78 = vld [vmem:[%s5 + $0x28] sm:$0xf]
  %v79 = vld [vmem:[%s5 + $0x2c] sm:$0xf]
  %v80 = vld [vmem:[%s6] sm:$0x1]
  %v81 = vld [vmem:[%s1] sm:$0xf]
  %v82 = vld [vmem:[%s1 + $0x4] sm:$0xf]
  %v83 = vld [vmem:[%s1 + $0x8] sm:$0xf]
  %v84 = vld [vmem:[%s1 + $0xc] sm:$0xf]
  %v85 = vunpack.c.l.bf16 %v81
  %v86 = vunpack.c.l.bf16 %v82
  %v87 = vunpack.c.l.bf16 %v83
  %v88 = vunpack.c.l.bf16 %v84
  %v89 = vlaneseq
  %v90 = vshrl.u32 %v89, 7
  %v91 = vadd.s32 %v90, 8
  %v92 = vadd.s32 %v90, 16
  %v93 = vadd.s32 %v90, 24
  %vm94 = vcmp.lt.s32.totalorder %v90, 0
  %v95 = vsub.s32 0, %v90
  %v96 = vsel %vm94, %v95, %v90
  %v97 = vshrl.u32 %v96, 4
  %v98 = vand.u32 %v96, 15
  %v99 = vsub.s32 0, %v98
  %v100 = vsel %vm94, %v99, %v98
  %vm101 = vcmp.lt.s32.totalorder %v91, 0
  %v102 = vsub.s32 0, %v91
  %v103 = vsel %vm101, %v102, %v91
  %v104 = vshrl.u32 %v103, 4
  %v105 = vand.u32 %v103, 15
  %v106 = vsub.s32 0, %v105
  %v107 = vsel %vm101, %v106, %v105
  %vm108 = vcmp.lt.s32.totalorder %v92, 0
  %v109 = vsub.s32 0, %v92
  %v110 = vsel %vm108, %v109, %v92
  %v111 = vshrl.u32 %v110, 4
  %v112 = vand.u32 %v110, 15
  %v113 = vsub.s32 0, %v112
  %v114 = vsel %vm108, %v113, %v112
  %vm115 = vcmp.lt.s32.totalorder %v93, 0
  %v116 = vsub.s32 0, %v93
  %v117 = vsel %vm115, %v116, %v93
  %v118 = vshrl.u32 %v117, 4
  %v119 = vand.u32 %v117, 15
  %v120 = vsub.s32 0, %v119
  %v121 = vsel %vm115, %v120, %v119
  %vm122 = vcmp.ne.s32.totalorder %v100, 0
  %vm123 = vcmp.ne.s32.totalorder %v107, 0
  %vm124 = vcmp.ne.s32.totalorder %v114, 0
  %vm125 = vcmp.ne.s32.totalorder %v121, 0
  %vm126 = vcmp.lt.s32.totalorder %v100, 0
  %vm127 = vcmp.lt.s32.totalorder %v107, 0
  %vm128 = vcmp.lt.s32.totalorder %v114, 0
  %vm129 = vcmp.lt.s32.totalorder %v121, 0
  %vm130 = vmand %vm126, %vm122
  %vm131 = vmand %vm127, %vm123
  %vm132 = vmand %vm128, %vm124
  %vm133 = vmand %vm129, %vm125
  %v134 = vadd.s32 %v100, 16
  %v135 = vadd.s32 %v107, 16
  %v136 = vadd.s32 %v114, 16
  %v137 = vadd.s32 %v121, 16
  %v138 = vsel %vm130, %v134, %v100
  %v139 = vsel %vm131, %v135, %v107
  %v140 = vsel %vm132, %v136, %v114
  %v141 = vsel %vm133, %v137, %v121
  %vm142 = vcmp.eq.s32.totalorder %v138, 0
  %vm143 = vcmp.eq.s32.totalorder %v139, 0
  %vm144 = vcmp.eq.s32.totalorder %v140, 0
  %vm145 = vcmp.eq.s32.totalorder %v141, 0
  %vm146 = vcmp.eq.s32.totalorder %v138, 15
  %vm147 = vcmp.eq.s32.totalorder %v139, 15
  %vm148 = vcmp.eq.s32.totalorder %v140, 15
  %vm149 = vcmp.eq.s32.totalorder %v141, 15
  %v150 = vrot.slane %v85, 7
  %v151 = vrot.slane %v86, 7
  %v152 = vrot.slane %v87, 7
  %v153 = vrot.slane %v88, 7
  %vm154 = vcmp.lt.s32.totalorder %v90, 1
  %v155 = vsel %vm154, %v152, %v153
  %v156 = vsel %vm154, %v151, %v152
  %v157 = vsel %vm154, %v150, %v151
  %v158 = vsel %vm154, %v153, %v150
  %v159 = vsel %vm142, 1, 0
  %v160 = vsel %vm143, 1, 0
  %v161 = vsel %vm144, 1, 0
  %v162 = vsel %vm145, 1, 0
  %vm163 = vcmp.eq.s32.totalorder %v159, 1
  %vm164 = vcmp.eq.s32.totalorder %v160, 1
  %vm165 = vcmp.eq.s32.totalorder %v161, 1
  %vm166 = vcmp.eq.s32.totalorder %v162, 1
  %v167 = vsel %vm163, 0.0, %v158
  %v168 = vsel %vm164, 0.0, %v157
  %v169 = vsel %vm165, 0.0, %v156
  %v170 = vsel %vm166, 0.0, %v155
  %v171 = vrot.slane %v85, 1
  %v172 = vrot.slane %v86, 1
  %v173 = vrot.slane %v87, 1
  %v174 = vrot.slane %v88, 1
  %vm175 = vcmp.lt.s32.totalorder %v90, 7
  %v176 = vsel %vm175, %v173, %v174
  %v177 = vsel %vm175, %v172, %v173
  %v178 = vsel %vm175, %v171, %v172
  %v179 = vsel %vm175, %v174, %v171
  %v180 = vsel %vm146, 1, 0
  %v181 = vsel %vm147, 1, 0
  %v182 = vsel %vm148, 1, 0
  %v183 = vsel %vm149, 1, 0
  %vm184 = vcmp.eq.s32.totalorder %v180, 1
  %vm185 = vcmp.eq.s32.totalorder %v181, 1
  %vm186 = vcmp.eq.s32.totalorder %v182, 1
  %vm187 = vcmp.eq.s32.totalorder %v183, 1
  %v188 = vsel %vm184, 0.0, %v178
  %v189 = vsel %vm185, 0.0, %v177
  %v190 = vsel %vm186, 0.0, %v176
  %v191 = vsel %vm187, 0.0, %v179
  %196 = vrot.lane.b32.xlu0 %v85, 5
  %v197 = vpop.permute.xlu0 %196
  %198 = vrot.lane.b32.xlu0 %v86, 5
  %v199 = vpop.permute.xlu0 %198
  %200 = vrot.lane.b32.xlu0 %v87, 5
  %v201 = vpop.permute.xlu0 %200
  %202 = vrot.lane.b32.xlu0 %v88, 5
  %v203 = vpop.permute.xlu0 %202
  %212 = vrot.lane.b32.xlu0 %v188, 10
  %v213 = vpop.permute.xlu0 %212
  %214 = vrot.lane.b32.xlu0 %v189, 10
  %v215 = vpop.permute.xlu0 %214
  %216 = vrot.lane.b32.xlu0 %v190, 10
  %v217 = vpop.permute.xlu0 %216
  %218 = vrot.lane.b32.xlu0 %v191, 10
  %v219 = vpop.permute.xlu0 %218
  %vm224 = vcmask 39936
  %v225 = vsel %vm224, %v167, %v197
  %v226 = vsel %vm224, %v168, %v199
  %v227 = vsel %vm224, %v169, %v201
  %v228 = vsel %vm224, %v170, %v203
  %vm229 = vcmask 80896
  %v230 = vsel %vm229, %v225, %v213
  %v231 = vsel %vm229, %v226, %v215
  %v232 = vsel %vm229, %v227, %v217
  %v233 = vsel %vm229, %v228, %v219
  %v234 = vpack.c.bf16 %v231, %v230
  %v235 = vpack.c.bf16 %v233, %v232
  %v237 = vlaneseq
  %v238 = vshrl.u32 %v237, 7
  %v239 = vsub.s32 0, %v238
  %v240 = vrot.slane %v67, %v239
  %v244 = vunpack.c.l.b16 %v65
  %v245 = vunpack.c.l.b16 %v66
  %v246 = vpack.c.b16 %v245, %v244
  %vm247 = vcmask 121856
  %v249 = vsel %vm247, %v234, 0
  %v252 = vsel %vm247, %v235, 0
  %vm254 = vcmask 1046528
  %vm255 = vcmask 1047552
  %v256 = vsel %vm254, 4294967295, 65535
  %v257 = vsel %vm255, %v256, 0
  %v259 = vand.u32 %v246, %v257
  %261 = vmatprep.subr.bf16.mxu0 0
  %262 = vmatpush1.bf16.msra.mxu0 0
  %263 = vmatprep.subr.bf16.mxu0 0
  %264 = vmatpush1.bf16.msra.mxu0 0
  %265 = vmatprep.subr.bf16.mxu0 0
  %266 = vmatpush1.bf16.msra.mxu0 0
  %267 = vmatprep.subr.bf16.mxu0 0
  %268 = vmatpush1.bf16.msra.mxu0 0
  %269 = vmatprep.subr.bf16.mxu0 0
  %270 = vmatpush1.bf16.msra.mxu0 0
  %271 = vmatprep.subr.bf16.mxu0 0
  %272 = vmatpush1.bf16.msra.mxu0 0
  %273 = vmatprep.subr.bf16.mxu0 0
  %274 = vmatpush1.bf16.msra.mxu0 0
  %275 = vmatprep.subr.bf16.mxu0 0
  %276 = vmatpush1.bf16.msra.mxu0 %v259
  %277 = vmatprep.subr.bf16.mxu0 0
  %278 = vmatpush2.bf16.msra.mxu0 0
  %279 = vmatprep.subr.bf16.mxu0 0
  %280 = vmatpush2.bf16.msra.mxu0 0
  %281 = vmatprep.subr.bf16.mxu0 0
  %282 = vmatpush2.bf16.msra.mxu0 0
  %283 = vmatprep.subr.bf16.mxu0 0
  %284 = vmatpush2.bf16.msra.mxu0 0
  %285 = vmatprep.subr.bf16.mxu0 0
  %286 = vmatpush2.bf16.msra.mxu0 0
  %287 = vmatprep.subr.bf16.mxu0 0
  %288 = vmatpush2.bf16.msra.mxu0 0
  %289 = vmatprep.subr.bf16.mxu0 0
  %290 = vmatpush2.bf16.msra.mxu0 0
  %291 = vmatprep.subr.bf16.mxu0 0
  %292 = vmatpush2.bf16.msra.mxu0 0
  %293 = vmatprep.mubr.bf16.mxu0 0
  %294 = vmatmul.mubr.bf16.gmra.mxu0 %v249
  %v295 = vpop.f32.mrf.mxu0
  %v296 = vadd.f32 %v240, %v295
  %v297 = vpop.f32.mrf.mxu0
  %v298 = vpop.f32.mrf.mxu0
  %v299 = vadd.f32 %v240, %v298
  %v300 = vpop.f32.mrf.mxu0
  %301 = vmatprep.mubr.bf16.mxu0 0
  %302 = vmatmul.mubr.bf16.gmra.mxu0 %v252
  %v303 = vpop.f32.mrf.mxu0
  %v304 = vadd.f32 %v240, %v303
  %v305 = vpop.f32.mrf.mxu0
  %v306 = vpop.f32.mrf.mxu0
  %v307 = vadd.f32 %v240, %v306
  %v308 = vpop.f32.mrf.mxu0
  %309 = vdwg.mxu0
  %v310 = vmax.f32 %v296, 0.0
  %v311 = vmax.f32 %v299, 0.0
  %v312 = vmax.f32 %v304, 0.0
  %v313 = vmax.f32 %v307, 0.0
  %v314 = vrot.slane %v310, 7
  %v315 = vrot.slane %v311, 7
  %v316 = vrot.slane %v312, 7
  %v317 = vrot.slane %v313, 7
  %v318 = vsel %vm154, %v316, %v317
  %v319 = vsel %vm154, %v315, %v316
  %v320 = vsel %vm154, %v314, %v315
  %v321 = vsel %vm154, %v317, %v314
  %v322 = vsel %vm163, 0.0, %v321
  %v323 = vsel %vm164, 0.0, %v320
  %v324 = vsel %vm165, 0.0, %v319
  %v325 = vsel %vm166, 0.0, %v318
  %v326 = vrot.slane %v310, 1
  %v327 = vrot.slane %v311, 1
  %v328 = vrot.slane %v312, 1
  %v329 = vrot.slane %v313, 1
  %v330 = vsel %vm175, %v328, %v329
  %v331 = vsel %vm175, %v327, %v328
  %v332 = vsel %vm175, %v326, %v327
  %v333 = vsel %vm175, %v329, %v326
  %v334 = vsel %vm184, 0.0, %v332
  %v335 = vsel %vm185, 0.0, %v331
  %v336 = vsel %vm186, 0.0, %v330
  %v337 = vsel %vm187, 0.0, %v333
  %342 = vrot.lane.b32.xlu0 %v310, 32
  %v343 = vpop.permute.xlu0 %342
  %344 = vrot.lane.b32.xlu0 %v311, 32
  %v345 = vpop.permute.xlu0 %344
  %346 = vrot.lane.b32.xlu0 %v312, 32
  %v347 = vpop.permute.xlu0 %346
  %348 = vrot.lane.b32.xlu0 %v313, 32
  %v349 = vpop.permute.xlu0 %348
  %358 = vrot.lane.b32.xlu0 %v334, 64
  %v359 = vpop.permute.xlu0 %358
  %360 = vrot.lane.b32.xlu0 %v335, 64
  %v361 = vpop.permute.xlu0 %360
  %362 = vrot.lane.b32.xlu0 %v336, 64
  %v363 = vpop.permute.xlu0 %362
  %364 = vrot.lane.b32.xlu0 %v337, 64
  %v365 = vpop.permute.xlu0 %364
  %vm370 = vcmask 261120
  %v371 = vsel %vm370, %v322, %v343
  %v372 = vsel %vm370, %v323, %v345
  %v373 = vsel %vm370, %v324, %v347
  %v374 = vsel %vm370, %v325, %v349
  %vm375 = vcmask 523264
  %v376 = vsel %vm375, %v371, %v359
  %v377 = vsel %vm375, %v372, %v361
  %v378 = vsel %vm375, %v373, %v363
  %v379 = vsel %vm375, %v374, %v365
  %v380 = vpack.c.bf16 %v377, %v376
  %v381 = vpack.c.bf16 %v379, %v378
  %v383 = vlaneseq
  %v384 = vshrl.u32 %v383, 7
  %v385 = vsub.s32 0, %v384
  %v386 = vrot.slane %v80, %v385
  %v400 = vunpack.c.l.b16 %v68
  %v401 = vunpack.c.l.b16 %v69
  %v402 = vunpack.c.l.b16 %v70
  %v403 = vunpack.c.l.b16 %v71
  %v404 = vunpack.c.l.b16 %v72
  %v405 = vunpack.c.l.b16 %v73
  %v406 = vunpack.c.l.b16 %v74
  %v407 = vunpack.c.l.b16 %v75
  %v408 = vunpack.c.l.b16 %v76
  %v409 = vunpack.c.l.b16 %v77
  %v410 = vunpack.c.l.b16 %v78
  %v411 = vunpack.c.l.b16 %v79
  %v412 = vpack.c.b16 %v401, %v400
  %v413 = vpack.c.b16 %v403, %v402
  %v414 = vpack.c.b16 %v405, %v404
  %v415 = vpack.c.b16 %v407, %v406
  %v416 = vpack.c.b16 %v409, %v408
  %v417 = vpack.c.b16 %v411, %v410
  %vm424 = vcmask 785408
  %v426 = vsel %vm424, %v380, 0
  %v429 = vsel %vm424, %v381, 0
  %431 = vmatprep.subr.bf16.mxu0 0
  %432 = vmatpush1.bf16.msra.mxu0 0
  %433 = vmatprep.subr.bf16.mxu0 0
  %434 = vmatpush1.bf16.msra.mxu0 0
  %435 = vmatprep.subr.bf16.mxu0 0
  %436 = vmatpush1.bf16.msra.mxu0 %v417
  %437 = vmatprep.subr.bf16.mxu0 0
  %438 = vmatpush1.bf16.msra.mxu0 %v416
  %439 = vmatprep.subr.bf16.mxu0 0
  %440 = vmatpush1.bf16.msra.mxu0 %v415
  %441 = vmatprep.subr.bf16.mxu0 0
  %442 = vmatpush1.bf16.msra.mxu0 %v414
  %443 = vmatprep.subr.bf16.mxu0 0
  %444 = vmatpush1.bf16.msra.mxu0 %v413
  %445 = vmatprep.subr.bf16.mxu0 0
  %446 = vmatpush1.bf16.msra.mxu0 %v412
  %447 = vmatprep.subr.bf16.mxu0 0
  %448 = vmatpush2.bf16.msra.mxu0 0
  %449 = vmatprep.subr.bf16.mxu0 0
  %450 = vmatpush2.bf16.msra.mxu0 0
  %451 = vmatprep.subr.bf16.mxu0 0
  %452 = vmatpush2.bf16.msra.mxu0 0
  %453 = vmatprep.subr.bf16.mxu0 0
  %454 = vmatpush2.bf16.msra.mxu0 0
  %455 = vmatprep.subr.bf16.mxu0 0
  %456 = vmatpush2.bf16.msra.mxu0 0
  %457 = vmatprep.subr.bf16.mxu0 0
  %458 = vmatpush2.bf16.msra.mxu0 0
  %459 = vmatprep.subr.bf16.mxu0 0
  %460 = vmatpush2.bf16.msra.mxu0 0
  %461 = vmatprep.subr.bf16.mxu0 0
  %462 = vmatpush2.bf16.msra.mxu0 0
  %463 = vmatprep.mubr.bf16.mxu0 0
  %464 = vmatmul.mubr.bf16.gmra.mxu0 %v426
  %v465 = vpop.f32.mrf.mxu0
  %v466 = vadd.f32 %v386, %v465
  %v467 = vpop.f32.mrf.mxu0
  %v468 = vpop.f32.mrf.mxu0
  %v469 = vadd.f32 %v386, %v468
  %v470 = vpop.f32.mrf.mxu0
  %471 = vmatprep.mubr.bf16.mxu0 0
  %472 = vmatmul.mubr.bf16.gmra.mxu0 %v429
  %v473 = vpop.f32.mrf.mxu0
  %v474 = vadd.f32 %v386, %v473
  %v475 = vpop.f32.mrf.mxu0
  %v476 = vpop.f32.mrf.mxu0
  %v477 = vadd.f32 %v386, %v476
  %v478 = vpop.f32.mrf.mxu0
  %479 = vdwg.mxu0
  %v480 = vmax.f32 %v466, 0.0
  %v481 = vmax.f32 %v469, 0.0
  %v482 = vmax.f32 %v474, 0.0
  %v483 = vmax.f32 %v477, 0.0
  %v484 = vsel %vm375, %v480, -inf
  %v485 = vsel %vm375, %v481, -inf
  %v486 = vmax.f32 %v484, %v485
  %v487 = vrot.slane %v486, 4
  %v488 = vmax.f32 %v486, %v487
  %v489 = vrot.slane %v488, 2
  %v490 = vmax.f32 %v488, %v489
  %v491 = vrot.slane %v490, 1
  %v492 = vmax.f32 %v490, %v491
  %v493 = vsel %vm375, %v482, -inf
  %v494 = vsel %vm375, %v483, -inf
  %v495 = vmax.f32 %v493, %v494
  %v496 = vrot.slane %v495, 4
  %v497 = vmax.f32 %v495, %v496
  %v498 = vrot.slane %v497, 2
  %v499 = vmax.f32 %v497, %v498
  %v500 = vrot.slane %v499, 1
  %v501 = vmax.f32 %v499, %v500
  %v502 = vld [vmem:[%s2] sm:$0xf]
  %v503 = vld [vmem:[%s2 + $0x4] sm:$0xf]
  %v504 = vunpack.c.l.bf16 %v502
  %v505 = vunpack.c.l.bf16 %v503
  %vm506 = vcmp.lt.s32.totalorder %v90, 0
  %v507 = vsub.s32 0, %v90
  %v508 = vsel %vm506, %v507, %v90
  %v509 = vshrl.u32 %v508, 3
  %v510 = vand.u32 %v508, 7
  %v511 = vsub.s32 0, %v510
  %v512 = vsel %vm506, %v511, %v510
  %vm513 = vcmp.lt.s32.totalorder %v91, 0
  %v514 = vsub.s32 0, %v91
  %v515 = vsel %vm513, %v514, %v91
  %v516 = vshrl.u32 %v515, 3
  %v517 = vand.u32 %v515, 7
  %v518 = vsub.s32 0, %v517
  %v519 = vsel %vm513, %v518, %v517
  %vm520 = vcmp.ne.s32.totalorder %v512, 0
  %vm521 = vcmp.ne.s32.totalorder %v519, 0
  %vm522 = vcmp.lt.s32.totalorder %v512, 0
  %vm523 = vcmp.lt.s32.totalorder %v519, 0
  %vm524 = vmand %vm522, %vm520
  %vm525 = vmand %vm523, %vm521
  %v526 = vadd.s32 %v512, 8
  %v527 = vadd.s32 %v519, 8
  %v528 = vsel %vm524, %v526, %v512
  %v529 = vsel %vm525, %v527, %v519
  %vm530 = vcmp.eq.s32.totalorder %v528, 0
  %vm531 = vcmp.eq.s32.totalorder %v529, 0
  %vm532 = vcmp.eq.s32.totalorder %v528, 7
  %vm533 = vcmp.eq.s32.totalorder %v529, 7
  %v534 = vrot.slane %v504, 7
  %v535 = vrot.slane %v505, 7
  %v536 = vsel %vm154, %v534, %v535
  %v537 = vsel %vm154, %v535, %v534
  %v538 = vsel %vm530, 1, 0
  %v539 = vsel %vm531, 1, 0
  %vm540 = vcmp.eq.s32.totalorder %v538, 1
  %vm541 = vcmp.eq.s32.totalorder %v539, 1
  %v542 = vsel %vm540, 0.0, %v537
  %v543 = vsel %vm541, 0.0, %v536
  %v544 = vrot.slane %v504, 1
  %v545 = vrot.slane %v505, 1
  %v546 = vsel %vm175, %v544, %v545
  %v547 = vsel %vm175, %v545, %v544
  %v548 = vsel %vm532, 1, 0
  %v549 = vsel %vm533, 1, 0
  %vm550 = vcmp.eq.s32.totalorder %v548, 1
  %vm551 = vcmp.eq.s32.totalorder %v549, 1
  %v552 = vsel %vm550, 0.0, %v546
  %v553 = vsel %vm551, 0.0, %v547
  %556 = vrot.lane.b32.xlu0 %v504, 5
  %v557 = vpop.permute.xlu0 %556
  %558 = vrot.lane.b32.xlu0 %v505, 5
  %v559 = vpop.permute.xlu0 %558
  %564 = vrot.lane.b32.xlu0 %v552, 10
  %v565 = vpop.permute.xlu0 %564
  %566 = vrot.lane.b32.xlu0 %v553, 10
  %v567 = vpop.permute.xlu0 %566
  %v570 = vsel %vm224, %v542, %v557
  %v571 = vsel %vm224, %v543, %v559
  %v572 = vsel %vm229, %v570, %v565
  %v573 = vsel %vm229, %v571, %v567
  %v574 = vpack.c.bf16 %v573, %v572
  %v576 = vsel %vm247, %v574, 0
  %578 = vmatprep.subr.bf16.mxu0 0
  %579 = vmatpush1.bf16.msra.mxu0 0
  %580 = vmatprep.subr.bf16.mxu0 0
  %581 = vmatpush1.bf16.msra.mxu0 0
  %582 = vmatprep.subr.bf16.mxu0 0
  %583 = vmatpush1.bf16.msra.mxu0 0
  %584 = vmatprep.subr.bf16.mxu0 0
  %585 = vmatpush1.bf16.msra.mxu0 0
  %586 = vmatprep.subr.bf16.mxu0 0
  %587 = vmatpush1.bf16.msra.mxu0 0
  %588 = vmatprep.subr.bf16.mxu0 0
  %589 = vmatpush1.bf16.msra.mxu0 0
  %590 = vmatprep.subr.bf16.mxu0 0
  %591 = vmatpush1.bf16.msra.mxu0 0
  %592 = vmatprep.subr.bf16.mxu0 0
  %593 = vmatpush1.bf16.msra.mxu0 %v259
  %594 = vmatprep.subr.bf16.mxu0 0
  %595 = vmatpush2.bf16.msra.mxu0 0
  %596 = vmatprep.subr.bf16.mxu0 0
  %597 = vmatpush2.bf16.msra.mxu0 0
  %598 = vmatprep.subr.bf16.mxu0 0
  %599 = vmatpush2.bf16.msra.mxu0 0
  %600 = vmatprep.subr.bf16.mxu0 0
  %601 = vmatpush2.bf16.msra.mxu0 0
  %602 = vmatprep.subr.bf16.mxu0 0
  %603 = vmatpush2.bf16.msra.mxu0 0
  %604 = vmatprep.subr.bf16.mxu0 0
  %605 = vmatpush2.bf16.msra.mxu0 0
  %606 = vmatprep.subr.bf16.mxu0 0
  %607 = vmatpush2.bf16.msra.mxu0 0
  %608 = vmatprep.subr.bf16.mxu0 0
  %609 = vmatpush2.bf16.msra.mxu0 0
  %610 = vmatprep.mubr.bf16.mxu0 0
  %611 = vmatmul.mubr.bf16.gmra.mxu0 %v576
  %v612 = vpop.f32.mrf.mxu0
  %v613 = vadd.f32 %v240, %v612
  %v614 = vpop.f32.mrf.mxu0
  %v615 = vpop.f32.mrf.mxu0
  %v616 = vadd.f32 %v240, %v615
  %v617 = vpop.f32.mrf.mxu0
  %618 = vdwg.mxu0
  %v619 = vmax.f32 %v613, 0.0
  %v620 = vmax.f32 %v616, 0.0
  %v621 = vrot.slane %v619, 7
  %v622 = vrot.slane %v620, 7
  %v623 = vsel %vm154, %v621, %v622
  %v624 = vsel %vm154, %v622, %v621
  %v625 = vsel %vm540, 0.0, %v624
  %v626 = vsel %vm541, 0.0, %v623
  %v627 = vrot.slane %v619, 1
  %v628 = vrot.slane %v620, 1
  %v629 = vsel %vm175, %v627, %v628
  %v630 = vsel %vm175, %v628, %v627
  %v631 = vsel %vm550, 0.0, %v629
  %v632 = vsel %vm551, 0.0, %v630
  %635 = vrot.lane.b32.xlu0 %v619, 32
  %v636 = vpop.permute.xlu0 %635
  %637 = vrot.lane.b32.xlu0 %v620, 32
  %v638 = vpop.permute.xlu0 %637
  %643 = vrot.lane.b32.xlu0 %v631, 64
  %v644 = vpop.permute.xlu0 %643
  %645 = vrot.lane.b32.xlu0 %v632, 64
  %v646 = vpop.permute.xlu0 %645
  %v649 = vsel %vm370, %v625, %v636
  %v650 = vsel %vm370, %v626, %v638
  %v651 = vsel %vm375, %v649, %v644
  %v652 = vsel %vm375, %v650, %v646
  %v653 = vpack.c.bf16 %v652, %v651
  %v655 = vsel %vm424, %v653, 0
  %657 = vmatprep.subr.bf16.mxu0 0
  %658 = vmatpush1.bf16.msra.mxu0 0
  %659 = vmatprep.subr.bf16.mxu0 0
  %660 = vmatpush1.bf16.msra.mxu0 0
  %661 = vmatprep.subr.bf16.mxu0 0
  %662 = vmatpush1.bf16.msra.mxu0 %v417
  %663 = vmatprep.subr.bf16.mxu0 0
  %664 = vmatpush1.bf16.msra.mxu0 %v416
  %665 = vmatprep.subr.bf16.mxu0 0
  %666 = vmatpush1.bf16.msra.mxu0 %v415
  %667 = vmatprep.subr.bf16.mxu0 0
  %668 = vmatpush1.bf16.msra.mxu0 %v414
  %669 = vmatprep.subr.bf16.mxu0 0
  %670 = vmatpush1.bf16.msra.mxu0 %v413
  %671 = vmatprep.subr.bf16.mxu0 0
  %672 = vmatpush1.bf16.msra.mxu0 %v412
  %673 = vmatprep.subr.bf16.mxu0 0
  %674 = vmatpush2.bf16.msra.mxu0 0
  %675 = vmatprep.subr.bf16.mxu0 0
  %676 = vmatpush2.bf16.msra.mxu0 0
  %677 = vmatprep.subr.bf16.mxu0 0
  %678 = vmatpush2.bf16.msra.mxu0 0
  %679 = vmatprep.subr.bf16.mxu0 0
  %680 = vmatpush2.bf16.msra.mxu0 0
  %681 = vmatprep.subr.bf16.mxu0 0
  %682 = vmatpush2.bf16.msra.mxu0 0
  %683 = vmatprep.subr.bf16.mxu0 0
  %684 = vmatpush2.bf16.msra.mxu0 0
  %685 = vmatprep.subr.bf16.mxu0 0
  %686 = vmatpush2.bf16.msra.mxu0 0
  %687 = vmatprep.subr.bf16.mxu0 0
  %688 = vmatpush2.bf16.msra.mxu0 0
  %689 = vmatprep.mubr.bf16.mxu0 0
  %690 = vmatmul.mubr.bf16.gmra.mxu0 %v655
  %v691 = vpop.f32.mrf.mxu0
  %v692 = vadd.f32 %v386, %v691
  %v693 = vpop.f32.mrf.mxu0
  %v694 = vpop.f32.mrf.mxu0
  %v695 = vadd.f32 %v386, %v694
  %v696 = vpop.f32.mrf.mxu0
  %697 = vdwg.mxu0
  %v698 = vmax.f32 %v692, 0.0
  %v699 = vmax.f32 %v695, 0.0
  %v700 = vsel %vm375, %v698, -inf
  %v701 = vrot.slane %v700, 4
  %v702 = vmax.f32 %v700, %v701
  %v703 = vrot.slane %v702, 2
  %v704 = vmax.f32 %v702, %v703
  %v705 = vrot.slane %v704, 1
  %v706 = vmax.f32 %v704, %v705
  %v707 = vsel %vm375, %v699, -inf
  %v708 = vrot.slane %v707, 4
  %v709 = vmax.f32 %v707, %v708
  %v710 = vrot.slane %v709, 2
  %v711 = vmax.f32 %v709, %v710
  %v712 = vrot.slane %v711, 1
  %v713 = vmax.f32 %v711, %v712
  %v714 = vld [vmem:[%s0] sm:$0x1]
  %v715 = vld [vmem:[%s7] sm:$0xf]
  %v716 = vld [vmem:[%s7 + $0x4] sm:$0xf]
  %v717 = vld [vmem:[%s7 + $0x8] sm:$0xf]
  %v718 = vld [vmem:[%s7 + $0xc] sm:$0xf]
  %v719 = vld [vmem:[%s7 + $0x10] sm:$0xf]
  %v720 = vld [vmem:[%s7 + $0x14] sm:$0xf]
  %v721 = vld [vmem:[%s7 + $0x18] sm:$0xf]
  %v722 = vld [vmem:[%s7 + $0x1c] sm:$0xf]
  %v723 = vld [vmem:[%s7 + $0x20] sm:$0xf]
  %v724 = vld [vmem:[%s7 + $0x24] sm:$0xf]
  %v725 = vld [vmem:[%s7 + $0x28] sm:$0xf]
  %v726 = vld [vmem:[%s7 + $0x2c] sm:$0xf]
  %v727 = vld [vmem:[%s7 + $0x30] sm:$0xf]
  %v728 = vld [vmem:[%s7 + $0x34] sm:$0xf]
  %v729 = vld [vmem:[%s7 + $0x38] sm:$0xf]
  %v730 = vld [vmem:[%s7 + $0x3c] sm:$0xf]
  %v731 = vpack.c.bf16 %v492, %v492
  %v732 = vpack.c.bf16 %v501, %v501
  %v733 = vld [vmem:[%s8] sm:$0xf]
  %v734 = vld [vmem:[%s8 + $0x4] sm:$0xf]
  %v735 = vld [vmem:[%s8 + $0x8] sm:$0xf]
  %v736 = vld [vmem:[%s8 + $0xc] sm:$0xf]
  %v737 = vld [vmem:[%s8 + $0x10] sm:$0xf]
  %v738 = vld [vmem:[%s8 + $0x14] sm:$0xf]
  %v739 = vld [vmem:[%s8 + $0x18] sm:$0xf]
  %v740 = vld [vmem:[%s8 + $0x1c] sm:$0xf]
  %v743 = vunpack.c.l.b16 %v731
  %v744 = vunpack.c.l.b16 %v732
  %vm745 = vcmask 1041409
  %v746 = vsel %vm745, %v744, %v743
  %v747 = vpack.c.b16 %v746, %v746
  %v756 = vunpack.c.l.b16 %v733
  %v757 = vunpack.c.l.b16 %v734
  %v758 = vunpack.c.l.b16 %v735
  %v759 = vunpack.c.l.b16 %v736
  %v760 = vunpack.c.l.b16 %v737
  %v761 = vunpack.c.l.b16 %v738
  %v762 = vunpack.c.l.b16 %v739
  %v763 = vunpack.c.l.b16 %v740
  %v764 = vpack.c.b16 %v757, %v756
  %v765 = vpack.c.b16 %v759, %v758
  %v766 = vpack.c.b16 %v761, %v760
  %v767 = vpack.c.b16 %v763, %v762
  %v773 = vsel %vm375, %v747, 0
  %775 = vmatprep.subr.bf16.mxu0 0
  %776 = vmatpush1.bf16.msra.mxu0 0
  %777 = vmatprep.subr.bf16.mxu0 0
  %778 = vmatpush1.bf16.msra.mxu0 0
  %779 = vmatprep.subr.bf16.mxu0 0
  %780 = vmatpush1.bf16.msra.mxu0 0
  %781 = vmatprep.subr.bf16.mxu0 0
  %782 = vmatpush1.bf16.msra.mxu0 0
  %783 = vmatprep.subr.bf16.mxu0 0
  %784 = vmatpush1.bf16.msra.mxu0 %v767
  %785 = vmatprep.subr.bf16.mxu0 0
  %786 = vmatpush1.bf16.msra.mxu0 %v766
  %787 = vmatprep.subr.bf16.mxu0 0
  %788 = vmatpush1.bf16.msra.mxu0 %v765
  %789 = vmatprep.subr.bf16.mxu0 0
  %790 = vmatpush1.bf16.msra.mxu0 %v764
  %791 = vmatprep.subr.bf16.mxu0 0
  %792 = vmatpush2.bf16.msra.mxu0 0
  %793 = vmatprep.subr.bf16.mxu0 0
  %794 = vmatpush2.bf16.msra.mxu0 0
  %795 = vmatprep.subr.bf16.mxu0 0
  %796 = vmatpush2.bf16.msra.mxu0 0
  %797 = vmatprep.subr.bf16.mxu0 0
  %798 = vmatpush2.bf16.msra.mxu0 0
  %799 = vmatprep.subr.bf16.mxu0 0
  %800 = vmatpush2.bf16.msra.mxu0 0
  %801 = vmatprep.subr.bf16.mxu0 0
  %802 = vmatpush2.bf16.msra.mxu0 0
  %803 = vmatprep.subr.bf16.mxu0 0
  %804 = vmatpush2.bf16.msra.mxu0 0
  %805 = vmatprep.subr.bf16.mxu0 0
  %806 = vmatpush2.bf16.msra.mxu0 0
  %807 = vmatprep.mubr.bf16.mxu0 0
  %808 = vmatmul.mubr.bf16.gmra.mxu0 %v773
  %v809 = vpop.f32.mrf.mxu0
  %v810 = vadd.f32 0.0, %v809
  %v811 = vpop.f32.mrf.mxu0
  %v812 = vpop.f32.mrf.mxu0
  %v813 = vpop.f32.mrf.mxu0
  %814 = vdwg.mxu0
  %v831 = vunpack.c.l.b16 %v715
  %v832 = vunpack.c.l.b16 %v716
  %v833 = vunpack.c.l.b16 %v717
  %v834 = vunpack.c.l.b16 %v718
  %v835 = vunpack.c.l.b16 %v719
  %v836 = vunpack.c.l.b16 %v720
  %v837 = vunpack.c.l.b16 %v721
  %v838 = vunpack.c.l.b16 %v722
  %v839 = vunpack.c.l.b16 %v723
  %v840 = vunpack.c.l.b16 %v724
  %v841 = vunpack.c.l.b16 %v725
  %v842 = vunpack.c.l.b16 %v726
  %v843 = vunpack.c.l.b16 %v727
  %v844 = vunpack.c.l.b16 %v728
  %v845 = vunpack.c.l.b16 %v729
  %v846 = vunpack.c.l.b16 %v730
  %v847 = vpack.c.b16 %v832, %v831
  %v848 = vpack.c.b16 %v834, %v833
  %v849 = vpack.c.b16 %v836, %v835
  %v850 = vpack.c.b16 %v838, %v837
  %v851 = vpack.c.b16 %v840, %v839
  %v852 = vpack.c.b16 %v842, %v841
  %v853 = vpack.c.b16 %v844, %v843
  %v854 = vpack.c.b16 %v846, %v845
  %863 = vmatprep.subr.bf16.mxu0 0
  %864 = vmatpush1.bf16.msra.mxu0 %v854
  %865 = vmatprep.subr.bf16.mxu0 0
  %866 = vmatpush1.bf16.msra.mxu0 %v853
  %867 = vmatprep.subr.bf16.mxu0 0
  %868 = vmatpush1.bf16.msra.mxu0 %v852
  %869 = vmatprep.subr.bf16.mxu0 0
  %870 = vmatpush1.bf16.msra.mxu0 %v851
  %871 = vmatprep.subr.bf16.mxu0 0
  %872 = vmatpush1.bf16.msra.mxu0 %v850
  %873 = vmatprep.subr.bf16.mxu0 0
  %874 = vmatpush1.bf16.msra.mxu0 %v849
  %875 = vmatprep.subr.bf16.mxu0 0
  %876 = vmatpush1.bf16.msra.mxu0 %v848
  %877 = vmatprep.subr.bf16.mxu0 0
  %878 = vmatpush1.bf16.msra.mxu0 %v847
  %879 = vmatprep.subr.bf16.mxu0 0
  %880 = vmatpush2.bf16.msra.mxu0 0
  %881 = vmatprep.subr.bf16.mxu0 0
  %882 = vmatpush2.bf16.msra.mxu0 0
  %883 = vmatprep.subr.bf16.mxu0 0
  %884 = vmatpush2.bf16.msra.mxu0 0
  %885 = vmatprep.subr.bf16.mxu0 0
  %886 = vmatpush2.bf16.msra.mxu0 0
  %887 = vmatprep.subr.bf16.mxu0 0
  %888 = vmatpush2.bf16.msra.mxu0 0
  %889 = vmatprep.subr.bf16.mxu0 0
  %890 = vmatpush2.bf16.msra.mxu0 0
  %891 = vmatprep.subr.bf16.mxu0 0
  %892 = vmatpush2.bf16.msra.mxu0 0
  %893 = vmatprep.subr.bf16.mxu0 0
  %894 = vmatpush2.bf16.msra.mxu0 0
  %895 = vmatprep.mubr.bf16.mxu0 0
  %896 = vmatmul.mubr.bf16.gmra.mxu0 %v714
  %v897 = vpop.f32.mrf.mxu0
  %v898 = vadd.f32 %v810, %v897
  %v899 = vpop.f32.mrf.mxu0
  %v900 = vpop.f32.mrf.mxu0
  %v901 = vpop.f32.mrf.mxu0
  %902 = vdwg.mxu0
  %v903 = vpack.c.bf16 %v706, %v706
  %v904 = vpack.c.bf16 %v713, %v713
  %v905 = vld [vmem:[%s9] sm:$0xf]
  %v906 = vld [vmem:[%s9 + $0x4] sm:$0xf]
  %v907 = vld [vmem:[%s9 + $0x8] sm:$0xf]
  %v908 = vld [vmem:[%s9 + $0xc] sm:$0xf]
  %v909 = vld [vmem:[%s9 + $0x10] sm:$0xf]
  %v910 = vld [vmem:[%s9 + $0x14] sm:$0xf]
  %v911 = vld [vmem:[%s9 + $0x18] sm:$0xf]
  %v912 = vld [vmem:[%s9 + $0x1c] sm:$0xf]
  %v915 = vunpack.c.l.b16 %v903
  %v916 = vunpack.c.l.b16 %v904
  %v917 = vsel %vm745, %v916, %v915
  %v918 = vpack.c.b16 %v917, %v917
  %v927 = vunpack.c.l.b16 %v905
  %v928 = vunpack.c.l.b16 %v906
  %v929 = vunpack.c.l.b16 %v907
  %v930 = vunpack.c.l.b16 %v908
  %v931 = vunpack.c.l.b16 %v909
  %v932 = vunpack.c.l.b16 %v910
  %v933 = vunpack.c.l.b16 %v911
  %v934 = vunpack.c.l.b16 %v912
  %v935 = vpack.c.b16 %v928, %v927
  %v936 = vpack.c.b16 %v930, %v929
  %v937 = vpack.c.b16 %v932, %v931
  %v938 = vpack.c.b16 %v934, %v933
  %v944 = vsel %vm375, %v918, 0
  %946 = vmatprep.subr.bf16.mxu0 0
  %947 = vmatpush1.bf16.msra.mxu0 0
  %948 = vmatprep.subr.bf16.mxu0 0
  %949 = vmatpush1.bf16.msra.mxu0 0
  %950 = vmatprep.subr.bf16.mxu0 0
  %951 = vmatpush1.bf16.msra.mxu0 0
  %952 = vmatprep.subr.bf16.mxu0 0
  %953 = vmatpush1.bf16.msra.mxu0 0
  %954 = vmatprep.subr.bf16.mxu0 0
  %955 = vmatpush1.bf16.msra.mxu0 %v938
  %956 = vmatprep.subr.bf16.mxu0 0
  %957 = vmatpush1.bf16.msra.mxu0 %v937
  %958 = vmatprep.subr.bf16.mxu0 0
  %959 = vmatpush1.bf16.msra.mxu0 %v936
  %960 = vmatprep.subr.bf16.mxu0 0
  %961 = vmatpush1.bf16.msra.mxu0 %v935
  %962 = vmatprep.subr.bf16.mxu0 0
  %963 = vmatpush2.bf16.msra.mxu0 0
  %964 = vmatprep.subr.bf16.mxu0 0
  %965 = vmatpush2.bf16.msra.mxu0 0
  %966 = vmatprep.subr.bf16.mxu0 0
  %967 = vmatpush2.bf16.msra.mxu0 0
  %968 = vmatprep.subr.bf16.mxu0 0
  %969 = vmatpush2.bf16.msra.mxu0 0
  %970 = vmatprep.subr.bf16.mxu0 0
  %971 = vmatpush2.bf16.msra.mxu0 0
  %972 = vmatprep.subr.bf16.mxu0 0
  %973 = vmatpush2.bf16.msra.mxu0 0
  %974 = vmatprep.subr.bf16.mxu0 0
  %975 = vmatpush2.bf16.msra.mxu0 0
  %976 = vmatprep.subr.bf16.mxu0 0
  %977 = vmatpush2.bf16.msra.mxu0 0
  %978 = vmatprep.mubr.bf16.mxu0 0
  %979 = vmatmul.mubr.bf16.gmra.mxu0 %v944
  %v980 = vpop.f32.mrf.mxu0
  %v981 = vadd.f32 0.0, %v980
  %v982 = vpop.f32.mrf.mxu0
  %v983 = vpop.f32.mrf.mxu0
  %v984 = vpop.f32.mrf.mxu0
  %985 = vdwg.mxu0
  %v986 = vadd.f32 %v898, %v981
  %v987 = vld [vmem:[%s10] sm:$0x1]
  %v989 = vlaneseq
  %v990 = vshrl.u32 %v989, 7
  %v991 = vsub.s32 0, %v990
  %v992 = vrot.slane %v987, %v991
  %v994 = vadd.f32 %v986, %v992
  %v995 = vld [vmem:[%s11] sm:$0x1]
  %v996 = vld [vmem:[%s12] sm:$0x1]
  %vm997 = vcmask 517120
  %v998 = vsel %vm997, %v994, 0.0
  %999 = vadd.xlane.f32.xlu0 %v998
  %v1000 = vpop.xlane.xlu0 %999
  %v1001 = vrcp.pop 64.0
  %v1002 = vmul.f32 %v1000, %v1001
  %v1003 = vsub.f32 %v994, %v1002
  %v1004 = vmul.f32 %v1003, %v1003
  %v1005 = vsel %vm997, %v1004, 0.0
  %1006 = vadd.xlane.f32.xlu0 %v1005
  %v1007 = vpop.xlane.xlu0 %1006
  %v1008 = vmul.f32 %v1007, %v1001
  %v1009 = vadd.f32 %v1008, 1e-05
  %v1010 = vrsqrt.pop %v1009
  %v1011 = vmul.f32 %v1003, %v1010
  %v1013 = vlaneseq
  %v1014 = vshrl.u32 %v1013, 7
  %v1015 = vsub.s32 0, %v1014
  %v1016 = vrot.slane %v995, %v1015
  %v1018 = vmul.f32 %v1011, %v1016
  %v1020 = vlaneseq
  %v1021 = vshrl.u32 %v1020, 7
  %v1022 = vsub.s32 0, %v1021
  %v1023 = vrot.slane %v996, %v1022
  %v1025 = vadd.f32 %v1018, %v1023
  %v1026 = vmax.f32 %v1025, 0.0
  %v1027 = vpack.c.bf16 %v1026, %v1026
  %v1028 = vld [vmem:[%s13] sm:$0xf]
  %v1029 = vld [vmem:[%s13 + $0x4] sm:$0xf]
  %v1030 = vld [vmem:[%s13 + $0x8] sm:$0xf]
  %v1031 = vld [vmem:[%s13 + $0xc] sm:$0xf]
  %v1032 = vld [vmem:[%s13 + $0x10] sm:$0xf]
  %v1033 = vld [vmem:[%s13 + $0x14] sm:$0xf]
  %v1034 = vld [vmem:[%s13 + $0x18] sm:$0xf]
  %v1035 = vld [vmem:[%s13 + $0x1c] sm:$0xf]
  %v1036 = vld [vmem:[%s14] sm:$0x1]
  %v1038 = vlaneseq
  %v1039 = vshrl.u32 %v1038, 7
  %v1040 = vsub.s32 0, %v1039
  %v1041 = vrot.slane %v1036, %v1040
  %v1051 = vunpack.c.l.b16 %v1028
  %v1052 = vunpack.c.l.b16 %v1029
  %v1053 = vunpack.c.l.b16 %v1030
  %v1054 = vunpack.c.l.b16 %v1031
  %v1055 = vunpack.c.l.b16 %v1032
  %v1056 = vunpack.c.l.b16 %v1033
  %v1057 = vunpack.c.l.b16 %v1034
  %v1058 = vunpack.c.l.b16 %v1035
  %v1059 = vpack.c.b16 %v1052, %v1051
  %v1060 = vpack.c.b16 %v1054, %v1053
  %v1061 = vpack.c.b16 %v1056, %v1055
  %v1062 = vpack.c.b16 %v1058, %v1057
  %v1068 = vsel %vm375, %v1027, 0
  %1070 = vmatprep.subr.bf16.mxu0 0
  %1071 = vmatpush1.bf16.msra.mxu0 0
  %1072 = vmatprep.subr.bf16.mxu0 0
  %1073 = vmatpush1.bf16.msra.mxu0 0
  %1074 = vmatprep.subr.bf16.mxu0 0
  %1075 = vmatpush1.bf16.msra.mxu0 0
  %1076 = vmatprep.subr.bf16.mxu0 0
  %1077 = vmatpush1.bf16.msra.mxu0 0
  %1078 = vmatprep.subr.bf16.mxu0 0
  %1079 = vmatpush1.bf16.msra.mxu0 %v1062
  %1080 = vmatprep.subr.bf16.mxu0 0
  %1081 = vmatpush1.bf16.msra.mxu0 %v1061
  %1082 = vmatprep.subr.bf16.mxu0 0
  %1083 = vmatpush1.bf16.msra.mxu0 %v1060
  %1084 = vmatprep.subr.bf16.mxu0 0
  %1085 = vmatpush1.bf16.msra.mxu0 %v1059
  %1086 = vmatprep.subr.bf16.mxu0 0
  %1087 = vmatpush2.bf16.msra.mxu0 0
  %1088 = vmatprep.subr.bf16.mxu0 0
  %1089 = vmatpush2.bf16.msra.mxu0 0
  %1090 = vmatprep.subr.bf16.mxu0 0
  %1091 = vmatpush2.bf16.msra.mxu0 0
  %1092 = vmatprep.subr.bf16.mxu0 0
  %1093 = vmatpush2.bf16.msra.mxu0 0
  %1094 = vmatprep.subr.bf16.mxu0 0
  %1095 = vmatpush2.bf16.msra.mxu0 0
  %1096 = vmatprep.subr.bf16.mxu0 0
  %1097 = vmatpush2.bf16.msra.mxu0 0
  %1098 = vmatprep.subr.bf16.mxu0 0
  %1099 = vmatpush2.bf16.msra.mxu0 0
  %1100 = vmatprep.subr.bf16.mxu0 0
  %1101 = vmatpush2.bf16.msra.mxu0 0
  %1102 = vmatprep.mubr.bf16.mxu0 0
  %1103 = vmatmul.mubr.bf16.gmra.mxu0 %v1068
  %v1104 = vpop.f32.mrf.mxu0
  %v1105 = vadd.f32 %v1041, %v1104
  %v1106 = vpop.f32.mrf.mxu0
  %v1107 = vpop.f32.mrf.mxu0
  %v1108 = vpop.f32.mrf.mxu0
  %1109 = vdwg.mxu0
  %v1110 = vld [vmem:[%s15] sm:$0x1]
  %v1111 = vld [vmem:[%s16] sm:$0x1]
  %vm1112 = vcmask 254976
  %v1113 = vsel %vm1112, %v1105, 0.0
  %1114 = vadd.xlane.f32.xlu0 %v1113
  %v1115 = vpop.xlane.xlu0 %1114
  %v1116 = vrcp.pop 32.0
  %v1117 = vmul.f32 %v1115, %v1116
  %v1118 = vsub.f32 %v1105, %v1117
  %v1119 = vmul.f32 %v1118, %v1118
  %v1120 = vsel %vm1112, %v1119, 0.0
  %1121 = vadd.xlane.f32.xlu0 %v1120
  %v1122 = vpop.xlane.xlu0 %1121
  %v1123 = vmul.f32 %v1122, %v1116
  %v1124 = vadd.f32 %v1123, 1e-05
  %v1125 = vrsqrt.pop %v1124
  %v1126 = vmul.f32 %v1118, %v1125
  %v1128 = vlaneseq
  %v1129 = vshrl.u32 %v1128, 7
  %v1130 = vsub.s32 0, %v1129
  %v1131 = vrot.slane %v1110, %v1130
  %v1133 = vmul.f32 %v1126, %v1131
  %v1135 = vlaneseq
  %v1136 = vshrl.u32 %v1135, 7
  %v1137 = vsub.s32 0, %v1136
  %v1138 = vrot.slane %v1111, %v1137
  %v1140 = vadd.f32 %v1133, %v1138
  %v1141 = vmax.f32 %v1140, 0.0
  %v1142 = vld [vmem:[%s17] sm:$0x1]
  %v1144 = vlaneseq
  %v1145 = vshrl.u32 %v1144, 7
  %v1146 = vsub.s32 0, %v1145
  %v1147 = vrot.slane %v1142, %v1146
  %v1149 = vmul.f32 %v1141, %v1147
  %v1150 = vsel %vm1112, %v1149, 0.0
  %1151 = vadd.xlane.f32.xlu0 %v1150
  %v1152 = vpop.xlane.xlu0 %1151
  %v1153 = vld [vmem:[#allocation2] sm:$0x1]
  %v1155 = vlaneseq
  %v1156 = vshrl.u32 %v1155, 7
  %v1157 = vsub.s32 0, %v1156
  %v1158 = vrot.slane %v1153, %v1157
  %v1160 = vadd.f32 %v1152, %v1158
  %v1161 = vxor.u32 %v1160, 2147483648
  %v1162 = vmul.f32 %v1161, 1.442695
  %v1163 = vpow.pop %v1162
  %v1164 = vadd.f32 %v1163, 1.0
  %v1165 = vrcp.pop %v1164
  %v1166 = vmul.f32 1.0, %v1165
  %vm1167 = vcmask 1024
  %1168 = vst.msk [vmem:[%s19] sm:$0x3] %vm1167, %v1166
  // Predicated region
  $region78: #{mhc_peptide_forward.1} parent=0 // pred_check
    _
  $region79: #{mhc_peptide_forward.1} parent=0 // pred_check_branch
    %1170 = sbr.rel (0) target = $region81
  $region80: #{mhc_peptide_forward.1} parent=0 // pred_region
    _
  $region81: #{mhc_peptide_forward.1} parent=0 // pred_fallthru
    _
  // Predicated region
  $region82: #{mhc_peptide_forward.1} parent=0 // pred_check
    _
  $region83: #{mhc_peptide_forward.1} parent=0 // pred_check_branch
    %1172 = sbr.rel (0) target = $region85
  $region84: #{mhc_peptide_forward.1} parent=0 // pred_region
    _
  $region85: #{mhc_peptide_forward.1} parent=0 // pred_fallthru
    _

</llo_original>
